<compile_context>
chip_gen: v5e
topology: v5e:2x2
jax: 0.10.0
libtpu: 0.0.40
codegen_flags: <defaults>
</compile_context>

<pallas_src>
import functools

import jax
import jax.numpy as jnp
from jax.experimental import pallas as pl
from jax.experimental.pallas import tpu as pltpu


# ----------------------------- shared helpers -----------------------------

def _layernorm(x, w, b, eps=1e-6):
    mu = jnp.mean(x, axis=-1, keepdims=True)
    var = jnp.mean((x - mu) ** 2, axis=-1, keepdims=True)
    return (x - mu) * jax.lax.rsqrt(var + eps) * w + b


def _gelu_exact(x):
    # nn.GELU default: exact erf-based GELU
    return 0.5 * x * (1.0 + jax.lax.erf(x * (2.0 ** -0.5)))


# ------------- fully fused forward kernel (embed -> blocks -> head) -------------

def _vit_fused_kernel(B, Np, num_heads,
                      patches_ref, pw_ref, tokbias_ref, mask_ref,
                      ln1w_ref, ln1b_ref, wqkv_ref, bqkv_ref,
                      wproj_ref, bproj_ref, ln2w_ref, ln2b_ref,
                      fc1w_ref, fc1b_ref, fc2w_ref, fc2b_ref,
                      normw_ref, normb_ref, headw_ref, headb_ref,
                      o_ref, x_sc):
    d = pl.program_id(0)
    bf16 = jnp.bfloat16
    f32 = jnp.float32

    # ---- front end (runs once, at the first depth step) ----
    @pl.when(d == 0)
    def _():
        # Patch embedding + cls token + positional embedding, all rows at once.
        # patches rows per image:  [cls slot(=0) | patches          | pad(=0)]
        # tok_bias rows per image: [cls_tok+pos0 | pos_i + patch_b  | 0      ]
        x_sc[...] = jnp.dot(patches_ref[...], pw_ref[...],
                            preferred_element_type=f32) + tokbias_ref[...]

    x = x_sc[...]                                   # (M, C) f32 residual stream
    M, C = x.shape
    H = num_heads
    Dh = C // H

    # ---- attention: x + sum_h softmax(q_h k_h^T + mask) v_h W_proj[h] + b_proj ----
    h1 = _layernorm(x, ln1w_ref[0], ln1b_ref[0])
    # one lane-dense (M, C) @ (C, 3C) matmul; q columns pre-scaled by Dh**-0.5
    qkv = jnp.dot(h1.astype(bf16), wqkv_ref[0],
                  preferred_element_type=f32) + bqkv_ref[0]        # (M, 3C) f32
    qkv_b = qkv.astype(bf16)
    wproj = wproj_ref[0]                                           # (C, C) bf16
    mask = mask_ref[...]                                           # (M, M) additive

    attn = None
    for h in range(H):                 # static unroll; head-sum folded into projection
        qh = qkv_b[:, h * Dh:(h + 1) * Dh]
        kh = qkv_b[:, C + h * Dh:C + (h + 1) * Dh]
        vh = qkv_b[:, 2 * C + h * Dh:2 * C + (h + 1) * Dh]
        # scores over all M rows; cross-image / padded-key entries masked out
        s = jax.lax.dot_general(qh, kh, (((1,), (1,)), ((), ())),
                                preferred_element_type=f32)        # (M, M)
        s = s + mask
        s = s - jnp.max(s, axis=-1, keepdims=True)
        e = jnp.exp(s)
        p = e * pl.reciprocal(jnp.sum(e, axis=-1, keepdims=True), approx=True)
        oh = jnp.dot(p.astype(bf16), vh, preferred_element_type=f32)      # (M, Dh)
        ph = jnp.dot(oh.astype(bf16), wproj[h * Dh:(h + 1) * Dh, :],
                     preferred_element_type=f32)                          # (M, C)
        attn = ph if attn is None else attn + ph
    x = x + attn + bproj_ref[0]

    # ---- MLP branch: x + fc2(GELU(fc1(LN2(x)))) ----
    h2 = _layernorm(x, ln2w_ref[0], ln2b_ref[0])
    h2 = jnp.dot(h2.astype(bf16), fc1w_ref[0],
                 preferred_element_type=f32) + fc1b_ref[0]
    h2 = _gelu_exact(h2)
    h2 = jnp.dot(h2.astype(bf16), fc2w_ref[0],
                 preferred_element_type=f32) + fc2b_ref[0]
    x = x + h2
    x_sc[...] = x

    # ---- back end (runs once, at the last depth step): final LN + classifier ----
    @pl.when(d == pl.num_programs(0) - 1)
    def _():
        xn = _layernorm(x, normw_ref[...], normb_ref[...])
        logits = jnp.dot(xn.astype(bf16), headw_ref[...],
                         preferred_element_type=f32) + headb_ref[...]     # (M, KP)
        for b in range(B):             # emit only the cls-token logits, lane-dense
            o_ref[b:b + 1, :] = logits[b * Np:b * Np + 1, :]


def vit_fused_call(patches_flat, patch_w, tok_bias, attn_mask, fused,
                   norm_w, norm_b, head_w, head_b, *, B, Np, num_heads):
    M, P = patches_flat.shape
    C = tok_bias.shape[-1]
    depth = fused["ln1_w"].shape[0]
    Hd = fused["fc1_w"].shape[-1]
    KP = head_w.shape[-1]

    def cspec(r, c):                       # depth-invariant input (fetched once)
        return pl.BlockSpec((r, c), lambda d: (0, 0))

    def wspec(*dims):                      # per-depth stacked weights
        n = len(dims)
        return pl.BlockSpec((1,) + dims, lambda d, n=n: (d,) + (0,) * n)

    kernel = functools.partial(_vit_fused_kernel, B, Np, num_heads)
    return pl.pallas_call(
        kernel,
        out_shape=jax.ShapeDtypeStruct((B, KP), jnp.float32),
        grid=(depth,),
        in_specs=[
            cspec(M, P),                    # padded patch rows (bf16)
            cspec(P, C),                    # patch-embed weight (bf16)
            cspec(M, C),                    # token bias (cls + pos + patch bias)
            cspec(M, M),                    # additive attention mask
            wspec(1, C), wspec(1, C),       # ln1 w/b
            wspec(C, 3 * C), wspec(1, 3 * C),   # fused qkv w/b (q pre-scaled)
            wspec(C, C), wspec(1, C),       # proj w/b
            wspec(1, C), wspec(1, C),       # ln2 w/b
            wspec(C, Hd), wspec(1, Hd),     # fc1 w/b
            wspec(Hd, C), wspec(1, C),      # fc2 w/b
            cspec(1, C), cspec(1, C),       # final norm w/b
            cspec(C, KP), cspec(1, KP),     # head w/b (padded to 128 lanes)
        ],
        out_specs=pl.BlockSpec((B, KP), lambda d: (0, 0)),
        scratch_shapes=[pltpu.VMEM((M, C), jnp.float32)],
        compiler_params=pltpu.CompilerParams(
            dimension_semantics=("arbitrary",)),
    )(patches_flat, patch_w, tok_bias, attn_mask,
      fused["ln1_w"], fused["ln1_b"], fused["wqkv"], fused["bqkv"],
      fused["wproj"], fused["bproj"], fused["ln2_w"], fused["ln2_b"],
      fused["fc1_w"], fused["fc1_b"], fused["fc2_w"], fused["fc2_b"],
      norm_w, norm_b, head_w, head_b)


def prepare_fused_params(params, num_heads):
    """Stack per-block weights over depth; pre-scale q by Dh**-0.5; bf16 for MXU."""
    blocks = params["blocks"]
    C = blocks[0]["qkv_w"].shape[0]
    scale = (C // num_heads) ** -0.5
    bf16 = jnp.bfloat16

    # scale only the q columns of the fused (C, 3C) qkv weight / (1, 3C) bias
    qscale = jnp.concatenate([jnp.full((C,), scale, jnp.float32),
                              jnp.ones((2 * C,), jnp.float32)])

    def stack(fn):
        return jnp.stack([fn(b) for b in blocks], axis=0)

    return {
        "ln1_w": stack(lambda b: b["ln1_w"]),
        "ln1_b": stack(lambda b: b["ln1_b"]),
        "wqkv": stack(lambda b: b["qkv_w"] * qscale[None, :]).astype(bf16),
        "bqkv": stack(lambda b: b["qkv_b"] * qscale[None, :]),
        "wproj": stack(lambda b: b["proj_w"]).astype(bf16),
        "bproj": stack(lambda b: b["proj_b"]),
        "ln2_w": stack(lambda b: b["ln2_w"]),
        "ln2_b": stack(lambda b: b["ln2_b"]),
        "fc1_w": stack(lambda b: b["fc1_w"]).astype(bf16),
        "fc1_b": stack(lambda b: b["fc1_b"]),
        "fc2_w": stack(lambda b: b["fc2_w"]).astype(bf16),
        "fc2_b": stack(lambda b: b["fc2_b"]),
    }


# ------------------------------ full forward --------------------------------

def extract_patches(x_img, patch_size):
    # conv-as-matmul patch extraction; channel-major per patch to match the
    # Conv2d weight flattened as (Cin*ps*ps, E)
    B, Cin, Hh, Ww = x_img.shape
    ps = patch_size
    Gh, Gw = Hh // ps, Ww // ps
    p = x_img.reshape(B, Cin, Gh, ps, Gw, ps)
    p = p.transpose(0, 2, 4, 1, 3, 5)          # (B, Gh, Gw, Cin, ps, ps)
    return p.reshape(B, Gh * Gw, Cin * ps * ps), Gh * Gw


def vit_forward(x_img, params, *, patch_size, num_heads):
    B = x_img.shape[0]
    patches, num_patches = extract_patches(x_img, patch_size)   # (B, np, P)
    P = patches.shape[-1]
    C = params["patch_w"].shape[1]
    n_real = num_patches + 1                    # +1 cls token
    Np = ((n_real + 7) // 8) * 8                # pad tokens to a sublane multiple
    M = B * Np

    # padded patch rows: [cls slot(=0) | patches | pad(=0)] per image
    patches_pad = jnp.pad(patches, ((0, 0), (1, Np - n_real), (0, 0)))
    patches_flat = patches_pad.reshape(M, P).astype(jnp.bfloat16)

    # token bias rows: [cls_token + pos0 | pos_i + patch_b | 0] per image
    pos = params["pos_embed"][0]                # (n_real, C)
    cls = params["cls_token"][0]                # (1, C)
    tb = jnp.concatenate([cls + pos[0:1],
                          pos[1:] + params["patch_b"],
                          jnp.zeros((Np - n_real, C), jnp.float32)], axis=0)
    tok_bias = jnp.tile(tb, (B, 1))             # (M, C)

    # additive attention mask: 0 for same-image real keys, -1e30 otherwise
    tok = jnp.arange(M)
    same_img = (tok[:, None] // Np) == (tok[None, :] // Np)
    key_real = (tok[None, :] % Np) < n_real
    attn_mask = jnp.where(same_img & key_real, 0.0, -1e30).astype(jnp.float32)

    fused = prepare_fused_params(params, num_heads)

    K = params["head_w"].shape[1]
    KP = ((K + 127) // 128) * 128               # lane-dense logits, sliced back
    head_w = jnp.pad(params["head_w"], ((0, 0), (0, KP - K))).astype(jnp.bfloat16)
    head_b = jnp.pad(params["head_b"], ((0, 0), (0, KP - K)))

    logits = vit_fused_call(patches_flat, params["patch_w"].astype(jnp.bfloat16),
                            tok_bias, attn_mask, fused,
                            params["norm_w"], params["norm_b"], head_w, head_b,
                            B=B, Np=Np, num_heads=num_heads)
    return logits[:, :K]


vit_forward_jit = jax.jit(vit_forward, static_argnames=("patch_size", "num_heads"))


# ----------------------------- pure-JAX reference ---------------------------

def vit_reference(x_img, params, *, patch_size, num_heads):
    B = x_img.shape[0]
    patches, num_patches = extract_patches(x_img, patch_size)   # (B, np, P)
    emb = patches @ params["patch_w"] + params["patch_b"]       # (B, np, C)
    C = emb.shape[-1]

    cls = jnp.broadcast_to(params["cls_token"], (B, 1, C))
    x = jnp.concatenate([cls, emb], axis=1) + params["pos_embed"]
    N = x.shape[1]
    Dh = C // num_heads
    scale = Dh ** -0.5

    for blk in params["blocks"]:
        h = _layernorm(x, blk["ln1_w"], blk["ln1_b"])
        qkv = h @ blk["qkv_w"] + blk["qkv_b"]                    # (B, N, 3C)
        qkv = qkv.reshape(B, N, 3, num_heads, Dh).transpose(2, 0, 3, 1, 4)
        q, k, v = qkv[0], qkv[1], qkv[2]                         # (B, H, N, Dh)
        att = jnp.einsum("bhnd,bhmd->bhnm", q, k) * scale
        att = jax.nn.softmax(att, axis=-1)
        o = jnp.einsum("bhnm,bhmd->bhnd", att, v)
        o = o.transpose(0, 2, 1, 3).reshape(B, N, C)
        x = x + (o @ blk["proj_w"] + blk["proj_b"])

        h = _layernorm(x, blk["ln2_w"], blk["ln2_b"])
        h = _gelu_exact(h @ blk["fc1_w"] + blk["fc1_b"])
        x = x + (h @ blk["fc2_w"] + blk["fc2_b"])

    cls_out = _layernorm(x[:, 0], params["norm_w"], params["norm_b"])
    return cls_out @ params["head_w"] + params["head_b"]


# -------------------------------- params ------------------------------------

def init_params(key, *, in_c, patch_size, embed_dim, depth, num_heads,
                mlp_ratio, num_patches, num_classes):
    P = in_c * patch_size * patch_size
    hidden = int(embed_dim * mlp_ratio)
    keys = iter(jax.random.split(key, 8 + 12 * depth))
    f32 = jnp.float32

    def rnd(shape, std):
        return jax.random.normal(next(keys), shape, f32) * std

    params = {
        # conv weight (E, Cin, ps, ps) flattened channel-major -> (P, E)
        "patch_w": rnd((P, embed_dim), (2.0 / P) ** 0.5),
        "patch_b": rnd((1, embed_dim), 0.02),
        "cls_token": rnd((1, 1, embed_dim), 0.02),
        "pos_embed": rnd((1, num_patches + 1, embed_dim), 0.02),
        "norm_w": 1.0 + rnd((1, embed_dim), 0.05),
        "norm_b": rnd((1, embed_dim), 0.02),
        "head_w": rnd((embed_dim, num_classes), 0.01),
        "head_b": rnd((1, num_classes), 0.02),
        "blocks": [],
    }
    for _ in range(depth):
        blk = {
            "ln1_w": 1.0 + rnd((1, embed_dim), 0.05),
            "ln1_b": rnd((1, embed_dim), 0.02),
            "qkv_w": rnd((embed_dim, 3 * embed_dim), 0.02),
            "qkv_b": rnd((1, 3 * embed_dim), 0.02),
            "proj_w": rnd((embed_dim, embed_dim), 0.02),
            "proj_b": rnd((1, embed_dim), 0.02),
            "ln2_w": 1.0 + rnd((1, embed_dim), 0.05),
            "ln2_b": rnd((1, embed_dim), 0.02),
            "fc1_w": rnd((embed_dim, hidden), 0.02),
            "fc1_b": rnd((1, hidden), 0.02),
            "fc2_w": rnd((hidden, embed_dim), 0.02),
            "fc2_b": rnd((1, embed_dim), 0.02),
        }
        params["blocks"].append(blk)
    return params


# --------------------------------- main --------------------------------------

if __name__ == "__main__":
    # small ViT: img 16x16, patch 4, in_c 4 -> 16 patches, 17 tokens (padded to 24)
    B, IN_C, IMG, PS = 2, 4, 16, 4
    EMBED, DEPTH, HEADS, MLP_RATIO, NUM_CLASSES = 32, 2, 4, 4.0, 10
    NUM_PATCHES = (IMG // PS) * (IMG // PS)

    key = jax.random.PRNGKey(0)
    kx, kp = jax.random.split(key)
    x_img = jax.random.normal(kx, (B, IN_C, IMG, IMG), jnp.float32)   # NCHW like PyTorch

    params = init_params(kp, in_c=IN_C, patch_size=PS, embed_dim=EMBED,
                         depth=DEPTH, num_heads=HEADS, mlp_ratio=MLP_RATIO,
                         num_patches=NUM_PATCHES, num_classes=NUM_CLASSES)

    out = vit_forward_jit(x_img, params, patch_size=PS, num_heads=HEADS)
    out = jax.block_until_ready(out)

    ref = vit_reference(x_img, params, patch_size=PS, num_heads=HEADS)
    assert out.shape == (B, NUM_CLASSES), out.shape
    # kernel uses bf16 MXU operands with f32 accumulation; reference is pure f32
    max_diff = jnp.max(jnp.abs(out - ref))
    assert jnp.allclose(out, ref, rtol=5e-2, atol=5e-3), f"max abs diff {max_diff}"

    print("KERNEL_OK")
</pallas_src>

<mosaic_0001>
module attributes {stable_mosaic.version = 11 : i64} {
  func.func @_vit_fused_kernel(%arg0: i32, %arg1: memref<48x64xbf16, #tpu.memory_space<vmem>>, %arg2: memref<64x32xbf16, #tpu.memory_space<vmem>>, %arg3: memref<48x32xf32, #tpu.memory_space<vmem>>, %arg4: memref<48x48xf32, #tpu.memory_space<vmem>>, %arg5: memref<1x1x32xf32, #tpu.memory_space<vmem>>, %arg6: memref<1x1x32xf32, #tpu.memory_space<vmem>>, %arg7: memref<1x32x96xbf16, #tpu.memory_space<vmem>>, %arg8: memref<1x1x96xf32, #tpu.memory_space<vmem>>, %arg9: memref<1x32x32xbf16, #tpu.memory_space<vmem>>, %arg10: memref<1x1x32xf32, #tpu.memory_space<vmem>>, %arg11: memref<1x1x32xf32, #tpu.memory_space<vmem>>, %arg12: memref<1x1x32xf32, #tpu.memory_space<vmem>>, %arg13: memref<1x32x128xbf16, #tpu.memory_space<vmem>>, %arg14: memref<1x1x128xf32, #tpu.memory_space<vmem>>, %arg15: memref<1x128x32xbf16, #tpu.memory_space<vmem>>, %arg16: memref<1x1x32xf32, #tpu.memory_space<vmem>>, %arg17: memref<1x32xf32, #tpu.memory_space<vmem>>, %arg18: memref<1x32xf32, #tpu.memory_space<vmem>>, %arg19: memref<32x128xbf16, #tpu.memory_space<vmem>>, %arg20: memref<1x128xf32, #tpu.memory_space<vmem>>, %arg21: memref<2x128xf32, #tpu.memory_space<vmem>>, %arg22: memref<48x32xf32, #tpu.memory_space<vmem>>) attributes {dimension_semantics = [#tpu.dimension_semantics<arbitrary>], iteration_bounds = array<i64: 2>, scalar_prefetch = 0 : i64, scratch_operands = 1 : i64, tpu.core_type = #tpu.core_type<tc>, window_params = [{pipeline_mode = #tpu.pipeline_mode<synchronous>, transform_indices = @transform_0, window_bounds = array<i64: 48, 64>}, {pipeline_mode = #tpu.pipeline_mode<synchronous>, transform_indices = @transform_1, window_bounds = array<i64: 64, 32>}, {pipeline_mode = #tpu.pipeline_mode<synchronous>, transform_indices = @transform_2, window_bounds = array<i64: 48, 32>}, {pipeline_mode = #tpu.pipeline_mode<synchronous>, transform_indices = @transform_3, window_bounds = array<i64: 48, 48>}, {transform_indices = @transform_4, window_bounds = array<i64: 1, 1, 32>}, {transform_indices = @transform_5, window_bounds = array<i64: 1, 1, 32>}, {transform_indices = @transform_6, window_bounds = array<i64: 1, 32, 96>}, {transform_indices = @transform_7, window_bounds = array<i64: 1, 1, 96>}, {transform_indices = @transform_8, window_bounds = array<i64: 1, 32, 32>}, {transform_indices = @transform_9, window_bounds = array<i64: 1, 1, 32>}, {transform_indices = @transform_10, window_bounds = array<i64: 1, 1, 32>}, {transform_indices = @transform_11, window_bounds = array<i64: 1, 1, 32>}, {transform_indices = @transform_12, window_bounds = array<i64: 1, 32, 128>}, {transform_indices = @transform_13, window_bounds = array<i64: 1, 1, 128>}, {transform_indices = @transform_14, window_bounds = array<i64: 1, 128, 32>}, {transform_indices = @transform_15, window_bounds = array<i64: 1, 1, 32>}, {pipeline_mode = #tpu.pipeline_mode<synchronous>, transform_indices = @transform_16, window_bounds = array<i64: 1, 32>}, {pipeline_mode = #tpu.pipeline_mode<synchronous>, transform_indices = @transform_17, window_bounds = array<i64: 1, 32>}, {pipeline_mode = #tpu.pipeline_mode<synchronous>, transform_indices = @transform_18, window_bounds = array<i64: 32, 128>}, {pipeline_mode = #tpu.pipeline_mode<synchronous>, transform_indices = @transform_19, window_bounds = array<i64: 1, 128>}, {pipeline_mode = #tpu.pipeline_mode<synchronous>, transform_indices = @transform_20, window_bounds = array<i64: 2, 128>}]} {
    %c0_i32 = arith.constant 0 : i32
    %0 = arith.cmpi eq, %arg0, %c0_i32 : i32
    %1 = arith.extui %0 : i1 to i32
    %c0_i32_0 = arith.constant 0 : i32
    %2 = arith.cmpi ne, %1, %c0_i32_0 : i32
    scf.if %2 {
      %c0_78 = arith.constant 0 : index
      %c0_79 = arith.constant 0 : index
      %185 = vector.load %arg1[%c0_78, %c0_79] : memref<48x64xbf16, #tpu.memory_space<vmem>>, vector<48x64xbf16>
      %c0_80 = arith.constant 0 : index
      %c0_81 = arith.constant 0 : index
      %186 = vector.load %arg2[%c0_80, %c0_81] : memref<64x32xbf16, #tpu.memory_space<vmem>>, vector<64x32xbf16>
      %cst_82 = arith.constant dense<0.000000e+00> : vector<48x32xf32>
      %187 = tpu.matmul %185, %186, %cst_82 {dimension_numbers = #tpu.dot_dimension_numbers<[1], [0], [0], [1], [0, 0, 1, 1], [], []>} : vector<48x64xbf16>, vector<64x32xbf16>, vector<48x32xf32> -> vector<48x32xf32>
      %c0_83 = arith.constant 0 : index
      %c0_84 = arith.constant 0 : index
      %188 = vector.load %arg3[%c0_83, %c0_84] : memref<48x32xf32, #tpu.memory_space<vmem>>, vector<48x32xf32>
      %189 = arith.addf %187, %188 : vector<48x32xf32>
      %c0_85 = arith.constant 0 : index
      %c0_86 = arith.constant 0 : index
      %190 = vector.load %arg22[%c0_85, %c0_86] : memref<48x32xf32, #tpu.memory_space<vmem>>, vector<48x32xf32>
      tpu.vector_store %arg22[%c0_85, %c0_86], %189 {strides = array<i32>} : memref<48x32xf32, #tpu.memory_space<vmem>>, vector<48x32xf32>,
    } else {
    }
    %c0 = arith.constant 0 : index
    %c0_1 = arith.constant 0 : index
    %3 = vector.load %arg22[%c0, %c0_1] : memref<48x32xf32, #tpu.memory_space<vmem>>, vector<48x32xf32>
    %c0_2 = arith.constant 0 : index
    %c0_3 = arith.constant 0 : index
    %c0_4 = arith.constant 0 : index
    %4 = vector.load %arg5[%c0_2, %c0_3, %c0_4] : memref<1x1x32xf32, #tpu.memory_space<vmem>>, vector<1x1x32xf32>
    %5 = vector.shape_cast %4 : vector<1x1x32xf32> to vector<1x32xf32>
    %c0_5 = arith.constant 0 : index
    %c0_6 = arith.constant 0 : index
    %c0_7 = arith.constant 0 : index
    %6 = vector.load %arg6[%c0_5, %c0_6, %c0_7] : memref<1x1x32xf32, #tpu.memory_space<vmem>>, vector<1x1x32xf32>
    %7 = vector.shape_cast %6 : vector<1x1x32xf32> to vector<1x32xf32>
    %cst = arith.constant dense<0.000000e+00> : vector<48xf32>
    %8 = vector.multi_reduction <add>, %3, %cst [1] : vector<48x32xf32> to vector<48xf32>
    %9 = vector.shape_cast %8 : vector<48xf32> to vector<48x1xf32>
    %cst_8 = arith.constant 3.200000e+01 : f32
    %10 = vector.broadcast %cst_8 : f32 to vector<48x1xf32>
    %11 = arith.divf %9, %10 : vector<48x1xf32>
    %12 = vector.broadcast %11 : vector<48x1xf32> to vector<48x32xf32>
    %13 = arith.subf %3, %12 : vector<48x32xf32>
    %14 = arith.mulf %13, %13 : vector<48x32xf32>
    %cst_9 = arith.constant dense<0.000000e+00> : vector<48xf32>
    %15 = vector.multi_reduction <add>, %14, %cst_9 [1] : vector<48x32xf32> to vector<48xf32>
    %16 = vector.shape_cast %15 : vector<48xf32> to vector<48x1xf32>
    %cst_10 = arith.constant 3.200000e+01 : f32
    %17 = vector.broadcast %cst_10 : f32 to vector<48x1xf32>
    %18 = arith.divf %16, %17 : vector<48x1xf32>
    %19 = vector.broadcast %11 : vector<48x1xf32> to vector<48x32xf32>
    %20 = arith.subf %3, %19 : vector<48x32xf32>
    %cst_11 = arith.constant 9.99999997E-7 : f32
    %21 = vector.broadcast %cst_11 : f32 to vector<48x1xf32>
    %22 = arith.addf %18, %21 : vector<48x1xf32>
    %23 = math.rsqrt %22 : vector<48x1xf32>
    %24 = vector.broadcast %23 : vector<48x1xf32> to vector<48x32xf32>
    %25 = arith.mulf %20, %24 : vector<48x32xf32>
    %26 = vector.broadcast %5 : vector<1x32xf32> to vector<48x32xf32>
    %27 = arith.mulf %25, %26 : vector<48x32xf32>
    %28 = vector.broadcast %7 : vector<1x32xf32> to vector<48x32xf32>
    %29 = arith.addf %27, %28 : vector<48x32xf32>
    %30 = arith.truncf %29 : vector<48x32xf32> to vector<48x32xbf16>
    %c0_12 = arith.constant 0 : index
    %c0_13 = arith.constant 0 : index
    %c0_14 = arith.constant 0 : index
    %31 = vector.load %arg7[%c0_12, %c0_13, %c0_14] : memref<1x32x96xbf16, #tpu.memory_space<vmem>>, vector<1x32x96xbf16>
    %32 = vector.shape_cast %31 : vector<1x32x96xbf16> to vector<32x96xbf16>
    %cst_15 = arith.constant dense<0.000000e+00> : vector<48x96xf32>
    %33 = tpu.matmul %30, %32, %cst_15 {dimension_numbers = #tpu.dot_dimension_numbers<[1], [0], [0], [1], [0, 0, 1, 1], [], []>} : vector<48x32xbf16>, vector<32x96xbf16>, vector<48x96xf32> -> vector<48x96xf32>
    %c0_16 = arith.constant 0 : index
    %c0_17 = arith.constant 0 : index
    %c0_18 = arith.constant 0 : index
    %34 = vector.load %arg8[%c0_16, %c0_17, %c0_18] : memref<1x1x96xf32, #tpu.memory_space<vmem>>, vector<1x1x96xf32>
    %35 = vector.shape_cast %34 : vector<1x1x96xf32> to vector<1x96xf32>
    %36 = vector.broadcast %35 : vector<1x96xf32> to vector<48x96xf32>
    %37 = arith.addf %33, %36 : vector<48x96xf32>
    %38 = arith.truncf %37 : vector<48x96xf32> to vector<48x96xbf16>
    %c0_19 = arith.constant 0 : index
    %c0_20 = arith.constant 0 : index
    %c0_21 = arith.constant 0 : index
    %39 = vector.load %arg9[%c0_19, %c0_20, %c0_21] : memref<1x32x32xbf16, #tpu.memory_space<vmem>>, vector<1x32x32xbf16>
    %40 = vector.shape_cast %39 : vector<1x32x32xbf16> to vector<32x32xbf16>
    %c0_22 = arith.constant 0 : index
    %c0_23 = arith.constant 0 : index
    %41 = vector.load %arg4[%c0_22, %c0_23] : memref<48x48xf32, #tpu.memory_space<vmem>>, vector<48x48xf32>
    %42 = vector.extract_strided_slice %38 {offsets = [0, 0], sizes = [48, 8], strides = [1, 1]} : vector<48x96xbf16> to vector<48x8xbf16>
    %43 = vector.extract_strided_slice %38 {offsets = [0, 32], sizes = [48, 8], strides = [1, 1]} : vector<48x96xbf16> to vector<48x8xbf16>
    %44 = vector.extract_strided_slice %38 {offsets = [0, 64], sizes = [48, 8], strides = [1, 1]} : vector<48x96xbf16> to vector<48x8xbf16>
    %cst_24 = arith.constant dense<0.000000e+00> : vector<48x48xf32>
    %45 = tpu.matmul %42, %43, %cst_24 {dimension_numbers = #tpu.dot_dimension_numbers<[1], [1], [0], [0], [0, 0, 1, 0], [], []>} : vector<48x8xbf16>, vector<48x8xbf16>, vector<48x48xf32> -> vector<48x48xf32>
    %46 = arith.addf %45, %41 : vector<48x48xf32>
    %cst_25 = arith.constant dense<0xFF800000> : vector<48xf32>
    %47 = vector.multi_reduction <maximumf>, %46, %cst_25 [1] : vector<48x48xf32> to vector<48xf32>
    %48 = vector.shape_cast %47 : vector<48xf32> to vector<48x1xf32>
    %49 = vector.broadcast %48 : vector<48x1xf32> to vector<48x48xf32>
    %50 = arith.subf %46, %49 : vector<48x48xf32>
    %51 = math.exp %50 : vector<48x48xf32>
    %cst_26 = arith.constant dense<0.000000e+00> : vector<48xf32>
    %52 = vector.multi_reduction <add>, %51, %cst_26 [1] : vector<48x48xf32> to vector<48xf32>
    %53 = vector.shape_cast %52 : vector<48xf32> to vector<48x1xf32>
    %54 = tpu.reciprocal %53 {approx = true} : vector<48x1xf32> -> vector<48x1xf32>
    %55 = vector.broadcast %54 : vector<48x1xf32> to vector<48x48xf32>
    %56 = arith.mulf %51, %55 : vector<48x48xf32>
    %57 = arith.truncf %56 : vector<48x48xf32> to vector<48x48xbf16>
    %cst_27 = arith.constant dense<0.000000e+00> : vector<48x8xf32>
    %58 = tpu.matmul %57, %44, %cst_27 {dimension_numbers = #tpu.dot_dimension_numbers<[1], [0], [0], [1], [0, 0, 1, 1], [], []>} : vector<48x48xbf16>, vector<48x8xbf16>, vector<48x8xf32> -> vector<48x8xf32>
    %59 = arith.truncf %58 : vector<48x8xf32> to vector<48x8xbf16>
    %60 = vector.extract_strided_slice %40 {offsets = [0, 0], sizes = [8, 32], strides = [1, 1]} : vector<32x32xbf16> to vector<8x32xbf16>
    %cst_28 = arith.constant dense<0.000000e+00> : vector<48x32xf32>
    %61 = tpu.matmul %59, %60, %cst_28 {dimension_numbers = #tpu.dot_dimension_numbers<[1], [0], [0], [1], [0, 0, 1, 1], [], []>} : vector<48x8xbf16>, vector<8x32xbf16>, vector<48x32xf32> -> vector<48x32xf32>
    %62 = vector.extract_strided_slice %38 {offsets = [0, 8], sizes = [48, 8], strides = [1, 1]} : vector<48x96xbf16> to vector<48x8xbf16>
    %63 = vector.extract_strided_slice %38 {offsets = [0, 40], sizes = [48, 8], strides = [1, 1]} : vector<48x96xbf16> to vector<48x8xbf16>
    %64 = vector.extract_strided_slice %38 {offsets = [0, 72], sizes = [48, 8], strides = [1, 1]} : vector<48x96xbf16> to vector<48x8xbf16>
    %cst_29 = arith.constant dense<0.000000e+00> : vector<48x48xf32>
    %65 = tpu.matmul %62, %63, %cst_29 {dimension_numbers = #tpu.dot_dimension_numbers<[1], [1], [0], [0], [0, 0, 1, 0], [], []>} : vector<48x8xbf16>, vector<48x8xbf16>, vector<48x48xf32> -> vector<48x48xf32>
    %66 = arith.addf %65, %41 : vector<48x48xf32>
    %cst_30 = arith.constant dense<0xFF800000> : vector<48xf32>
    %67 = vector.multi_reduction <maximumf>, %66, %cst_30 [1] : vector<48x48xf32> to vector<48xf32>
    %68 = vector.shape_cast %67 : vector<48xf32> to vector<48x1xf32>
    %69 = vector.broadcast %68 : vector<48x1xf32> to vector<48x48xf32>
    %70 = arith.subf %66, %69 : vector<48x48xf32>
    %71 = math.exp %70 : vector<48x48xf32>
    %cst_31 = arith.constant dense<0.000000e+00> : vector<48xf32>
    %72 = vector.multi_reduction <add>, %71, %cst_31 [1] : vector<48x48xf32> to vector<48xf32>
    %73 = vector.shape_cast %72 : vector<48xf32> to vector<48x1xf32>
    %74 = tpu.reciprocal %73 {approx = true} : vector<48x1xf32> -> vector<48x1xf32>
    %75 = vector.broadcast %74 : vector<48x1xf32> to vector<48x48xf32>
    %76 = arith.mulf %71, %75 : vector<48x48xf32>
    %77 = arith.truncf %76 : vector<48x48xf32> to vector<48x48xbf16>
    %cst_32 = arith.constant dense<0.000000e+00> : vector<48x8xf32>
    %78 = tpu.matmul %77, %64, %cst_32 {dimension_numbers = #tpu.dot_dimension_numbers<[1], [0], [0], [1], [0, 0, 1, 1], [], []>} : vector<48x48xbf16>, vector<48x8xbf16>, vector<48x8xf32> -> vector<48x8xf32>
    %79 = arith.truncf %78 : vector<48x8xf32> to vector<48x8xbf16>
    %80 = vector.extract_strided_slice %40 {offsets = [8, 0], sizes = [8, 32], strides = [1, 1]} : vector<32x32xbf16> to vector<8x32xbf16>
    %cst_33 = arith.constant dense<0.000000e+00> : vector<48x32xf32>
    %81 = tpu.matmul %79, %80, %cst_33 {dimension_numbers = #tpu.dot_dimension_numbers<[1], [0], [0], [1], [0, 0, 1, 1], [], []>} : vector<48x8xbf16>, vector<8x32xbf16>, vector<48x32xf32> -> vector<48x32xf32>
    %82 = arith.addf %61, %81 : vector<48x32xf32>
    %83 = vector.extract_strided_slice %38 {offsets = [0, 16], sizes = [48, 8], strides = [1, 1]} : vector<48x96xbf16> to vector<48x8xbf16>
    %84 = vector.extract_strided_slice %38 {offsets = [0, 48], sizes = [48, 8], strides = [1, 1]} : vector<48x96xbf16> to vector<48x8xbf16>
    %85 = vector.extract_strided_slice %38 {offsets = [0, 80], sizes = [48, 8], strides = [1, 1]} : vector<48x96xbf16> to vector<48x8xbf16>
    %cst_34 = arith.constant dense<0.000000e+00> : vector<48x48xf32>
    %86 = tpu.matmul %83, %84, %cst_34 {dimension_numbers = #tpu.dot_dimension_numbers<[1], [1], [0], [0], [0, 0, 1, 0], [], []>} : vector<48x8xbf16>, vector<48x8xbf16>, vector<48x48xf32> -> vector<48x48xf32>
    %87 = arith.addf %86, %41 : vector<48x48xf32>
    %cst_35 = arith.constant dense<0xFF800000> : vector<48xf32>
    %88 = vector.multi_reduction <maximumf>, %87, %cst_35 [1] : vector<48x48xf32> to vector<48xf32>
    %89 = vector.shape_cast %88 : vector<48xf32> to vector<48x1xf32>
    %90 = vector.broadcast %89 : vector<48x1xf32> to vector<48x48xf32>
    %91 = arith.subf %87, %90 : vector<48x48xf32>
    %92 = math.exp %91 : vector<48x48xf32>
    %cst_36 = arith.constant dense<0.000000e+00> : vector<48xf32>
    %93 = vector.multi_reduction <add>, %92, %cst_36 [1] : vector<48x48xf32> to vector<48xf32>
    %94 = vector.shape_cast %93 : vector<48xf32> to vector<48x1xf32>
    %95 = tpu.reciprocal %94 {approx = true} : vector<48x1xf32> -> vector<48x1xf32>
    %96 = vector.broadcast %95 : vector<48x1xf32> to vector<48x48xf32>
    %97 = arith.mulf %92, %96 : vector<48x48xf32>
    %98 = arith.truncf %97 : vector<48x48xf32> to vector<48x48xbf16>
    %cst_37 = arith.constant dense<0.000000e+00> : vector<48x8xf32>
    %99 = tpu.matmul %98, %85, %cst_37 {dimension_numbers = #tpu.dot_dimension_numbers<[1], [0], [0], [1], [0, 0, 1, 1], [], []>} : vector<48x48xbf16>, vector<48x8xbf16>, vector<48x8xf32> -> vector<48x8xf32>
    %100 = arith.truncf %99 : vector<48x8xf32> to vector<48x8xbf16>
    %101 = vector.extract_strided_slice %40 {offsets = [16, 0], sizes = [8, 32], strides = [1, 1]} : vector<32x32xbf16> to vector<8x32xbf16>
    %cst_38 = arith.constant dense<0.000000e+00> : vector<48x32xf32>
    %102 = tpu.matmul %100, %101, %cst_38 {dimension_numbers = #tpu.dot_dimension_numbers<[1], [0], [0], [1], [0, 0, 1, 1], [], []>} : vector<48x8xbf16>, vector<8x32xbf16>, vector<48x32xf32> -> vector<48x32xf32>
    %103 = arith.addf %82, %102 : vector<48x32xf32>
    %104 = vector.extract_strided_slice %38 {offsets = [0, 24], sizes = [48, 8], strides = [1, 1]} : vector<48x96xbf16> to vector<48x8xbf16>
    %105 = vector.extract_strided_slice %38 {offsets = [0, 56], sizes = [48, 8], strides = [1, 1]} : vector<48x96xbf16> to vector<48x8xbf16>
    %106 = vector.extract_strided_slice %38 {offsets = [0, 88], sizes = [48, 8], strides = [1, 1]} : vector<48x96xbf16> to vector<48x8xbf16>
    %cst_39 = arith.constant dense<0.000000e+00> : vector<48x48xf32>
    %107 = tpu.matmul %104, %105, %cst_39 {dimension_numbers = #tpu.dot_dimension_numbers<[1], [1], [0], [0], [0, 0, 1, 0], [], []>} : vector<48x8xbf16>, vector<48x8xbf16>, vector<48x48xf32> -> vector<48x48xf32>
    %108 = arith.addf %107, %41 : vector<48x48xf32>
    %cst_40 = arith.constant dense<0xFF800000> : vector<48xf32>
    %109 = vector.multi_reduction <maximumf>, %108, %cst_40 [1] : vector<48x48xf32> to vector<48xf32>
    %110 = vector.shape_cast %109 : vector<48xf32> to vector<48x1xf32>
    %111 = vector.broadcast %110 : vector<48x1xf32> to vector<48x48xf32>
    %112 = arith.subf %108, %111 : vector<48x48xf32>
    %113 = math.exp %112 : vector<48x48xf32>
    %cst_41 = arith.constant dense<0.000000e+00> : vector<48xf32>
    %114 = vector.multi_reduction <add>, %113, %cst_41 [1] : vector<48x48xf32> to vector<48xf32>
    %115 = vector.shape_cast %114 : vector<48xf32> to vector<48x1xf32>
    %116 = tpu.reciprocal %115 {approx = true} : vector<48x1xf32> -> vector<48x1xf32>
    %117 = vector.broadcast %116 : vector<48x1xf32> to vector<48x48xf32>
    %118 = arith.mulf %113, %117 : vector<48x48xf32>
    %119 = arith.truncf %118 : vector<48x48xf32> to vector<48x48xbf16>
    %cst_42 = arith.constant dense<0.000000e+00> : vector<48x8xf32>
    %120 = tpu.matmul %119, %106, %cst_42 {dimension_numbers = #tpu.dot_dimension_numbers<[1], [0], [0], [1], [0, 0, 1, 1], [], []>} : vector<48x48xbf16>, vector<48x8xbf16>, vector<48x8xf32> -> vector<48x8xf32>
    %121 = arith.truncf %120 : vector<48x8xf32> to vector<48x8xbf16>
    %122 = vector.extract_strided_slice %40 {offsets = [24, 0], sizes = [8, 32], strides = [1, 1]} : vector<32x32xbf16> to vector<8x32xbf16>
    %cst_43 = arith.constant dense<0.000000e+00> : vector<48x32xf32>
    %123 = tpu.matmul %121, %122, %cst_43 {dimension_numbers = #tpu.dot_dimension_numbers<[1], [0], [0], [1], [0, 0, 1, 1], [], []>} : vector<48x8xbf16>, vector<8x32xbf16>, vector<48x32xf32> -> vector<48x32xf32>
    %124 = arith.addf %103, %123 : vector<48x32xf32>
    %125 = arith.addf %3, %124 : vector<48x32xf32>
    %c0_44 = arith.constant 0 : index
    %c0_45 = arith.constant 0 : index
    %c0_46 = arith.constant 0 : index
    %126 = vector.load %arg10[%c0_44, %c0_45, %c0_46] : memref<1x1x32xf32, #tpu.memory_space<vmem>>, vector<1x1x32xf32>
    %127 = vector.shape_cast %126 : vector<1x1x32xf32> to vector<1x32xf32>
    %128 = vector.broadcast %127 : vector<1x32xf32> to vector<48x32xf32>
    %129 = arith.addf %125, %128 : vector<48x32xf32>
    %c0_47 = arith.constant 0 : index
    %c0_48 = arith.constant 0 : index
    %c0_49 = arith.constant 0 : index
    %130 = vector.load %arg11[%c0_47, %c0_48, %c0_49] : memref<1x1x32xf32, #tpu.memory_space<vmem>>, vector<1x1x32xf32>
    %131 = vector.shape_cast %130 : vector<1x1x32xf32> to vector<1x32xf32>
    %c0_50 = arith.constant 0 : index
    %c0_51 = arith.constant 0 : index
    %c0_52 = arith.constant 0 : index
    %132 = vector.load %arg12[%c0_50, %c0_51, %c0_52] : memref<1x1x32xf32, #tpu.memory_space<vmem>>, vector<1x1x32xf32>
    %133 = vector.shape_cast %132 : vector<1x1x32xf32> to vector<1x32xf32>
    %cst_53 = arith.constant dense<0.000000e+00> : vector<48xf32>
    %134 = vector.multi_reduction <add>, %129, %cst_53 [1] : vector<48x32xf32> to vector<48xf32>
    %135 = vector.shape_cast %134 : vector<48xf32> to vector<48x1xf32>
    %cst_54 = arith.constant 3.200000e+01 : f32
    %136 = vector.broadcast %cst_54 : f32 to vector<48x1xf32>
    %137 = arith.divf %135, %136 : vector<48x1xf32>
    %138 = vector.broadcast %137 : vector<48x1xf32> to vector<48x32xf32>
    %139 = arith.subf %129, %138 : vector<48x32xf32>
    %140 = arith.mulf %139, %139 : vector<48x32xf32>
    %cst_55 = arith.constant dense<0.000000e+00> : vector<48xf32>
    %141 = vector.multi_reduction <add>, %140, %cst_55 [1] : vector<48x32xf32> to vector<48xf32>
    %142 = vector.shape_cast %141 : vector<48xf32> to vector<48x1xf32>
    %cst_56 = arith.constant 3.200000e+01 : f32
    %143 = vector.broadcast %cst_56 : f32 to vector<48x1xf32>
    %144 = arith.divf %142, %143 : vector<48x1xf32>
    %145 = vector.broadcast %137 : vector<48x1xf32> to vector<48x32xf32>
    %146 = arith.subf %129, %145 : vector<48x32xf32>
    %cst_57 = arith.constant 9.99999997E-7 : f32
    %147 = vector.broadcast %cst_57 : f32 to vector<48x1xf32>
    %148 = arith.addf %144, %147 : vector<48x1xf32>
    %149 = math.rsqrt %148 : vector<48x1xf32>
    %150 = vector.broadcast %149 : vector<48x1xf32> to vector<48x32xf32>
    %151 = arith.mulf %146, %150 : vector<48x32xf32>
    %152 = vector.broadcast %131 : vector<1x32xf32> to vector<48x32xf32>
    %153 = arith.mulf %151, %152 : vector<48x32xf32>
    %154 = vector.broadcast %133 : vector<1x32xf32> to vector<48x32xf32>
    %155 = arith.addf %153, %154 : vector<48x32xf32>
    %156 = arith.truncf %155 : vector<48x32xf32> to vector<48x32xbf16>
    %c0_58 = arith.constant 0 : index
    %c0_59 = arith.constant 0 : index
    %c0_60 = arith.constant 0 : index
    %157 = vector.load %arg13[%c0_58, %c0_59, %c0_60] : memref<1x32x128xbf16, #tpu.memory_space<vmem>>, vector<1x32x128xbf16>
    %158 = vector.shape_cast %157 : vector<1x32x128xbf16> to vector<32x128xbf16>
    %cst_61 = arith.constant dense<0.000000e+00> : vector<48x128xf32>
    %159 = tpu.matmul %156, %158, %cst_61 {dimension_numbers = #tpu.dot_dimension_numbers<[1], [0], [0], [1], [0, 0, 1, 1], [], []>} : vector<48x32xbf16>, vector<32x128xbf16>, vector<48x128xf32> -> vector<48x128xf32>
    %c0_62 = arith.constant 0 : index
    %c0_63 = arith.constant 0 : index
    %c0_64 = arith.constant 0 : index
    %160 = vector.load %arg14[%c0_62, %c0_63, %c0_64] : memref<1x1x128xf32, #tpu.memory_space<vmem>>, vector<1x1x128xf32>
    %161 = vector.shape_cast %160 : vector<1x1x128xf32> to vector<1x128xf32>
    %162 = vector.broadcast %161 : vector<1x128xf32> to vector<48x128xf32>
    %163 = arith.addf %159, %162 : vector<48x128xf32>
    %cst_65 = arith.constant 5.000000e-01 : f32
    %164 = vector.broadcast %cst_65 : f32 to vector<48x128xf32>
    %165 = arith.mulf %164, %163 : vector<48x128xf32>
    %cst_66 = arith.constant 0.707106769 : f32
    %166 = vector.broadcast %cst_66 : f32 to vector<48x128xf32>
    %167 = arith.mulf %163, %166 : vector<48x128xf32>
    %168 = math.erf %167 : vector<48x128xf32>
    %cst_67 = arith.constant 1.000000e+00 : f32
    %169 = vector.broadcast %cst_67 : f32 to vector<48x128xf32>
    %170 = arith.addf %169, %168 : vector<48x128xf32>
    %171 = arith.mulf %165, %170 : vector<48x128xf32>
    %172 = arith.truncf %171 : vector<48x128xf32> to vector<48x128xbf16>
    %c0_68 = arith.constant 0 : index
    %c0_69 = arith.constant 0 : index
    %c0_70 = arith.constant 0 : index
    %173 = vector.load %arg15[%c0_68, %c0_69, %c0_70] : memref<1x128x32xbf16, #tpu.memory_space<vmem>>, vector<1x128x32xbf16>
    %174 = vector.shape_cast %173 : vector<1x128x32xbf16> to vector<128x32xbf16>
    %cst_71 = arith.constant dense<0.000000e+00> : vector<48x32xf32>
    %175 = tpu.matmul %172, %174, %cst_71 {dimension_numbers = #tpu.dot_dimension_numbers<[1], [0], [0], [1], [0, 0, 1, 1], [], []>} : vector<48x128xbf16>, vector<128x32xbf16>, vector<48x32xf32> -> vector<48x32xf32>
    %c0_72 = arith.constant 0 : index
    %c0_73 = arith.constant 0 : index
    %c0_74 = arith.constant 0 : index
    %176 = vector.load %arg16[%c0_72, %c0_73, %c0_74] : memref<1x1x32xf32, #tpu.memory_space<vmem>>, vector<1x1x32xf32>
    %177 = vector.shape_cast %176 : vector<1x1x32xf32> to vector<1x32xf32>
    %178 = vector.broadcast %177 : vector<1x32xf32> to vector<48x32xf32>
    %179 = arith.addf %175, %178 : vector<48x32xf32>
    %180 = arith.addf %129, %179 : vector<48x32xf32>
    %c0_75 = arith.constant 0 : index
    %c0_76 = arith.constant 0 : index
    %181 = vector.load %arg22[%c0_75, %c0_76] : memref<48x32xf32, #tpu.memory_space<vmem>>, vector<48x32xf32>
    tpu.vector_store %arg22[%c0_75, %c0_76], %180 {strides = array<i32>} : memref<48x32xf32, #tpu.memory_space<vmem>>, vector<48x32xf32>,
    %c1_i32 = arith.constant 1 : i32
    %182 = arith.cmpi eq, %arg0, %c1_i32 : i32
    %183 = arith.extui %182 : i1 to i32
    %c0_i32_77 = arith.constant 0 : i32
    %184 = arith.cmpi ne, %183, %c0_i32_77 : i32
    scf.if %184 {
      %c0_78 = arith.constant 0 : index
      %c0_79 = arith.constant 0 : index
      %185 = vector.load %arg17[%c0_78, %c0_79] : memref<1x32xf32, #tpu.memory_space<vmem>>, vector<1x32xf32>
      %c0_80 = arith.constant 0 : index
      %c0_81 = arith.constant 0 : index
      %186 = vector.load %arg18[%c0_80, %c0_81] : memref<1x32xf32, #tpu.memory_space<vmem>>, vector<1x32xf32>
      %cst_82 = arith.constant dense<0.000000e+00> : vector<48xf32>
      %187 = vector.multi_reduction <add>, %180, %cst_82 [1] : vector<48x32xf32> to vector<48xf32>
      %188 = vector.shape_cast %187 : vector<48xf32> to vector<48x1xf32>
      %cst_83 = arith.constant 3.200000e+01 : f32
      %189 = vector.broadcast %cst_83 : f32 to vector<48x1xf32>
      %190 = arith.divf %188, %189 : vector<48x1xf32>
      %191 = vector.broadcast %190 : vector<48x1xf32> to vector<48x32xf32>
      %192 = arith.subf %180, %191 : vector<48x32xf32>
      %193 = arith.mulf %192, %192 : vector<48x32xf32>
      %cst_84 = arith.constant dense<0.000000e+00> : vector<48xf32>
      %194 = vector.multi_reduction <add>, %193, %cst_84 [1] : vector<48x32xf32> to vector<48xf32>
      %195 = vector.shape_cast %194 : vector<48xf32> to vector<48x1xf32>
      %cst_85 = arith.constant 3.200000e+01 : f32
      %196 = vector.broadcast %cst_85 : f32 to vector<48x1xf32>
      %197 = arith.divf %195, %196 : vector<48x1xf32>
      %198 = vector.broadcast %190 : vector<48x1xf32> to vector<48x32xf32>
      %199 = arith.subf %180, %198 : vector<48x32xf32>
      %cst_86 = arith.constant 9.99999997E-7 : f32
      %200 = vector.broadcast %cst_86 : f32 to vector<48x1xf32>
      %201 = arith.addf %197, %200 : vector<48x1xf32>
      %202 = math.rsqrt %201 : vector<48x1xf32>
      %203 = vector.broadcast %202 : vector<48x1xf32> to vector<48x32xf32>
      %204 = arith.mulf %199, %203 : vector<48x32xf32>
      %205 = vector.broadcast %185 : vector<1x32xf32> to vector<48x32xf32>
      %206 = arith.mulf %204, %205 : vector<48x32xf32>
      %207 = vector.broadcast %186 : vector<1x32xf32> to vector<48x32xf32>
      %208 = arith.addf %206, %207 : vector<48x32xf32>
      %209 = arith.truncf %208 : vector<48x32xf32> to vector<48x32xbf16>
      %c0_87 = arith.constant 0 : index
      %c0_88 = arith.constant 0 : index
      %210 = vector.load %arg19[%c0_87, %c0_88] : memref<32x128xbf16, #tpu.memory_space<vmem>>, vector<32x128xbf16>
      %cst_89 = arith.constant dense<0.000000e+00> : vector<48x128xf32>
      %211 = tpu.matmul %209, %210, %cst_89 {dimension_numbers = #tpu.dot_dimension_numbers<[1], [0], [0], [1], [0, 0, 1, 1], [], []>} : vector<48x32xbf16>, vector<32x128xbf16>, vector<48x128xf32> -> vector<48x128xf32>
      %c0_90 = arith.constant 0 : index
      %c0_91 = arith.constant 0 : index
      %212 = vector.load %arg20[%c0_90, %c0_91] : memref<1x128xf32, #tpu.memory_space<vmem>>, vector<1x128xf32>
      %213 = vector.broadcast %212 : vector<1x128xf32> to vector<48x128xf32>
      %214 = arith.addf %211, %213 : vector<48x128xf32>
      %215 = vector.extract_strided_slice %214 {offsets = [0, 0], sizes = [1, 128], strides = [1, 1]} : vector<48x128xf32> to vector<1x128xf32>
      %c0_92 = arith.constant 0 : index
      %c0_93 = arith.constant 0 : index
      %216 = vector.load %arg21[%c0_92, %c0_93] : memref<2x128xf32, #tpu.memory_space<vmem>>, vector<1x128xf32>
      tpu.vector_store %arg21[%c0_92, %c0_93], %215 {strides = array<i32>} : memref<2x128xf32, #tpu.memory_space<vmem>>, vector<1x128xf32>,
      %217 = vector.extract_strided_slice %214 {offsets = [24, 0], sizes = [1, 128], strides = [1, 1]} : vector<48x128xf32> to vector<1x128xf32>
      %c1 = arith.constant 1 : index
      %c0_94 = arith.constant 0 : index
      %218 = vector.load %arg21[%c1, %c0_94] : memref<2x128xf32, #tpu.memory_space<vmem>>, vector<1x128xf32>
      tpu.vector_store %arg21[%c1, %c0_94], %217 {strides = array<i32>} : memref<2x128xf32, #tpu.memory_space<vmem>>, vector<1x128xf32>,
    } else {
    }
    return
  }
  func.func @transform_0(%arg0: i32) -> (i32, i32) {
    %c0_i32 = arith.constant 0 : i32
    %c0_i32_0 = arith.constant 0 : i32
    %c0_i32_1 = arith.constant 0 : i32
    return %c0_i32, %c0_i32_0 : i32, i32
  }
  func.func @transform_1(%arg0: i32) -> (i32, i32) {
    %c0_i32 = arith.constant 0 : i32
    %c0_i32_0 = arith.constant 0 : i32
    %c0_i32_1 = arith.constant 0 : i32
    return %c0_i32, %c0_i32_0 : i32, i32
  }
  func.func @transform_2(%arg0: i32) -> (i32, i32) {
    %c0_i32 = arith.constant 0 : i32
    %c0_i32_0 = arith.constant 0 : i32
    %c0_i32_1 = arith.constant 0 : i32
    return %c0_i32, %c0_i32_0 : i32, i32
  }
  func.func @transform_3(%arg0: i32) -> (i32, i32) {
    %c0_i32 = arith.constant 0 : i32
    %c0_i32_0 = arith.constant 0 : i32
    %c0_i32_1 = arith.constant 0 : i32
    return %c0_i32, %c0_i32_0 : i32, i32
  }
  func.func @transform_4(%arg0: i32) -> (i32, i32, i32) {
    %c0_i32 = arith.constant 0 : i32
    %c0_i32_0 = arith.constant 0 : i32
    %c0_i32_1 = arith.constant 0 : i32
    return %arg0, %c0_i32, %c0_i32_0 : i32, i32, i32
  }
  func.func @transform_5(%arg0: i32) -> (i32, i32, i32) {
    %c0_i32 = arith.constant 0 : i32
    %c0_i32_0 = arith.constant 0 : i32
    %c0_i32_1 = arith.constant 0 : i32
    return %arg0, %c0_i32, %c0_i32_0 : i32, i32, i32
  }
  func.func @transform_6(%arg0: i32) -> (i32, i32, i32) {
    %c0_i32 = arith.constant 0 : i32
    %c0_i32_0 = arith.constant 0 : i32
    %c0_i32_1 = arith.constant 0 : i32
    return %arg0, %c0_i32, %c0_i32_0 : i32, i32, i32
  }
  func.func @transform_7(%arg0: i32) -> (i32, i32, i32) {
    %c0_i32 = arith.constant 0 : i32
    %c0_i32_0 = arith.constant 0 : i32
    %c0_i32_1 = arith.constant 0 : i32
    return %arg0, %c0_i32, %c0_i32_0 : i32, i32, i32
  }
  func.func @transform_8(%arg0: i32) -> (i32, i32, i32) {
    %c0_i32 = arith.constant 0 : i32
    %c0_i32_0 = arith.constant 0 : i32
    %c0_i32_1 = arith.constant 0 : i32
    return %arg0, %c0_i32, %c0_i32_0 : i32, i32, i32
  }
  func.func @transform_9(%arg0: i32) -> (i32, i32, i32) {
    %c0_i32 = arith.constant 0 : i32
    %c0_i32_0 = arith.constant 0 : i32
    %c0_i32_1 = arith.constant 0 : i32
    return %arg0, %c0_i32, %c0_i32_0 : i32, i32, i32
  }
  func.func @transform_10(%arg0: i32) -> (i32, i32, i32) {
    %c0_i32 = arith.constant 0 : i32
    %c0_i32_0 = arith.constant 0 : i32
    %c0_i32_1 = arith.constant 0 : i32
    return %arg0, %c0_i32, %c0_i32_0 : i32, i32, i32
  }
  func.func @transform_11(%arg0: i32) -> (i32, i32, i32) {
    %c0_i32 = arith.constant 0 : i32
    %c0_i32_0 = arith.constant 0 : i32
    %c0_i32_1 = arith.constant 0 : i32
    return %arg0, %c0_i32, %c0_i32_0 : i32, i32, i32
  }
  func.func @transform_12(%arg0: i32) -> (i32, i32, i32) {
    %c0_i32 = arith.constant 0 : i32
    %c0_i32_0 = arith.constant 0 : i32
    %c0_i32_1 = arith.constant 0 : i32
    return %arg0, %c0_i32, %c0_i32_0 : i32, i32, i32
  }
  func.func @transform_13(%arg0: i32) -> (i32, i32, i32) {
    %c0_i32 = arith.constant 0 : i32
    %c0_i32_0 = arith.constant 0 : i32
    %c0_i32_1 = arith.constant 0 : i32
    return %arg0, %c0_i32, %c0_i32_0 : i32, i32, i32
  }
  func.func @transform_14(%arg0: i32) -> (i32, i32, i32) {
    %c0_i32 = arith.constant 0 : i32
    %c0_i32_0 = arith.constant 0 : i32
    %c0_i32_1 = arith.constant 0 : i32
    return %arg0, %c0_i32, %c0_i32_0 : i32, i32, i32
  }
  func.func @transform_15(%arg0: i32) -> (i32, i32, i32) {
    %c0_i32 = arith.constant 0 : i32
    %c0_i32_0 = arith.constant 0 : i32
    %c0_i32_1 = arith.constant 0 : i32
    return %arg0, %c0_i32, %c0_i32_0 : i32, i32, i32
  }
  func.func @transform_16(%arg0: i32) -> (i32, i32) {
    %c0_i32 = arith.constant 0 : i32
    %c0_i32_0 = arith.constant 0 : i32
    %c0_i32_1 = arith.constant 0 : i32
    return %c0_i32, %c0_i32_0 : i32, i32
  }
  func.func @transform_17(%arg0: i32) -> (i32, i32) {
    %c0_i32 = arith.constant 0 : i32
    %c0_i32_0 = arith.constant 0 : i32
    %c0_i32_1 = arith.constant 0 : i32
    return %c0_i32, %c0_i32_0 : i32, i32
  }
  func.func @transform_18(%arg0: i32) -> (i32, i32) {
    %c0_i32 = arith.constant 0 : i32
    %c0_i32_0 = arith.constant 0 : i32
    %c0_i32_1 = arith.constant 0 : i32
    return %c0_i32, %c0_i32_0 : i32, i32
  }
  func.func @transform_19(%arg0: i32) -> (i32, i32) {
    %c0_i32 = arith.constant 0 : i32
    %c0_i32_0 = arith.constant 0 : i32
    %c0_i32_1 = arith.constant 0 : i32
    return %c0_i32, %c0_i32_0 : i32, i32
  }
  func.func @transform_20(%arg0: i32) -> (i32, i32) {
    %c0_i32 = arith.constant 0 : i32
    %c0_i32_0 = arith.constant 0 : i32
    %c0_i32_1 = arith.constant 0 : i32
    return %c0_i32, %c0_i32_0 : i32, i32
  }
}

</mosaic_0001>

<llo_original>
// kernel: vit_forward.1
$region0: #{vit_forward.1}
  #allocation0 [shape = 'u32[]', space=smem, size = 0x4, offset = 0x4, fixed_abs, tag = 'smem constant byte address 0x4 - core index']
  #allocation1 [shape = 'u32[72,128]{1,0:T(1,128)}', space=vmem, size = 0x9000, scoped, tag = 'internal scratch']
  #allocation2 [shape = 'f32[48,32]{1,0:T(8,128)}', space=vmem, size = 0x6000, scoped, tag = 'scratch operand']
  %s0 = inlined_call_operand.vmem [shape: bf16[48,64], index: 0, kind: input, shape index: {}]
  %s1 = inlined_call_operand.vmem [shape: bf16[64,32], index: 1, kind: input, shape index: {}]
  %s2 = inlined_call_operand.vmem [shape: f32[48,32], index: 2, kind: input, shape index: {}]
  %s3 = inlined_call_operand.vmem [shape: f32[48,48], index: 3, kind: input, shape index: {}]
  %s4 = inlined_call_operand.vmem [shape: f32[2,1,32], index: 4, kind: input, shape index: {}]
  %s5 = inlined_call_operand.vmem [shape: f32[2,1,32], index: 5, kind: input, shape index: {}]
  %s6 = inlined_call_operand.vmem [shape: bf16[2,32,96], index: 6, kind: input, shape index: {}]
  %s7 = inlined_call_operand.vmem [shape: f32[2,1,96], index: 7, kind: input, shape index: {}]
  %s8 = inlined_call_operand.vmem [shape: bf16[2,32,32], index: 8, kind: input, shape index: {}]
  %s9 = inlined_call_operand.vmem [shape: f32[2,1,32], index: 9, kind: input, shape index: {}]
  %s10 = inlined_call_operand.vmem [shape: f32[2,1,32], index: 10, kind: input, shape index: {}]
  %s11 = inlined_call_operand.vmem [shape: f32[2,1,32], index: 11, kind: input, shape index: {}]
  %s12 = inlined_call_operand.vmem [shape: bf16[2,32,128], index: 12, kind: input, shape index: {}]
  %s13 = inlined_call_operand.vmem [shape: f32[2,1,128], index: 13, kind: input, shape index: {}]
  %s14 = inlined_call_operand.vmem [shape: bf16[2,128,32], index: 14, kind: input, shape index: {}]
  %s15 = inlined_call_operand.vmem [shape: f32[2,1,32], index: 15, kind: input, shape index: {}]
  %s16 = inlined_call_operand.vmem [shape: f32[1,32], index: 16, kind: input, shape index: {}]
  %s17 = inlined_call_operand.vmem [shape: f32[1,32], index: 17, kind: input, shape index: {}]
  %s18 = inlined_call_operand.vmem [shape: bf16[32,128], index: 18, kind: input, shape index: {}]
  %s19 = inlined_call_operand.vmem [shape: f32[1,128], index: 19, kind: input, shape index: {}]
  %s20 = inlined_call_operand.hbm [shape: f32[2,128], index: 20, kind: output, shape index: {}]
  %s21 = sld [smem:[#allocation0]]
  $region121: #{vit_forward.1} parent=0
    _
  %s23 = ssub.s32 1, %s21
  %s24 = scalar_select 0, %s23, %s21
  $region1: #{vit_forward.1} parent=0
    #allocation3 [shape = 'u8[1024]{0}', space=vmem, size = 0x400, scoped, tag = 'output window, operand 0, single buffered']
    #allocation4 [shape = 's32[2]{0}', space=sflag, size = 0x8, scoped, tag = 'scoped memory for vit_forward.1']
    %25 = vsyncpa [#allocation4], 0
    loop: start=0, step=1, limit=4
    $region2: #{vit_forward.1} parent=1 // loop_pre_header
      _
    $region3: #{vit_forward.1} parent=1 // loop_header
      %s27 = sphi 0, %s31
      %p28 = scmp.ge.s32.totalorder %s27, 4
      %s35 = sphi 0, %s35
      %s37 = sphi 0, %s35
      %s38 = sphi 0, %s37
      %s52 = sphi 0, %s38
      %s56 = sphi 0, %s56
      %s58 = sphi 0, %s56
      %s59 = sphi 0, %s58
      %s73 = sphi 0, %s59
      %s77 = sphi 0, %s77
      %s79 = sphi 0, %s77
      %s80 = sphi 0, %s79
      %s94 = sphi 0, %s80
      %s98 = sphi 0, %s98
      %s100 = sphi 0, %s98
      %s101 = sphi 0, %s100
      %s115 = sphi 0, %s101
      %s121 = sphi 0, %s123
      %s124 = sphi 0, %s121
      %s125 = sphi 0, %s124
      %s141 = sphi 0, %s125
      %s147 = sphi 0, %s149
      %s150 = sphi 0, %s147
      %s151 = sphi 0, %s150
      %s167 = sphi 0, %s151
      %s173 = sphi 0, %s175
      %s176 = sphi 0, %s173
      %s177 = sphi 0, %s176
      %s193 = sphi 0, %s177
      %s199 = sphi 0, %s201
      %s202 = sphi 0, %s199
      %s203 = sphi 0, %s202
      %s219 = sphi 0, %s203
      %s225 = sphi 0, %s227
      %s228 = sphi 0, %s225
      %s229 = sphi 0, %s228
      %s245 = sphi 0, %s229
      %s251 = sphi 0, %s253
      %s254 = sphi 0, %s251
      %s255 = sphi 0, %s254
      %s271 = sphi 0, %s255
      %s277 = sphi 0, %s279
      %s280 = sphi 0, %s277
      %s281 = sphi 0, %s280
      %s297 = sphi 0, %s281
      %s303 = sphi 0, %s305
      %s306 = sphi 0, %s303
      %s307 = sphi 0, %s306
      %s323 = sphi 0, %s307
      %s329 = sphi 0, %s331
      %s332 = sphi 0, %s329
      %s333 = sphi 0, %s332
      %s349 = sphi 0, %s333
      %s355 = sphi 0, %s357
      %s358 = sphi 0, %s355
      %s359 = sphi 0, %s358
      %s375 = sphi 0, %s359
      %s381 = sphi 0, %s383
      %s384 = sphi 0, %s381
      %s385 = sphi 0, %s384
      %s401 = sphi 0, %s385
      %s407 = sphi 0, %s409
      %s410 = sphi 0, %s407
      %s411 = sphi 0, %s410
      %s427 = sphi 0, %s411
      %s431 = sphi 0, %s431
      %s433 = sphi 0, %s431
      %s434 = sphi 0, %s433
      %s448 = sphi 0, %s434
      %s452 = sphi 0, %s452
      %s454 = sphi 0, %s452
      %s455 = sphi 0, %s454
      %s469 = sphi 0, %s455
      %s473 = sphi 0, %s473
      %s475 = sphi 0, %s473
      %s476 = sphi 0, %s475
      %s490 = sphi 0, %s476
      %s494 = sphi 0, %s494
      %s496 = sphi 0, %s494
      %s497 = sphi 0, %s496
      %s511 = sphi 0, %s497
      %s515 = sphi 0, %s515
      %s517 = sphi 0, %s515
      %s518 = sphi 0, %s517
      %s532 = sphi 0, %s518
    $region4: #{vit_forward.1} parent=1 // loop_header_branch
      %30 = sbr.rel (%p28) target = $region8
    $region5: #{vit_forward.1} parent=1 // loop_body
      %s32 = ssub.s32 %s27, 1
      %s33 = ssub.s32 %s27, 2
      %s34 = sadd.s32 %s27, 1
      %s36 = sadd.s32 %s35, 1
      %p39 = scmp.eq.s32.totalorder %s27, 1
      %p40 = scmp.ne.s32.totalorder %s35, %s37
      %p41 = scmp.eq.s32.totalorder %s27, 0
      %p42 = por %p40, %p41
      %p43 = scmp.ne.s32.totalorder %s35, %s37
      %p44 = scmp.eq.s32.totalorder %s32, 1
      %p45 = por %p43, %p44
      %p46 = scmp.ne.s32.totalorder %s37, %s38
      %p47 = scmp.eq.s32.totalorder %s32, 0
      %p48 = por %p46, %p47
      %p49 = scmp.ne.s32.totalorder %s37, %s38
      %p50 = scmp.eq.s32.totalorder %s33, 1
      %p51 = por %p49, %p50
      %p53 = scmp.ne.s32.totalorder %s38, %s52
      %p54 = scmp.eq.s32.totalorder %s33, 0
      %p55 = por %p53, %p54
      %s57 = sadd.s32 %s56, 1
      %p60 = scmp.eq.s32.totalorder %s27, 1
      %p61 = scmp.ne.s32.totalorder %s56, %s58
      %p62 = scmp.eq.s32.totalorder %s27, 0
      %p63 = por %p61, %p62
      %p64 = scmp.ne.s32.totalorder %s56, %s58
      %p65 = scmp.eq.s32.totalorder %s32, 1
      %p66 = por %p64, %p65
      %p67 = scmp.ne.s32.totalorder %s58, %s59
      %p68 = scmp.eq.s32.totalorder %s32, 0
      %p69 = por %p67, %p68
      %p70 = scmp.ne.s32.totalorder %s58, %s59
      %p71 = scmp.eq.s32.totalorder %s33, 1
      %p72 = por %p70, %p71
      %p74 = scmp.ne.s32.totalorder %s59, %s73
      %p75 = scmp.eq.s32.totalorder %s33, 0
      %p76 = por %p74, %p75
      %s78 = sadd.s32 %s77, 1
      %p81 = scmp.eq.s32.totalorder %s27, 1
      %p82 = scmp.ne.s32.totalorder %s77, %s79
      %p83 = scmp.eq.s32.totalorder %s27, 0
      %p84 = por %p82, %p83
      %p85 = scmp.ne.s32.totalorder %s77, %s79
      %p86 = scmp.eq.s32.totalorder %s32, 1
      %p87 = por %p85, %p86
      %p88 = scmp.ne.s32.totalorder %s79, %s80
      %p89 = scmp.eq.s32.totalorder %s32, 0
      %p90 = por %p88, %p89
      %p91 = scmp.ne.s32.totalorder %s79, %s80
      %p92 = scmp.eq.s32.totalorder %s33, 1
      %p93 = por %p91, %p92
      %p95 = scmp.ne.s32.totalorder %s80, %s94
      %p96 = scmp.eq.s32.totalorder %s33, 0
      %p97 = por %p95, %p96
      %s99 = sadd.s32 %s98, 1
      %p102 = scmp.eq.s32.totalorder %s27, 1
      %p103 = scmp.ne.s32.totalorder %s98, %s100
      %p104 = scmp.eq.s32.totalorder %s27, 0
      %p105 = por %p103, %p104
      %p106 = scmp.ne.s32.totalorder %s98, %s100
      %p107 = scmp.eq.s32.totalorder %s32, 1
      %p108 = por %p106, %p107
      %p109 = scmp.ne.s32.totalorder %s100, %s101
      %p110 = scmp.eq.s32.totalorder %s32, 0
      %p111 = por %p109, %p110
      %p112 = scmp.ne.s32.totalorder %s100, %s101
      %p113 = scmp.eq.s32.totalorder %s33, 1
      %p114 = por %p112, %p113
      %p116 = scmp.ne.s32.totalorder %s101, %s115
      %p117 = scmp.eq.s32.totalorder %s33, 0
      %p118 = por %p116, %p117
      %s119 = ssub.s32 %s27, %s34
      %p120 = scmp.eq.s32.totalorder %s119, 0
      %s122 = sadd.s32 %s121, 1
      %s123 = scalar_select %p120, %s121, %s122
      %p126 = pneg %p120
      %p127 = scmp.eq.s32.totalorder %s27, 1
      %p128 = por %p126, %p127
      %p129 = scmp.ne.s32.totalorder %s121, %s124
      %p130 = scmp.eq.s32.totalorder %s27, 0
      %p131 = por %p129, %p130
      %p132 = scmp.ne.s32.totalorder %s121, %s124
      %p133 = scmp.eq.s32.totalorder %s32, 1
      %p134 = por %p132, %p133
      %p135 = scmp.ne.s32.totalorder %s124, %s125
      %p136 = scmp.eq.s32.totalorder %s32, 0
      %p137 = por %p135, %p136
      %p138 = scmp.ne.s32.totalorder %s124, %s125
      %p139 = scmp.eq.s32.totalorder %s33, 1
      %p140 = por %p138, %p139
      %p142 = scmp.ne.s32.totalorder %s125, %s141
      %p143 = scmp.eq.s32.totalorder %s33, 0
      %p144 = por %p142, %p143
      %s145 = ssub.s32 %s27, %s34
      %p146 = scmp.eq.s32.totalorder %s145, 0
      %s148 = sadd.s32 %s147, 1
      %s149 = scalar_select %p146, %s147, %s148
      %p152 = pneg %p146
      %p153 = scmp.eq.s32.totalorder %s27, 1
      %p154 = por %p152, %p153
      %p155 = scmp.ne.s32.totalorder %s147, %s150
      %p156 = scmp.eq.s32.totalorder %s27, 0
      %p157 = por %p155, %p156
      %p158 = scmp.ne.s32.totalorder %s147, %s150
      %p159 = scmp.eq.s32.totalorder %s32, 1
      %p160 = por %p158, %p159
      %p161 = scmp.ne.s32.totalorder %s150, %s151
      %p162 = scmp.eq.s32.totalorder %s32, 0
      %p163 = por %p161, %p162
      %p164 = scmp.ne.s32.totalorder %s150, %s151
      %p165 = scmp.eq.s32.totalorder %s33, 1
      %p166 = por %p164, %p165
      %p168 = scmp.ne.s32.totalorder %s151, %s167
      %p169 = scmp.eq.s32.totalorder %s33, 0
      %p170 = por %p168, %p169
      %s171 = ssub.s32 %s27, %s34
      %p172 = scmp.eq.s32.totalorder %s171, 0
      %s174 = sadd.s32 %s173, 1
      %s175 = scalar_select %p172, %s173, %s174
      %p178 = pneg %p172
      %p179 = scmp.eq.s32.totalorder %s27, 1
      %p180 = por %p178, %p179
      %p181 = scmp.ne.s32.totalorder %s173, %s176
      %p182 = scmp.eq.s32.totalorder %s27, 0
      %p183 = por %p181, %p182
      %p184 = scmp.ne.s32.totalorder %s173, %s176
      %p185 = scmp.eq.s32.totalorder %s32, 1
      %p186 = por %p184, %p185
      %p187 = scmp.ne.s32.totalorder %s176, %s177
      %p188 = scmp.eq.s32.totalorder %s32, 0
      %p189 = por %p187, %p188
      %p190 = scmp.ne.s32.totalorder %s176, %s177
      %p191 = scmp.eq.s32.totalorder %s33, 1
      %p192 = por %p190, %p191
      %p194 = scmp.ne.s32.totalorder %s177, %s193
      %p195 = scmp.eq.s32.totalorder %s33, 0
      %p196 = por %p194, %p195
      %s197 = ssub.s32 %s27, %s34
      %p198 = scmp.eq.s32.totalorder %s197, 0
      %s200 = sadd.s32 %s199, 1
      %s201 = scalar_select %p198, %s199, %s200
      %p204 = pneg %p198
      %p205 = scmp.eq.s32.totalorder %s27, 1
      %p206 = por %p204, %p205
      %p207 = scmp.ne.s32.totalorder %s199, %s202
      %p208 = scmp.eq.s32.totalorder %s27, 0
      %p209 = por %p207, %p208
      %p210 = scmp.ne.s32.totalorder %s199, %s202
      %p211 = scmp.eq.s32.totalorder %s32, 1
      %p212 = por %p210, %p211
      %p213 = scmp.ne.s32.totalorder %s202, %s203
      %p214 = scmp.eq.s32.totalorder %s32, 0
      %p215 = por %p213, %p214
      %p216 = scmp.ne.s32.totalorder %s202, %s203
      %p217 = scmp.eq.s32.totalorder %s33, 1
      %p218 = por %p216, %p217
      %p220 = scmp.ne.s32.totalorder %s203, %s219
      %p221 = scmp.eq.s32.totalorder %s33, 0
      %p222 = por %p220, %p221
      %s223 = ssub.s32 %s27, %s34
      %p224 = scmp.eq.s32.totalorder %s223, 0
      %s226 = sadd.s32 %s225, 1
      %s227 = scalar_select %p224, %s225, %s226
      %p230 = pneg %p224
      %p231 = scmp.eq.s32.totalorder %s27, 1
      %p232 = por %p230, %p231
      %p233 = scmp.ne.s32.totalorder %s225, %s228
      %p234 = scmp.eq.s32.totalorder %s27, 0
      %p235 = por %p233, %p234
      %p236 = scmp.ne.s32.totalorder %s225, %s228
      %p237 = scmp.eq.s32.totalorder %s32, 1
      %p238 = por %p236, %p237
      %p239 = scmp.ne.s32.totalorder %s228, %s229
      %p240 = scmp.eq.s32.totalorder %s32, 0
      %p241 = por %p239, %p240
      %p242 = scmp.ne.s32.totalorder %s228, %s229
      %p243 = scmp.eq.s32.totalorder %s33, 1
      %p244 = por %p242, %p243
      %p246 = scmp.ne.s32.totalorder %s229, %s245
      %p247 = scmp.eq.s32.totalorder %s33, 0
      %p248 = por %p246, %p247
      %s249 = ssub.s32 %s27, %s34
      %p250 = scmp.eq.s32.totalorder %s249, 0
      %s252 = sadd.s32 %s251, 1
      %s253 = scalar_select %p250, %s251, %s252
      %p256 = pneg %p250
      %p257 = scmp.eq.s32.totalorder %s27, 1
      %p258 = por %p256, %p257
      %p259 = scmp.ne.s32.totalorder %s251, %s254
      %p260 = scmp.eq.s32.totalorder %s27, 0
      %p261 = por %p259, %p260
      %p262 = scmp.ne.s32.totalorder %s251, %s254
      %p263 = scmp.eq.s32.totalorder %s32, 1
      %p264 = por %p262, %p263
      %p265 = scmp.ne.s32.totalorder %s254, %s255
      %p266 = scmp.eq.s32.totalorder %s32, 0
      %p267 = por %p265, %p266
      %p268 = scmp.ne.s32.totalorder %s254, %s255
      %p269 = scmp.eq.s32.totalorder %s33, 1
      %p270 = por %p268, %p269
      %p272 = scmp.ne.s32.totalorder %s255, %s271
      %p273 = scmp.eq.s32.totalorder %s33, 0
      %p274 = por %p272, %p273
      %s275 = ssub.s32 %s27, %s34
      %p276 = scmp.eq.s32.totalorder %s275, 0
      %s278 = sadd.s32 %s277, 1
      %s279 = scalar_select %p276, %s277, %s278
      %p282 = pneg %p276
      %p283 = scmp.eq.s32.totalorder %s27, 1
      %p284 = por %p282, %p283
      %p285 = scmp.ne.s32.totalorder %s277, %s280
      %p286 = scmp.eq.s32.totalorder %s27, 0
      %p287 = por %p285, %p286
      %p288 = scmp.ne.s32.totalorder %s277, %s280
      %p289 = scmp.eq.s32.totalorder %s32, 1
      %p290 = por %p288, %p289
      %p291 = scmp.ne.s32.totalorder %s280, %s281
      %p292 = scmp.eq.s32.totalorder %s32, 0
      %p293 = por %p291, %p292
      %p294 = scmp.ne.s32.totalorder %s280, %s281
      %p295 = scmp.eq.s32.totalorder %s33, 1
      %p296 = por %p294, %p295
      %p298 = scmp.ne.s32.totalorder %s281, %s297
      %p299 = scmp.eq.s32.totalorder %s33, 0
      %p300 = por %p298, %p299
      %s301 = ssub.s32 %s27, %s34
      %p302 = scmp.eq.s32.totalorder %s301, 0
      %s304 = sadd.s32 %s303, 1
      %s305 = scalar_select %p302, %s303, %s304
      %p308 = pneg %p302
      %p309 = scmp.eq.s32.totalorder %s27, 1
      %p310 = por %p308, %p309
      %p311 = scmp.ne.s32.totalorder %s303, %s306
      %p312 = scmp.eq.s32.totalorder %s27, 0
      %p313 = por %p311, %p312
      %p314 = scmp.ne.s32.totalorder %s303, %s306
      %p315 = scmp.eq.s32.totalorder %s32, 1
      %p316 = por %p314, %p315
      %p317 = scmp.ne.s32.totalorder %s306, %s307
      %p318 = scmp.eq.s32.totalorder %s32, 0
      %p319 = por %p317, %p318
      %p320 = scmp.ne.s32.totalorder %s306, %s307
      %p321 = scmp.eq.s32.totalorder %s33, 1
      %p322 = por %p320, %p321
      %p324 = scmp.ne.s32.totalorder %s307, %s323
      %p325 = scmp.eq.s32.totalorder %s33, 0
      %p326 = por %p324, %p325
      %s327 = ssub.s32 %s27, %s34
      %p328 = scmp.eq.s32.totalorder %s327, 0
      %s330 = sadd.s32 %s329, 1
      %s331 = scalar_select %p328, %s329, %s330
      %p334 = pneg %p328
      %p335 = scmp.eq.s32.totalorder %s27, 1
      %p336 = por %p334, %p335
      %p337 = scmp.ne.s32.totalorder %s329, %s332
      %p338 = scmp.eq.s32.totalorder %s27, 0
      %p339 = por %p337, %p338
      %p340 = scmp.ne.s32.totalorder %s329, %s332
      %p341 = scmp.eq.s32.totalorder %s32, 1
      %p342 = por %p340, %p341
      %p343 = scmp.ne.s32.totalorder %s332, %s333
      %p344 = scmp.eq.s32.totalorder %s32, 0
      %p345 = por %p343, %p344
      %p346 = scmp.ne.s32.totalorder %s332, %s333
      %p347 = scmp.eq.s32.totalorder %s33, 1
      %p348 = por %p346, %p347
      %p350 = scmp.ne.s32.totalorder %s333, %s349
      %p351 = scmp.eq.s32.totalorder %s33, 0
      %p352 = por %p350, %p351
      %s353 = ssub.s32 %s27, %s34
      %p354 = scmp.eq.s32.totalorder %s353, 0
      %s356 = sadd.s32 %s355, 1
      %s357 = scalar_select %p354, %s355, %s356
      %p360 = pneg %p354
      %p361 = scmp.eq.s32.totalorder %s27, 1
      %p362 = por %p360, %p361
      %p363 = scmp.ne.s32.totalorder %s355, %s358
      %p364 = scmp.eq.s32.totalorder %s27, 0
      %p365 = por %p363, %p364
      %p366 = scmp.ne.s32.totalorder %s355, %s358
      %p367 = scmp.eq.s32.totalorder %s32, 1
      %p368 = por %p366, %p367
      %p369 = scmp.ne.s32.totalorder %s358, %s359
      %p370 = scmp.eq.s32.totalorder %s32, 0
      %p371 = por %p369, %p370
      %p372 = scmp.ne.s32.totalorder %s358, %s359
      %p373 = scmp.eq.s32.totalorder %s33, 1
      %p374 = por %p372, %p373
      %p376 = scmp.ne.s32.totalorder %s359, %s375
      %p377 = scmp.eq.s32.totalorder %s33, 0
      %p378 = por %p376, %p377
      %s379 = ssub.s32 %s27, %s34
      %p380 = scmp.eq.s32.totalorder %s379, 0
      %s382 = sadd.s32 %s381, 1
      %s383 = scalar_select %p380, %s381, %s382
      %p386 = pneg %p380
      %p387 = scmp.eq.s32.totalorder %s27, 1
      %p388 = por %p386, %p387
      %p389 = scmp.ne.s32.totalorder %s381, %s384
      %p390 = scmp.eq.s32.totalorder %s27, 0
      %p391 = por %p389, %p390
      %p392 = scmp.ne.s32.totalorder %s381, %s384
      %p393 = scmp.eq.s32.totalorder %s32, 1
      %p394 = por %p392, %p393
      %p395 = scmp.ne.s32.totalorder %s384, %s385
      %p396 = scmp.eq.s32.totalorder %s32, 0
      %p397 = por %p395, %p396
      %p398 = scmp.ne.s32.totalorder %s384, %s385
      %p399 = scmp.eq.s32.totalorder %s33, 1
      %p400 = por %p398, %p399
      %p402 = scmp.ne.s32.totalorder %s385, %s401
      %p403 = scmp.eq.s32.totalorder %s33, 0
      %p404 = por %p402, %p403
      %s405 = ssub.s32 %s27, %s34
      %p406 = scmp.eq.s32.totalorder %s405, 0
      %s408 = sadd.s32 %s407, 1
      %s409 = scalar_select %p406, %s407, %s408
      %p412 = pneg %p406
      %p413 = scmp.eq.s32.totalorder %s27, 1
      %p414 = por %p412, %p413
      %p415 = scmp.ne.s32.totalorder %s407, %s410
      %p416 = scmp.eq.s32.totalorder %s27, 0
      %p417 = por %p415, %p416
      %p418 = scmp.ne.s32.totalorder %s407, %s410
      %p419 = scmp.eq.s32.totalorder %s32, 1
      %p420 = por %p418, %p419
      %p421 = scmp.ne.s32.totalorder %s410, %s411
      %p422 = scmp.eq.s32.totalorder %s32, 0
      %p423 = por %p421, %p422
      %p424 = scmp.ne.s32.totalorder %s410, %s411
      %p425 = scmp.eq.s32.totalorder %s33, 1
      %p426 = por %p424, %p425
      %p428 = scmp.ne.s32.totalorder %s411, %s427
      %p429 = scmp.eq.s32.totalorder %s33, 0
      %p430 = por %p428, %p429
      %s432 = sadd.s32 %s431, 1
      %p435 = scmp.eq.s32.totalorder %s27, 1
      %p436 = scmp.ne.s32.totalorder %s431, %s433
      %p437 = scmp.eq.s32.totalorder %s27, 0
      %p438 = por %p436, %p437
      %p439 = scmp.ne.s32.totalorder %s431, %s433
      %p440 = scmp.eq.s32.totalorder %s32, 1
      %p441 = por %p439, %p440
      %p442 = scmp.ne.s32.totalorder %s433, %s434
      %p443 = scmp.eq.s32.totalorder %s32, 0
      %p444 = por %p442, %p443
      %p445 = scmp.ne.s32.totalorder %s433, %s434
      %p446 = scmp.eq.s32.totalorder %s33, 1
      %p447 = por %p445, %p446
      %p449 = scmp.ne.s32.totalorder %s434, %s448
      %p450 = scmp.eq.s32.totalorder %s33, 0
      %p451 = por %p449, %p450
      %s453 = sadd.s32 %s452, 1
      %p456 = scmp.eq.s32.totalorder %s27, 1
      %p457 = scmp.ne.s32.totalorder %s452, %s454
      %p458 = scmp.eq.s32.totalorder %s27, 0
      %p459 = por %p457, %p458
      %p460 = scmp.ne.s32.totalorder %s452, %s454
      %p461 = scmp.eq.s32.totalorder %s32, 1
      %p462 = por %p460, %p461
      %p463 = scmp.ne.s32.totalorder %s454, %s455
      %p464 = scmp.eq.s32.totalorder %s32, 0
      %p465 = por %p463, %p464
      %p466 = scmp.ne.s32.totalorder %s454, %s455
      %p467 = scmp.eq.s32.totalorder %s33, 1
      %p468 = por %p466, %p467
      %p470 = scmp.ne.s32.totalorder %s455, %s469
      %p471 = scmp.eq.s32.totalorder %s33, 0
      %p472 = por %p470, %p471
      %s474 = sadd.s32 %s473, 1
      %p477 = scmp.eq.s32.totalorder %s27, 1
      %p478 = scmp.ne.s32.totalorder %s473, %s475
      %p479 = scmp.eq.s32.totalorder %s27, 0
      %p480 = por %p478, %p479
      %p481 = scmp.ne.s32.totalorder %s473, %s475
      %p482 = scmp.eq.s32.totalorder %s32, 1
      %p483 = por %p481, %p482
      %p484 = scmp.ne.s32.totalorder %s475, %s476
      %p485 = scmp.eq.s32.totalorder %s32, 0
      %p486 = por %p484, %p485
      %p487 = scmp.ne.s32.totalorder %s475, %s476
      %p488 = scmp.eq.s32.totalorder %s33, 1
      %p489 = por %p487, %p488
      %p491 = scmp.ne.s32.totalorder %s476, %s490
      %p492 = scmp.eq.s32.totalorder %s33, 0
      %p493 = por %p491, %p492
      %s495 = sadd.s32 %s494, 1
      %p498 = scmp.eq.s32.totalorder %s27, 1
      %p499 = scmp.ne.s32.totalorder %s494, %s496
      %p500 = scmp.eq.s32.totalorder %s27, 0
      %p501 = por %p499, %p500
      %p502 = scmp.ne.s32.totalorder %s494, %s496
      %p503 = scmp.eq.s32.totalorder %s32, 1
      %p504 = por %p502, %p503
      %p505 = scmp.ne.s32.totalorder %s496, %s497
      %p506 = scmp.eq.s32.totalorder %s32, 0
      %p507 = por %p505, %p506
      %p508 = scmp.ne.s32.totalorder %s496, %s497
      %p509 = scmp.eq.s32.totalorder %s33, 1
      %p510 = por %p508, %p509
      %p512 = scmp.ne.s32.totalorder %s497, %s511
      %p513 = scmp.eq.s32.totalorder %s33, 0
      %p514 = por %p512, %p513
      %s516 = sadd.s32 %s515, 1
      %p519 = scmp.eq.s32.totalorder %s27, 1
      %p520 = scmp.ne.s32.totalorder %s515, %s517
      %p521 = scmp.eq.s32.totalorder %s27, 0
      %p522 = por %p520, %p521
      %p523 = scmp.ne.s32.totalorder %s515, %s517
      %p524 = scmp.eq.s32.totalorder %s32, 1
      %p525 = por %p523, %p524
      %p526 = scmp.ne.s32.totalorder %s517, %s518
      %p527 = scmp.eq.s32.totalorder %s32, 0
      %p528 = por %p526, %p527
      %p529 = scmp.ne.s32.totalorder %s517, %s518
      %p530 = scmp.eq.s32.totalorder %s33, 1
      %p531 = por %p529, %p530
      %p533 = scmp.ne.s32.totalorder %s518, %s532
      %p534 = scmp.eq.s32.totalorder %s33, 0
      %p535 = por %p533, %p534
      %p536 = scmp.le.s32.totalorder 1, %s27
      %p537 = scmp.lt.s32.totalorder %s27, 3
      %p538 = pnand %p536, %p537
      %p539 = pneg %p538
      // Predicated region
      $region9: #{vit_forward.1} parent=5 // pred_check
        _
      $region10: #{vit_forward.1} parent=5 // pred_check_branch
        %541 = sbr.rel (%p538) target = $region12
      $region11: #{vit_forward.1} parent=5 // pred_region
        %s542 = ssub.s32 %s27, 1
        // Predicated region
        $region13: #{vit_forward.1} parent=11 // pred_check
          %p543 = pneg %p48
        $region14: #{vit_forward.1} parent=11 // pred_check_branch
          %545 = sbr.rel (%p543) target = $region16
        $region15: #{vit_forward.1} parent=11 // pred_region
          _
        $region16: #{vit_forward.1} parent=11 // pred_fallthru
          _
        // Predicated region
        $region17: #{vit_forward.1} parent=11 // pred_check
          %p546 = pneg %p69
        $region18: #{vit_forward.1} parent=11 // pred_check_branch
          %548 = sbr.rel (%p546) target = $region20
        $region19: #{vit_forward.1} parent=11 // pred_region
          _
        $region20: #{vit_forward.1} parent=11 // pred_fallthru
          _
        // Predicated region
        $region21: #{vit_forward.1} parent=11 // pred_check
          %p549 = pneg %p90
        $region22: #{vit_forward.1} parent=11 // pred_check_branch
          %551 = sbr.rel (%p549) target = $region24
        $region23: #{vit_forward.1} parent=11 // pred_region
          _
        $region24: #{vit_forward.1} parent=11 // pred_fallthru
          _
        // Predicated region
        $region25: #{vit_forward.1} parent=11 // pred_check
          %p552 = pneg %p111
        $region26: #{vit_forward.1} parent=11 // pred_check_branch
          %554 = sbr.rel (%p552) target = $region28
        $region27: #{vit_forward.1} parent=11 // pred_region
          _
        $region28: #{vit_forward.1} parent=11 // pred_fallthru
          _
        // Predicated region
        $region29: #{vit_forward.1} parent=11 // pred_check
          %p555 = pneg %p444
        $region30: #{vit_forward.1} parent=11 // pred_check_branch
          %557 = sbr.rel (%p555) target = $region32
        $region31: #{vit_forward.1} parent=11 // pred_region
          _
        $region32: #{vit_forward.1} parent=11 // pred_fallthru
          _
        // Predicated region
        $region33: #{vit_forward.1} parent=11 // pred_check
          %p558 = pneg %p465
        $region34: #{vit_forward.1} parent=11 // pred_check_branch
          %560 = sbr.rel (%p558) target = $region36
        $region35: #{vit_forward.1} parent=11 // pred_region
          _
        $region36: #{vit_forward.1} parent=11 // pred_fallthru
          _
        // Predicated region
        $region37: #{vit_forward.1} parent=11 // pred_check
          %p561 = pneg %p486
        $region38: #{vit_forward.1} parent=11 // pred_check_branch
          %563 = sbr.rel (%p561) target = $region40
        $region39: #{vit_forward.1} parent=11 // pred_region
          _
        $region40: #{vit_forward.1} parent=11 // pred_fallthru
          _
        // Predicated region
        $region41: #{vit_forward.1} parent=11 // pred_check
          %p564 = pneg %p507
        $region42: #{vit_forward.1} parent=11 // pred_check_branch
          %566 = sbr.rel (%p564) target = $region44
        $region43: #{vit_forward.1} parent=11 // pred_region
          _
        $region44: #{vit_forward.1} parent=11 // pred_fallthru
          _
      $region12: #{vit_forward.1} parent=5 // pred_fallthru
        _
      %p567 = scmp.lt.s32.totalorder %s27, 2
      // Predicated region
      $region45: #{vit_forward.1} parent=5 // pred_check
        %p568 = pneg %p567
      $region46: #{vit_forward.1} parent=5 // pred_check_branch
        %570 = sbr.rel (%p568) target = $region48
      $region47: #{vit_forward.1} parent=5 // pred_region
        // Predicated region
        $region49: #{vit_forward.1} parent=47 // pred_check
          %p571 = pneg %p131
        $region50: #{vit_forward.1} parent=47 // pred_check_branch
          %573 = sbr.rel (%p571) target = $region52
        $region51: #{vit_forward.1} parent=47 // pred_region
          %p574 = scmp.lt.s32.totalorder %s27, 1
          %s575 = scalar_select %p574, %s27, 1
          %s576 = scalar_lea.vmem %s4, %s575
        $region52: #{vit_forward.1} parent=47 // pred_fallthru
          _
        // Predicated region
        $region53: #{vit_forward.1} parent=47 // pred_check
          %p577 = pneg %p157
        $region54: #{vit_forward.1} parent=47 // pred_check_branch
          %579 = sbr.rel (%p577) target = $region56
        $region55: #{vit_forward.1} parent=47 // pred_region
          %p580 = scmp.lt.s32.totalorder %s27, 1
          %s581 = scalar_select %p580, %s27, 1
          %s582 = scalar_lea.vmem %s5, %s581
        $region56: #{vit_forward.1} parent=47 // pred_fallthru
          _
        // Predicated region
        $region57: #{vit_forward.1} parent=47 // pred_check
          %p583 = pneg %p183
        $region58: #{vit_forward.1} parent=47 // pred_check_branch
          %585 = sbr.rel (%p583) target = $region60
        $region59: #{vit_forward.1} parent=47 // pred_region
          %p586 = scmp.lt.s32.totalorder %s27, 1
          %s587 = scalar_select %p586, %s27, 1
          %s588 = smul.addr %s587, 4
          %s589 = smul.addr %s588, 4
          %s590 = scalar_lea.vmem %s6, %s589
        $region60: #{vit_forward.1} parent=47 // pred_fallthru
          _
        // Predicated region
        $region61: #{vit_forward.1} parent=47 // pred_check
          %p591 = pneg %p209
        $region62: #{vit_forward.1} parent=47 // pred_check_branch
          %593 = sbr.rel (%p591) target = $region64
        $region63: #{vit_forward.1} parent=47 // pred_region
          %p594 = scmp.lt.s32.totalorder %s27, 1
          %s595 = scalar_select %p594, %s27, 1
          %s596 = scalar_lea.vmem %s7, %s595
        $region64: #{vit_forward.1} parent=47 // pred_fallthru
          _
        // Predicated region
        $region65: #{vit_forward.1} parent=47 // pred_check
          %p597 = pneg %p235
        $region66: #{vit_forward.1} parent=47 // pred_check_branch
          %599 = sbr.rel (%p597) target = $region68
        $region67: #{vit_forward.1} parent=47 // pred_region
          %p600 = scmp.lt.s32.totalorder %s27, 1
          %s601 = scalar_select %p600, %s27, 1
          %s602 = smul.addr %s601, 4
          %s603 = smul.addr %s602, 4
          %s604 = scalar_lea.vmem %s8, %s603
        $region68: #{vit_forward.1} parent=47 // pred_fallthru
          _
        // Predicated region
        $region69: #{vit_forward.1} parent=47 // pred_check
          %p605 = pneg %p261
        $region70: #{vit_forward.1} parent=47 // pred_check_branch
          %607 = sbr.rel (%p605) target = $region72
        $region71: #{vit_forward.1} parent=47 // pred_region
          %p608 = scmp.lt.s32.totalorder %s27, 1
          %s609 = scalar_select %p608, %s27, 1
          %s610 = scalar_lea.vmem %s9, %s609
        $region72: #{vit_forward.1} parent=47 // pred_fallthru
          _
        // Predicated region
        $region73: #{vit_forward.1} parent=47 // pred_check
          %p611 = pneg %p287
        $region74: #{vit_forward.1} parent=47 // pred_check_branch
          %613 = sbr.rel (%p611) target = $region76
        $region75: #{vit_forward.1} parent=47 // pred_region
          %p614 = scmp.lt.s32.totalorder %s27, 1
          %s615 = scalar_select %p614, %s27, 1
          %s616 = scalar_lea.vmem %s10, %s615
        $region76: #{vit_forward.1} parent=47 // pred_fallthru
          _
        // Predicated region
        $region77: #{vit_forward.1} parent=47 // pred_check
          %p617 = pneg %p313
        $region78: #{vit_forward.1} parent=47 // pred_check_branch
          %619 = sbr.rel (%p617) target = $region80
        $region79: #{vit_forward.1} parent=47 // pred_region
          %p620 = scmp.lt.s32.totalorder %s27, 1
          %s621 = scalar_select %p620, %s27, 1
          %s622 = scalar_lea.vmem %s11, %s621
        $region80: #{vit_forward.1} parent=47 // pred_fallthru
          _
        // Predicated region
        $region81: #{vit_forward.1} parent=47 // pred_check
          %p623 = pneg %p339
        $region82: #{vit_forward.1} parent=47 // pred_check_branch
          %625 = sbr.rel (%p623) target = $region84
        $region83: #{vit_forward.1} parent=47 // pred_region
          %p626 = scmp.lt.s32.totalorder %s27, 1
          %s627 = scalar_select %p626, %s27, 1
          %s628 = smul.addr %s627, 4
          %s629 = smul.addr %s628, 4
          %s630 = scalar_lea.vmem %s12, %s629
        $region84: #{vit_forward.1} parent=47 // pred_fallthru
          _
        // Predicated region
        $region85: #{vit_forward.1} parent=47 // pred_check
          %p631 = pneg %p365
        $region86: #{vit_forward.1} parent=47 // pred_check_branch
          %633 = sbr.rel (%p631) target = $region88
        $region87: #{vit_forward.1} parent=47 // pred_region
          %p634 = scmp.lt.s32.totalorder %s27, 1
          %s635 = scalar_select %p634, %s27, 1
          %s636 = scalar_lea.vmem %s13, %s635
        $region88: #{vit_forward.1} parent=47 // pred_fallthru
          _
        // Predicated region
        $region89: #{vit_forward.1} parent=47 // pred_check
          %p637 = pneg %p391
        $region90: #{vit_forward.1} parent=47 // pred_check_branch
          %639 = sbr.rel (%p637) target = $region92
        $region91: #{vit_forward.1} parent=47 // pred_region
          %p640 = scmp.lt.s32.totalorder %s27, 1
          %s641 = scalar_select %p640, %s27, 1
          %s642 = smul.addr %s641, 16
          %s643 = smul.addr %s642, 4
          %s644 = scalar_lea.vmem %s14, %s643
        $region92: #{vit_forward.1} parent=47 // pred_fallthru
          _
        // Predicated region
        $region93: #{vit_forward.1} parent=47 // pred_check
          %p645 = pneg %p417
        $region94: #{vit_forward.1} parent=47 // pred_check_branch
          %647 = sbr.rel (%p645) target = $region96
        $region95: #{vit_forward.1} parent=47 // pred_region
          %p648 = scmp.lt.s32.totalorder %s27, 1
          %s649 = scalar_select %p648, %s27, 1
          %s650 = scalar_lea.vmem %s15, %s649
        $region96: #{vit_forward.1} parent=47 // pred_fallthru
          _
      $region48: #{vit_forward.1} parent=5 // pred_fallthru
        _
      %p651 = scmp.le.s32.totalorder 1, %s27
      %p652 = scmp.lt.s32.totalorder %s27, 3
      %p653 = pnand %p651, %p652
      %p654 = pneg %p653
      // Predicated region
      $region97: #{vit_forward.1} parent=5 // pred_check
        _
      $region98: #{vit_forward.1} parent=5 // pred_check_branch
        %656 = sbr.rel (%p653) target = $region100
      $region99: #{vit_forward.1} parent=5 // pred_region
        %s657 = ssub.s32 %s27, 1
        %p658 = pneg %p48
        %p659 = pneg %p45
        %p660 = pneg %p69
        %p661 = pneg %p66
        %p662 = pneg %p90
        %p663 = pneg %p87
        %p664 = pneg %p111
        %p665 = pneg %p108
        %p666 = scmp.lt.s32.totalorder %s32, 1
        %s667 = scalar_select %p666, %s32, 1
        %s668 = scalar_lea.vmem %s4, %s667
        %p669 = pneg %p137
        %p670 = pneg %p134
        %p671 = scmp.lt.s32.totalorder %s32, 1
        %s672 = scalar_select %p671, %s32, 1
        %s673 = scalar_lea.vmem %s5, %s672
        %p674 = pneg %p163
        %p675 = pneg %p160
        %p676 = scmp.lt.s32.totalorder %s32, 1
        %s677 = scalar_select %p676, %s32, 1
        %s678 = smul.addr %s677, 4
        %s679 = smul.addr %s678, 4
        %s680 = scalar_lea.vmem %s6, %s679
        %p681 = pneg %p189
        %p682 = pneg %p186
        %p683 = scmp.lt.s32.totalorder %s32, 1
        %s684 = scalar_select %p683, %s32, 1
        %s685 = scalar_lea.vmem %s7, %s684
        %p686 = pneg %p215
        %p687 = pneg %p212
        %p688 = scmp.lt.s32.totalorder %s32, 1
        %s689 = scalar_select %p688, %s32, 1
        %s690 = smul.addr %s689, 4
        %s691 = smul.addr %s690, 4
        %s692 = scalar_lea.vmem %s8, %s691
        %p693 = pneg %p241
        %p694 = pneg %p238
        %p695 = scmp.lt.s32.totalorder %s32, 1
        %s696 = scalar_select %p695, %s32, 1
        %s697 = scalar_lea.vmem %s9, %s696
        %p698 = pneg %p267
        %p699 = pneg %p264
        %p700 = scmp.lt.s32.totalorder %s32, 1
        %s701 = scalar_select %p700, %s32, 1
        %s702 = scalar_lea.vmem %s10, %s701
        %p703 = pneg %p293
        %p704 = pneg %p290
        %p705 = scmp.lt.s32.totalorder %s32, 1
        %s706 = scalar_select %p705, %s32, 1
        %s707 = scalar_lea.vmem %s11, %s706
        %p708 = pneg %p319
        %p709 = pneg %p316
        %p710 = scmp.lt.s32.totalorder %s32, 1
        %s711 = scalar_select %p710, %s32, 1
        %s712 = smul.addr %s711, 4
        %s713 = smul.addr %s712, 4
        %s714 = scalar_lea.vmem %s12, %s713
        %p715 = pneg %p345
        %p716 = pneg %p342
        %p717 = scmp.lt.s32.totalorder %s32, 1
        %s718 = scalar_select %p717, %s32, 1
        %s719 = scalar_lea.vmem %s13, %s718
        %p720 = pneg %p371
        %p721 = pneg %p368
        %p722 = scmp.lt.s32.totalorder %s32, 1
        %s723 = scalar_select %p722, %s32, 1
        %s724 = smul.addr %s723, 16
        %s725 = smul.addr %s724, 4
        %s726 = scalar_lea.vmem %s14, %s725
        %p727 = pneg %p397
        %p728 = pneg %p394
        %p729 = scmp.lt.s32.totalorder %s32, 1
        %s730 = scalar_select %p729, %s32, 1
        %s731 = scalar_lea.vmem %s15, %s730
        %p732 = pneg %p423
        %p733 = pneg %p420
        %p734 = pneg %p444
        %p735 = pneg %p441
        %p736 = pneg %p465
        %p737 = pneg %p462
        %p738 = pneg %p486
        %p739 = pneg %p483
        %p740 = pneg %p507
        %p741 = pneg %p504
        %p742 = pneg %p528
        %p743 = pneg %p525
        %p744 = scmp.lt.s32.totalorder %s32, 1
        %s745 = scalar_select %p744, %s32, 1
        %s746 = scalar_lea.vmem %s4, %s745
        %p747 = scmp.lt.s32.totalorder %s32, 1
        %s748 = scalar_select %p747, %s32, 1
        %s749 = scalar_lea.vmem %s5, %s748
        %p750 = scmp.lt.s32.totalorder %s32, 1
        %s751 = scalar_select %p750, %s32, 1
        %s752 = smul.addr %s751, 4
        %s753 = smul.addr %s752, 4
        %s754 = scalar_lea.vmem %s6, %s753
        %p755 = scmp.lt.s32.totalorder %s32, 1
        %s756 = scalar_select %p755, %s32, 1
        %s757 = scalar_lea.vmem %s7, %s756
        %p758 = scmp.lt.s32.totalorder %s32, 1
        %s759 = scalar_select %p758, %s32, 1
        %s760 = smul.addr %s759, 4
        %s761 = smul.addr %s760, 4
        %s762 = scalar_lea.vmem %s8, %s761
        %p763 = scmp.lt.s32.totalorder %s32, 1
        %s764 = scalar_select %p763, %s32, 1
        %s765 = scalar_lea.vmem %s9, %s764
        %p766 = scmp.lt.s32.totalorder %s32, 1
        %s767 = scalar_select %p766, %s32, 1
        %s768 = scalar_lea.vmem %s10, %s767
        %p769 = scmp.lt.s32.totalorder %s32, 1
        %s770 = scalar_select %p769, %s32, 1
        %s771 = scalar_lea.vmem %s11, %s770
        %p772 = scmp.lt.s32.totalorder %s32, 1
        %s773 = scalar_select %p772, %s32, 1
        %s774 = smul.addr %s773, 4
        %s775 = smul.addr %s774, 4
        %s776 = scalar_lea.vmem %s12, %s775
        %p777 = scmp.lt.s32.totalorder %s32, 1
        %s778 = scalar_select %p777, %s32, 1
        %s779 = scalar_lea.vmem %s13, %s778
        %p780 = scmp.lt.s32.totalorder %s32, 1
        %s781 = scalar_select %p780, %s32, 1
        %s782 = smul.addr %s781, 16
        %s783 = smul.addr %s782, 4
        %s784 = scalar_lea.vmem %s14, %s783
        %p785 = scmp.lt.s32.totalorder %s32, 1
        %s786 = scalar_select %p785, %s32, 1
        %s787 = scalar_lea.vmem %s15, %s786
        %p789 = scmp.eq.s32.totalorder %s32, 0
        // Predicated region
        $region101: #{vit_forward.1} parent=99 // pred_check
          %p790 = pneg %p789
        $region102: #{vit_forward.1} parent=99 // pred_check_branch
          %792 = sbr.rel (%p790) target = $region104
        $region103: #{vit_forward.1} parent=99 // pred_region
          %v793 = vld [vmem:[%s0] sm:$0xf]
          %v794 = vld [vmem:[%s0 + $0x4] sm:$0xf]
          %v795 = vld [vmem:[%s0 + $0x8] sm:$0xf]
          %v796 = vld [vmem:[%s0 + $0xc] sm:$0xf]
          %v797 = vld [vmem:[%s0 + $0x10] sm:$0xf]
          %v798 = vld [vmem:[%s0 + $0x14] sm:$0xf]
          %v799 = vld [vmem:[%s1] sm:$0xf]
          %v800 = vld [vmem:[%s1 + $0x4] sm:$0xf]
          %v801 = vld [vmem:[%s1 + $0x8] sm:$0xf]
          %v802 = vld [vmem:[%s1 + $0xc] sm:$0xf]
          %v803 = vld [vmem:[%s1 + $0x10] sm:$0xf]
          %v804 = vld [vmem:[%s1 + $0x14] sm:$0xf]
          %v805 = vld [vmem:[%s1 + $0x18] sm:$0xf]
          %v806 = vld [vmem:[%s1 + $0x1c] sm:$0xf]
          %v807 = vld [vmem:[%s2] sm:$0xff]
          %v808 = vld [vmem:[%s2 + $0x8] sm:$0xff]
          %v809 = vld [vmem:[%s2 + $0x10] sm:$0xff]
          %v810 = vld [vmem:[%s2 + $0x18] sm:$0xff]
          %v811 = vld [vmem:[%s2 + $0x20] sm:$0xff]
          %v812 = vld [vmem:[%s2 + $0x28] sm:$0xff]
          %v819 = vunpack.c.l.b16 %v793
          %v820 = vunpack.c.l.b16 %v794
          %v821 = vunpack.c.l.b16 %v795
          %v822 = vunpack.c.l.b16 %v796
          %v823 = vunpack.c.l.b16 %v797
          %v824 = vunpack.c.l.b16 %v798
          %v825 = vpack.c.b16 %v820, %v819
          %v826 = vpack.c.b16 %v822, %v821
          %v827 = vpack.c.b16 %v824, %v823
          %v836 = vunpack.c.l.b16 %v799
          %v837 = vunpack.c.l.b16 %v800
          %v838 = vunpack.c.l.b16 %v801
          %v839 = vunpack.c.l.b16 %v802
          %v840 = vunpack.c.l.b16 %v803
          %v841 = vunpack.c.l.b16 %v804
          %v842 = vunpack.c.l.b16 %v805
          %v843 = vunpack.c.l.b16 %v806
          %v844 = vpack.c.b16 %v837, %v836
          %v845 = vpack.c.b16 %v839, %v838
          %v846 = vpack.c.b16 %v841, %v840
          %v847 = vpack.c.b16 %v843, %v842
          %vm852 = vcmask 523264
          %v854 = vsel %vm852, %v825, 0
          %v857 = vsel %vm852, %v826, 0
          %v860 = vsel %vm852, %v827, 0
          %862 = vmatpush.bf16.msra.mxu0 0
          %863 = vmatpush.bf16.msra.mxu0 0
          %864 = vmatpush.bf16.msra.mxu0 0
          %865 = vmatpush.bf16.msra.mxu0 0
          %866 = vmatpush.bf16.msra.mxu0 %v847
          %867 = vmatpush.bf16.msra.mxu0 %v846
          %868 = vmatpush.bf16.msra.mxu0 %v845
          %869 = vmatpush.bf16.msra.mxu0 %v844
          %870 = vmatmul.bf16.gmra.mxu0 %v854
          %v871 = vpop.f32.mrf.mxu0
          %v872 = vadd.f32 %v807, %v871
          %v873 = vpop.f32.mrf.mxu0
          %v874 = vadd.f32 %v808, %v873
          %875 = vmatmul.bf16.gmra.mxu0 %v857
          %v876 = vpop.f32.mrf.mxu0
          %v877 = vadd.f32 %v809, %v876
          %v878 = vpop.f32.mrf.mxu0
          %v879 = vadd.f32 %v810, %v878
          %880 = vmatmul.bf16.gmra.mxu0 %v860
          %v881 = vpop.f32.mrf.mxu0
          %v882 = vadd.f32 %v811, %v881
          %v883 = vpop.f32.mrf.mxu0
          %v884 = vadd.f32 %v812, %v883
          %885 = vdwg.mxu0
          %vm886 = vcmask 261120
          %887 = vst.msk [vmem:[#allocation2] sm:$0xff] %vm886, %v872
          %888 = vst.msk [vmem:[#allocation2 + $0x8] sm:$0xff] %vm886, %v874
          %889 = vst.msk [vmem:[#allocation2 + $0x10] sm:$0xff] %vm886, %v877
          %890 = vst.msk [vmem:[#allocation2 + $0x18] sm:$0xff] %vm886, %v879
          %891 = vst.msk [vmem:[#allocation2 + $0x20] sm:$0xff] %vm886, %v882
          %892 = vst.msk [vmem:[#allocation2 + $0x28] sm:$0xff] %vm886, %v884
        $region104: #{vit_forward.1} parent=99 // pred_fallthru
          _
        %v893 = vld [vmem:[#allocation2] sm:$0xff]
        %v894 = vld [vmem:[#allocation2 + $0x8] sm:$0xff]
        %v895 = vld [vmem:[#allocation2 + $0x10] sm:$0xff]
        %v896 = vld [vmem:[#allocation2 + $0x18] sm:$0xff]
        %v897 = vld [vmem:[#allocation2 + $0x20] sm:$0xff]
        %v898 = vld [vmem:[#allocation2 + $0x28] sm:$0xff]
        %v899 = vld [vmem:[%s746] sm:$0x1]
        %v900 = vld [vmem:[%s749] sm:$0x1]
        %vm901 = vcmask 261120
        %v902 = vsel %vm901, %v893, 0.0
        %903 = vadd.xlane.f32.xlu0 %v902
        %v904 = vpop.xlane.xlu0 %903
        %v905 = vsel %vm901, %v894, 0.0
        %906 = vadd.xlane.f32.xlu0 %v905
        %v907 = vpop.xlane.xlu0 %906
        %v908 = vsel %vm901, %v895, 0.0
        %909 = vadd.xlane.f32.xlu0 %v908
        %v910 = vpop.xlane.xlu0 %909
        %v911 = vsel %vm901, %v896, 0.0
        %912 = vadd.xlane.f32.xlu0 %v911
        %v913 = vpop.xlane.xlu0 %912
        %v914 = vsel %vm901, %v897, 0.0
        %915 = vadd.xlane.f32.xlu0 %v914
        %v916 = vpop.xlane.xlu0 %915
        %v917 = vsel %vm901, %v898, 0.0
        %918 = vadd.xlane.f32.xlu0 %v917
        %v919 = vpop.xlane.xlu0 %918
        %v920 = vrcp.pop 32.0
        %v921 = vmul.f32 32.0, %v920
        %v922 = vsub.f32 1.0, %v921
        %v923 = vmul.f32 %v920, %v922
        %v924 = vadd.f32 %v920, %v923
        %vm925 = vweird.f32 %v920
        %v926 = vsel %vm925, %v920, %v924
        %v927 = vmul.f32 %v904, %v926
        %v928 = vmul.f32 %v907, %v926
        %v929 = vmul.f32 %v910, %v926
        %v930 = vmul.f32 %v913, %v926
        %v931 = vmul.f32 %v916, %v926
        %v932 = vmul.f32 %v919, %v926
        %v933 = vsub.f32 %v893, %v927
        %v934 = vsub.f32 %v894, %v928
        %v935 = vsub.f32 %v895, %v929
        %v936 = vsub.f32 %v896, %v930
        %v937 = vsub.f32 %v897, %v931
        %v938 = vsub.f32 %v898, %v932
        %v939 = vmul.f32 %v933, %v933
        %v940 = vmul.f32 %v934, %v934
        %v941 = vmul.f32 %v935, %v935
        %v942 = vmul.f32 %v936, %v936
        %v943 = vmul.f32 %v937, %v937
        %v944 = vmul.f32 %v938, %v938
        %v945 = vsel %vm901, %v939, 0.0
        %946 = vadd.xlane.f32.xlu0 %v945
        %v947 = vpop.xlane.xlu0 %946
        %v948 = vsel %vm901, %v940, 0.0
        %949 = vadd.xlane.f32.xlu0 %v948
        %v950 = vpop.xlane.xlu0 %949
        %v951 = vsel %vm901, %v941, 0.0
        %952 = vadd.xlane.f32.xlu0 %v951
        %v953 = vpop.xlane.xlu0 %952
        %v954 = vsel %vm901, %v942, 0.0
        %955 = vadd.xlane.f32.xlu0 %v954
        %v956 = vpop.xlane.xlu0 %955
        %v957 = vsel %vm901, %v943, 0.0
        %958 = vadd.xlane.f32.xlu0 %v957
        %v959 = vpop.xlane.xlu0 %958
        %v960 = vsel %vm901, %v944, 0.0
        %961 = vadd.xlane.f32.xlu0 %v960
        %v962 = vpop.xlane.xlu0 %961
        %v963 = vmul.f32 %v947, %v926
        %v964 = vmul.f32 %v950, %v926
        %v965 = vmul.f32 %v953, %v926
        %v966 = vmul.f32 %v956, %v926
        %v967 = vmul.f32 %v959, %v926
        %v968 = vmul.f32 %v962, %v926
        %v969 = vadd.f32 %v963, 1e-06
        %v970 = vadd.f32 %v964, 1e-06
        %v971 = vadd.f32 %v965, 1e-06
        %v972 = vadd.f32 %v966, 1e-06
        %v973 = vadd.f32 %v967, 1e-06
        %v974 = vadd.f32 %v968, 1e-06
        %v975 = vrsqrt.pop %v969
        %v976 = vmul.f32 %v975, %v969
        %v977 = vmul.f32 %v976, %v975
        %v978 = vmul.f32 0.5, %v977
        %v979 = vsub.f32 1.5, %v978
        %v980 = vmul.f32 %v975, %v979
        %vm981 = vweird.f32 %v969
        %vm982 = vweird.f32 %v975
        %vm983 = vmor %vm981, %vm982
        %v984 = vsel %vm983, %v975, %v980
        %v985 = vrsqrt.pop %v970
        %v986 = vmul.f32 %v985, %v970
        %v987 = vmul.f32 %v986, %v985
        %v988 = vmul.f32 0.5, %v987
        %v989 = vsub.f32 1.5, %v988
        %v990 = vmul.f32 %v985, %v989
        %vm991 = vweird.f32 %v970
        %vm992 = vweird.f32 %v985
        %vm993 = vmor %vm991, %vm992
        %v994 = vsel %vm993, %v985, %v990
        %v995 = vrsqrt.pop %v971
        %v996 = vmul.f32 %v995, %v971
        %v997 = vmul.f32 %v996, %v995
        %v998 = vmul.f32 0.5, %v997
        %v999 = vsub.f32 1.5, %v998
        %v1000 = vmul.f32 %v995, %v999
        %vm1001 = vweird.f32 %v971
        %vm1002 = vweird.f32 %v995
        %vm1003 = vmor %vm1001, %vm1002
        %v1004 = vsel %vm1003, %v995, %v1000
        %v1005 = vrsqrt.pop %v972
        %v1006 = vmul.f32 %v1005, %v972
        %v1007 = vmul.f32 %v1006, %v1005
        %v1008 = vmul.f32 0.5, %v1007
        %v1009 = vsub.f32 1.5, %v1008
        %v1010 = vmul.f32 %v1005, %v1009
        %vm1011 = vweird.f32 %v972
        %vm1012 = vweird.f32 %v1005
        %vm1013 = vmor %vm1011, %vm1012
        %v1014 = vsel %vm1013, %v1005, %v1010
        %v1015 = vrsqrt.pop %v973
        %v1016 = vmul.f32 %v1015, %v973
        %v1017 = vmul.f32 %v1016, %v1015
        %v1018 = vmul.f32 0.5, %v1017
        %v1019 = vsub.f32 1.5, %v1018
        %v1020 = vmul.f32 %v1015, %v1019
        %vm1021 = vweird.f32 %v973
        %vm1022 = vweird.f32 %v1015
        %vm1023 = vmor %vm1021, %vm1022
        %v1024 = vsel %vm1023, %v1015, %v1020
        %v1025 = vrsqrt.pop %v974
        %v1026 = vmul.f32 %v1025, %v974
        %v1027 = vmul.f32 %v1026, %v1025
        %v1028 = vmul.f32 0.5, %v1027
        %v1029 = vsub.f32 1.5, %v1028
        %v1030 = vmul.f32 %v1025, %v1029
        %vm1031 = vweird.f32 %v974
        %vm1032 = vweird.f32 %v1025
        %vm1033 = vmor %vm1031, %vm1032
        %v1034 = vsel %vm1033, %v1025, %v1030
        %v1035 = vmul.f32 %v933, %v984
        %v1036 = vmul.f32 %v934, %v994
        %v1037 = vmul.f32 %v935, %v1004
        %v1038 = vmul.f32 %v936, %v1014
        %v1039 = vmul.f32 %v937, %v1024
        %v1040 = vmul.f32 %v938, %v1034
        %v1042 = vperm.slane %v899, 0
        %v1044 = vmul.f32 %v1035, %v1042
        %v1045 = vmul.f32 %v1036, %v1042
        %v1046 = vmul.f32 %v1037, %v1042
        %v1047 = vmul.f32 %v1038, %v1042
        %v1048 = vmul.f32 %v1039, %v1042
        %v1049 = vmul.f32 %v1040, %v1042
        %v1051 = vperm.slane %v900, 0
        %v1053 = vadd.f32 %v1044, %v1051
        %v1054 = vadd.f32 %v1045, %v1051
        %v1055 = vadd.f32 %v1046, %v1051
        %v1056 = vadd.f32 %v1047, %v1051
        %v1057 = vadd.f32 %v1048, %v1051
        %v1058 = vadd.f32 %v1049, %v1051
        %v1059 = vpack.c.bf16 %v1054, %v1053
        %v1060 = vpack.c.bf16 %v1056, %v1055
        %v1061 = vpack.c.bf16 %v1058, %v1057
        %v1062 = vld [vmem:[%s754] sm:$0xf]
        %v1063 = vld [vmem:[%s754 + $0x4] sm:$0xf]
        %v1064 = vld [vmem:[%s754 + $0x8] sm:$0xf]
        %v1065 = vld [vmem:[%s754 + $0xc] sm:$0xf]
        %v1066 = vld [vmem:[%s757] sm:$0x1]
        %v1068 = vperm.slane %v1066, 0
        %v1074 = vunpack.c.l.b16 %v1062
        %v1075 = vunpack.c.l.b16 %v1063
        %v1076 = vunpack.c.l.b16 %v1064
        %v1077 = vunpack.c.l.b16 %v1065
        %v1078 = vpack.c.b16 %v1075, %v1074
        %v1079 = vpack.c.b16 %v1077, %v1076
        %v1083 = vsel %vm901, %v1059, 0
        %v1086 = vsel %vm901, %v1060, 0
        %v1089 = vsel %vm901, %v1061, 0
        %1091 = vmatpush.bf16.msra.mxu0 0
        %1092 = vmatpush.bf16.msra.mxu0 0
        %1093 = vmatpush.bf16.msra.mxu0 0
        %1094 = vmatpush.bf16.msra.mxu0 0
        %1095 = vmatpush.bf16.msra.mxu0 0
        %1096 = vmatpush.bf16.msra.mxu0 0
        %1097 = vmatpush.bf16.msra.mxu0 %v1079
        %1098 = vmatpush.bf16.msra.mxu0 %v1078
        %1099 = vmatmul.bf16.gmra.mxu0 %v1083
        %v1100 = vpop.f32.mrf.mxu0
        %v1101 = vadd.f32 %v1068, %v1100
        %v1102 = vpop.f32.mrf.mxu0
        %v1103 = vadd.f32 %v1068, %v1102
        %1104 = vmatmul.bf16.gmra.mxu0 %v1086
        %v1105 = vpop.f32.mrf.mxu0
        %v1106 = vadd.f32 %v1068, %v1105
        %v1107 = vpop.f32.mrf.mxu0
        %v1108 = vadd.f32 %v1068, %v1107
        %1109 = vmatmul.bf16.gmra.mxu0 %v1089
        %v1110 = vpop.f32.mrf.mxu0
        %v1111 = vadd.f32 %v1068, %v1110
        %v1112 = vpop.f32.mrf.mxu0
        %v1113 = vadd.f32 %v1068, %v1112
        %1114 = vdwg.mxu0
        %v1115 = vpack.c.bf16 %v1101, %v1101
        %v1116 = vpack.c.bf16 %v1103, %v1103
        %v1117 = vpack.c.bf16 %v1106, %v1106
        %v1118 = vpack.c.bf16 %v1108, %v1108
        %v1119 = vpack.c.bf16 %v1111, %v1111
        %v1120 = vpack.c.bf16 %v1113, %v1113
        %v1121 = vld [vmem:[%s762] sm:$0xf]
        %v1122 = vld [vmem:[%s762 + $0x4] sm:$0xf]
        %v1123 = vld [vmem:[%s762 + $0x8] sm:$0xf]
        %v1124 = vld [vmem:[%s762 + $0xc] sm:$0xf]
        %v1125 = vld [vmem:[%s3] sm:$0xff]
        %v1126 = vld [vmem:[%s3 + $0x8] sm:$0xff]
        %v1127 = vld [vmem:[%s3 + $0x10] sm:$0xff]
        %v1128 = vld [vmem:[%s3 + $0x18] sm:$0xff]
        %v1129 = vld [vmem:[%s3 + $0x20] sm:$0xff]
        %v1130 = vld [vmem:[%s3 + $0x28] sm:$0xff]
        %v1137 = vunpack.c.l.b16 %v1115
        %v1138 = vunpack.c.l.b16 %v1116
        %v1139 = vunpack.c.l.b16 %v1117
        %v1140 = vunpack.c.l.b16 %v1118
        %v1141 = vunpack.c.l.b16 %v1119
        %v1142 = vunpack.c.l.b16 %v1120
        %v1143 = vpack.c.b16 %v1138, %v1137
        %v1144 = vpack.c.b16 %v1140, %v1139
        %v1145 = vpack.c.b16 %v1142, %v1141
        %1146 = vrot.lane.b32.xlu0 %v1143, 96
        %v1147 = vpop.permute.xlu0 %1146
        %1148 = vrot.lane.b32.xlu0 %v1144, 96
        %v1149 = vpop.permute.xlu0 %1148
        %1150 = vrot.lane.b32.xlu0 %v1145, 96
        %v1151 = vpop.permute.xlu0 %1150
        %vm1152 = vcmask 64512
        %v1154 = vsel %vm1152, %v1143, 0
        %v1157 = vsel %vm1152, %v1144, 0
        %v1160 = vsel %vm1152, %v1145, 0
        %v1163 = vsel %vm1152, %v1147, 0
        %v1166 = vsel %vm1152, %v1149, 0
        %v1169 = vsel %vm1152, %v1151, 0
        %1171 = vmatpush.bf16.xpose.msra.mxu0 0
        %1172 = vmatpush.bf16.xpose.msra.mxu0 0
        %1173 = vmatpush.bf16.xpose.msra.mxu0 0
        %1174 = vmatpush.bf16.xpose.msra.mxu0 0
        %1175 = vmatpush.bf16.xpose.msra.mxu0 0
        %1176 = vmatpush.bf16.xpose.msra.mxu0 %v1169
        %1177 = vmatpush.bf16.xpose.msra.mxu0 %v1166
        %1178 = vmatpush.bf16.xpose.msra.mxu0 %v1163
        %1179 = vmatmul.bf16.gmra.mxu0 %v1154
        %v1180 = vpop.f32.mrf.mxu0
        %v1181 = vadd.f32 %v1125, %v1180
        %v1182 = vpop.f32.mrf.mxu0
        %v1183 = vadd.f32 %v1126, %v1182
        %1184 = vmatmul.bf16.gmra.mxu0 %v1157
        %v1185 = vpop.f32.mrf.mxu0
        %v1186 = vadd.f32 %v1127, %v1185
        %v1187 = vpop.f32.mrf.mxu0
        %v1188 = vadd.f32 %v1128, %v1187
        %1189 = vmatmul.bf16.gmra.mxu0 %v1160
        %v1190 = vpop.f32.mrf.mxu0
        %v1191 = vadd.f32 %v1129, %v1190
        %v1192 = vpop.f32.mrf.mxu0
        %v1193 = vadd.f32 %v1130, %v1192
        %1194 = vdwg.mxu0
        %vm1195 = vcmask 392192
        %v1196 = vsel %vm1195, %v1181, -inf
        %1197 = vmax.xlane.f32.xlu0 %v1196
        %v1198 = vpop.xlane.xlu0 %1197
        %v1199 = vsel %vm1195, %v1183, -inf
        %1200 = vmax.xlane.f32.xlu0 %v1199
        %v1201 = vpop.xlane.xlu0 %1200
        %v1202 = vsel %vm1195, %v1186, -inf
        %1203 = vmax.xlane.f32.xlu0 %v1202
        %v1204 = vpop.xlane.xlu0 %1203
        %v1205 = vsel %vm1195, %v1188, -inf
        %1206 = vmax.xlane.f32.xlu0 %v1205
        %v1207 = vpop.xlane.xlu0 %1206
        %v1208 = vsel %vm1195, %v1191, -inf
        %1209 = vmax.xlane.f32.xlu0 %v1208
        %v1210 = vpop.xlane.xlu0 %1209
        %v1211 = vsel %vm1195, %v1193, -inf
        %1212 = vmax.xlane.f32.xlu0 %v1211
        %v1213 = vpop.xlane.xlu0 %1212
        %v1214 = vsub.f32 %v1181, %v1198
        %v1215 = vsub.f32 %v1183, %v1201
        %v1216 = vsub.f32 %v1186, %v1204
        %v1217 = vsub.f32 %v1188, %v1207
        %v1218 = vsub.f32 %v1191, %v1210
        %v1219 = vsub.f32 %v1193, %v1213
        %v1220 = vmul.f32 %v1214, 1.442695
        %v1221 = vpow.pop %v1220
        %v1222 = vmul.f32 %v1215, 1.442695
        %v1223 = vpow.pop %v1222
        %v1224 = vmul.f32 %v1216, 1.442695
        %v1225 = vpow.pop %v1224
        %v1226 = vmul.f32 %v1217, 1.442695
        %v1227 = vpow.pop %v1226
        %v1228 = vmul.f32 %v1218, 1.442695
        %v1229 = vpow.pop %v1228
        %v1230 = vmul.f32 %v1219, 1.442695
        %v1231 = vpow.pop %v1230
        %v1232 = vsel %vm1195, %v1221, 0.0
        %1233 = vadd.xlane.f32.xlu0 %v1232
        %v1234 = vpop.xlane.xlu0 %1233
        %v1235 = vsel %vm1195, %v1223, 0.0
        %1236 = vadd.xlane.f32.xlu0 %v1235
        %v1237 = vpop.xlane.xlu0 %1236
        %v1238 = vsel %vm1195, %v1225, 0.0
        %1239 = vadd.xlane.f32.xlu0 %v1238
        %v1240 = vpop.xlane.xlu0 %1239
        %v1241 = vsel %vm1195, %v1227, 0.0
        %1242 = vadd.xlane.f32.xlu0 %v1241
        %v1243 = vpop.xlane.xlu0 %1242
        %v1244 = vsel %vm1195, %v1229, 0.0
        %1245 = vadd.xlane.f32.xlu0 %v1244
        %v1246 = vpop.xlane.xlu0 %1245
        %v1247 = vsel %vm1195, %v1231, 0.0
        %1248 = vadd.xlane.f32.xlu0 %v1247
        %v1249 = vpop.xlane.xlu0 %1248
        %v1250 = vrcp.pop %v1234
        %v1251 = vrcp.pop %v1237
        %v1252 = vrcp.pop %v1240
        %v1253 = vrcp.pop %v1243
        %v1254 = vrcp.pop %v1246
        %v1255 = vrcp.pop %v1249
        %v1256 = vmul.f32 %v1221, %v1250
        %v1257 = vmul.f32 %v1223, %v1251
        %v1258 = vmul.f32 %v1225, %v1252
        %v1259 = vmul.f32 %v1227, %v1253
        %v1260 = vmul.f32 %v1229, %v1254
        %v1261 = vmul.f32 %v1231, %v1255
        %v1262 = vpack.c.bf16 %v1257, %v1256
        %v1263 = vpack.c.bf16 %v1259, %v1258
        %v1264 = vpack.c.bf16 %v1261, %v1260
        %1265 = vrot.lane.b32.xlu0 %v1143, 64
        %v1266 = vpop.permute.xlu0 %1265
        %1267 = vrot.lane.b32.xlu0 %v1144, 64
        %v1268 = vpop.permute.xlu0 %1267
        %1269 = vrot.lane.b32.xlu0 %v1145, 64
        %v1270 = vpop.permute.xlu0 %1269
        %v1275 = vsel %vm1195, %v1262, 0
        %v1278 = vsel %vm1195, %v1263, 0
        %v1281 = vsel %vm1195, %v1264, 0
        %1283 = vmatpush.bf16.msra.mxu0 0
        %1284 = vmatpush.bf16.msra.mxu0 0
        %1285 = vmatpush.bf16.msra.mxu0 0
        %1286 = vmatpush.bf16.msra.mxu0 0
        %1287 = vmatpush.bf16.msra.mxu0 0
        %1288 = vmatpush.bf16.msra.mxu0 %v1270
        %1289 = vmatpush.bf16.msra.mxu0 %v1268
        %1290 = vmatpush.bf16.msra.mxu0 %v1266
        %1291 = vmatmul.bf16.gmra.mxu0 %v1275
        %v1292 = vpop.f32.mrf.mxu0
        %v1293 = vadd.f32 0.0, %v1292
        %v1294 = vpop.f32.mrf.mxu0
        %v1295 = vadd.f32 0.0, %v1294
        %1296 = vmatmul.bf16.gmra.mxu0 %v1278
        %v1297 = vpop.f32.mrf.mxu0
        %v1298 = vadd.f32 0.0, %v1297
        %v1299 = vpop.f32.mrf.mxu0
        %v1300 = vadd.f32 0.0, %v1299
        %1301 = vmatmul.bf16.gmra.mxu0 %v1281
        %v1302 = vpop.f32.mrf.mxu0
        %v1303 = vadd.f32 0.0, %v1302
        %v1304 = vpop.f32.mrf.mxu0
        %v1305 = vadd.f32 0.0, %v1304
        %1306 = vdwg.mxu0
        %v1307 = vpack.c.bf16 %v1295, %v1293
        %v1308 = vpack.c.bf16 %v1300, %v1298
        %v1309 = vpack.c.bf16 %v1305, %v1303
        %1310 = vrot.lane.b32.xlu0 %v1143, 120
        %v1311 = vpop.permute.xlu0 %1310
        %1312 = vrot.lane.b32.xlu0 %v1144, 120
        %v1313 = vpop.permute.xlu0 %1312
        %1314 = vrot.lane.b32.xlu0 %v1145, 120
        %v1315 = vpop.permute.xlu0 %1314
        %1316 = vrot.lane.b32.xlu0 %v1143, 88
        %v1317 = vpop.permute.xlu0 %1316
        %1318 = vrot.lane.b32.xlu0 %v1144, 88
        %v1319 = vpop.permute.xlu0 %1318
        %1320 = vrot.lane.b32.xlu0 %v1145, 88
        %v1321 = vpop.permute.xlu0 %1320
        %v1323 = vsel %vm1152, %v1311, 0
        %v1326 = vsel %vm1152, %v1313, 0
        %v1329 = vsel %vm1152, %v1315, 0
        %v1332 = vsel %vm1152, %v1317, 0
        %v1335 = vsel %vm1152, %v1319, 0
        %v1338 = vsel %vm1152, %v1321, 0
        %1340 = vmatpush.bf16.xpose.msra.mxu0 0
        %1341 = vmatpush.bf16.xpose.msra.mxu0 0
        %1342 = vmatpush.bf16.xpose.msra.mxu0 0
        %1343 = vmatpush.bf16.xpose.msra.mxu0 0
        %1344 = vmatpush.bf16.xpose.msra.mxu0 0
        %1345 = vmatpush.bf16.xpose.msra.mxu0 %v1338
        %1346 = vmatpush.bf16.xpose.msra.mxu0 %v1335
        %1347 = vmatpush.bf16.xpose.msra.mxu0 %v1332
        %1348 = vmatmul.bf16.gmra.mxu0 %v1323
        %v1349 = vpop.f32.mrf.mxu0
        %v1350 = vadd.f32 %v1125, %v1349
        %v1351 = vpop.f32.mrf.mxu0
        %v1352 = vadd.f32 %v1126, %v1351
        %1353 = vmatmul.bf16.gmra.mxu0 %v1326
        %v1354 = vpop.f32.mrf.mxu0
        %v1355 = vadd.f32 %v1127, %v1354
        %v1356 = vpop.f32.mrf.mxu0
        %v1357 = vadd.f32 %v1128, %v1356
        %1358 = vmatmul.bf16.gmra.mxu0 %v1329
        %v1359 = vpop.f32.mrf.mxu0
        %v1360 = vadd.f32 %v1129, %v1359
        %v1361 = vpop.f32.mrf.mxu0
        %v1362 = vadd.f32 %v1130, %v1361
        %1363 = vdwg.mxu0
        %v1364 = vsel %vm1195, %v1350, -inf
        %1365 = vmax.xlane.f32.xlu0 %v1364
        %v1366 = vpop.xlane.xlu0 %1365
        %v1367 = vsel %vm1195, %v1352, -inf
        %1368 = vmax.xlane.f32.xlu0 %v1367
        %v1369 = vpop.xlane.xlu0 %1368
        %v1370 = vsel %vm1195, %v1355, -inf
        %1371 = vmax.xlane.f32.xlu0 %v1370
        %v1372 = vpop.xlane.xlu0 %1371
        %v1373 = vsel %vm1195, %v1357, -inf
        %1374 = vmax.xlane.f32.xlu0 %v1373
        %v1375 = vpop.xlane.xlu0 %1374
        %v1376 = vsel %vm1195, %v1360, -inf
        %1377 = vmax.xlane.f32.xlu0 %v1376
        %v1378 = vpop.xlane.xlu0 %1377
        %v1379 = vsel %vm1195, %v1362, -inf
        %1380 = vmax.xlane.f32.xlu0 %v1379
        %v1381 = vpop.xlane.xlu0 %1380
        %v1382 = vsub.f32 %v1350, %v1366
        %v1383 = vsub.f32 %v1352, %v1369
        %v1384 = vsub.f32 %v1355, %v1372
        %v1385 = vsub.f32 %v1357, %v1375
        %v1386 = vsub.f32 %v1360, %v1378
        %v1387 = vsub.f32 %v1362, %v1381
        %v1388 = vmul.f32 %v1382, 1.442695
        %v1389 = vpow.pop %v1388
        %v1390 = vmul.f32 %v1383, 1.442695
        %v1391 = vpow.pop %v1390
        %v1392 = vmul.f32 %v1384, 1.442695
        %v1393 = vpow.pop %v1392
        %v1394 = vmul.f32 %v1385, 1.442695
        %v1395 = vpow.pop %v1394
        %v1396 = vmul.f32 %v1386, 1.442695
        %v1397 = vpow.pop %v1396
        %v1398 = vmul.f32 %v1387, 1.442695
        %v1399 = vpow.pop %v1398
        %v1400 = vsel %vm1195, %v1389, 0.0
        %1401 = vadd.xlane.f32.xlu0 %v1400
        %v1402 = vpop.xlane.xlu0 %1401
        %v1403 = vsel %vm1195, %v1391, 0.0
        %1404 = vadd.xlane.f32.xlu0 %v1403
        %v1405 = vpop.xlane.xlu0 %1404
        %v1406 = vsel %vm1195, %v1393, 0.0
        %1407 = vadd.xlane.f32.xlu0 %v1406
        %v1408 = vpop.xlane.xlu0 %1407
        %v1409 = vsel %vm1195, %v1395, 0.0
        %1410 = vadd.xlane.f32.xlu0 %v1409
        %v1411 = vpop.xlane.xlu0 %1410
        %v1412 = vsel %vm1195, %v1397, 0.0
        %1413 = vadd.xlane.f32.xlu0 %v1412
        %v1414 = vpop.xlane.xlu0 %1413
        %v1415 = vsel %vm1195, %v1399, 0.0
        %1416 = vadd.xlane.f32.xlu0 %v1415
        %v1417 = vpop.xlane.xlu0 %1416
        %v1418 = vrcp.pop %v1402
        %v1419 = vrcp.pop %v1405
        %v1420 = vrcp.pop %v1408
        %v1421 = vrcp.pop %v1411
        %v1422 = vrcp.pop %v1414
        %v1423 = vrcp.pop %v1417
        %v1424 = vmul.f32 %v1389, %v1418
        %v1425 = vmul.f32 %v1391, %v1419
        %v1426 = vmul.f32 %v1393, %v1420
        %v1427 = vmul.f32 %v1395, %v1421
        %v1428 = vmul.f32 %v1397, %v1422
        %v1429 = vmul.f32 %v1399, %v1423
        %v1430 = vpack.c.bf16 %v1425, %v1424
        %v1431 = vpack.c.bf16 %v1427, %v1426
        %v1432 = vpack.c.bf16 %v1429, %v1428
        %1433 = vrot.lane.b32.xlu0 %v1143, 56
        %v1434 = vpop.permute.xlu0 %1433
        %1435 = vrot.lane.b32.xlu0 %v1144, 56
        %v1436 = vpop.permute.xlu0 %1435
        %1437 = vrot.lane.b32.xlu0 %v1145, 56
        %v1438 = vpop.permute.xlu0 %1437
        %v1443 = vsel %vm1195, %v1430, 0
        %v1446 = vsel %vm1195, %v1431, 0
        %v1449 = vsel %vm1195, %v1432, 0
        %1451 = vmatpush.bf16.msra.mxu0 0
        %1452 = vmatpush.bf16.msra.mxu0 0
        %1453 = vmatpush.bf16.msra.mxu0 0
        %1454 = vmatpush.bf16.msra.mxu0 0
        %1455 = vmatpush.bf16.msra.mxu0 0
        %1456 = vmatpush.bf16.msra.mxu0 %v1438
        %1457 = vmatpush.bf16.msra.mxu0 %v1436
        %1458 = vmatpush.bf16.msra.mxu0 %v1434
        %1459 = vmatmul.bf16.gmra.mxu0 %v1443
        %v1460 = vpop.f32.mrf.mxu0
        %v1461 = vadd.f32 0.0, %v1460
        %v1462 = vpop.f32.mrf.mxu0
        %v1463 = vadd.f32 0.0, %v1462
        %1464 = vmatmul.bf16.gmra.mxu0 %v1446
        %v1465 = vpop.f32.mrf.mxu0
        %v1466 = vadd.f32 0.0, %v1465
        %v1467 = vpop.f32.mrf.mxu0
        %v1468 = vadd.f32 0.0, %v1467
        %1469 = vmatmul.bf16.gmra.mxu0 %v1449
        %v1470 = vpop.f32.mrf.mxu0
        %v1471 = vadd.f32 0.0, %v1470
        %v1472 = vpop.f32.mrf.mxu0
        %v1473 = vadd.f32 0.0, %v1472
        %1474 = vdwg.mxu0
        %v1475 = vpack.c.bf16 %v1463, %v1461
        %v1476 = vpack.c.bf16 %v1468, %v1466
        %v1477 = vpack.c.bf16 %v1473, %v1471
        %v1479 = vsel %vm1152, %v1475, 0
        %v1482 = vsel %vm1152, %v1476, 0
        %v1485 = vsel %vm1152, %v1477, 0
        %vm1487 = vcmask 1043456
        %v1489 = vsel %vm1487, %v1122, 0
        %1491 = vmatpush.bf16.msra.mxu0 0
        %1492 = vmatpush.bf16.msra.mxu0 0
        %1493 = vmatpush.bf16.msra.mxu0 0
        %1494 = vmatpush.bf16.msra.mxu0 0
        %1495 = vmatpush.bf16.msra.mxu0 0
        %1496 = vmatpush.bf16.msra.mxu0 0
        %1497 = vmatpush.bf16.msra.mxu0 0
        %1498 = vmatpush.bf16.msra.mxu0 %v1489
        %1499 = vmatmul.bf16.gmra.mxu0 %v1479
        %v1500 = vpop.f32.mrf.mxu0
        %v1501 = vadd.f32 0.0, %v1500
        %v1502 = vpop.f32.mrf.mxu0
        %v1503 = vadd.f32 0.0, %v1502
        %1504 = vmatmul.bf16.gmra.mxu0 %v1482
        %v1505 = vpop.f32.mrf.mxu0
        %v1506 = vadd.f32 0.0, %v1505
        %v1507 = vpop.f32.mrf.mxu0
        %v1508 = vadd.f32 0.0, %v1507
        %1509 = vmatmul.bf16.gmra.mxu0 %v1485
        %v1510 = vpop.f32.mrf.mxu0
        %v1511 = vadd.f32 0.0, %v1510
        %v1512 = vpop.f32.mrf.mxu0
        %v1513 = vadd.f32 0.0, %v1512
        %1514 = vdwg.mxu0
        %v1516 = vsel %vm1152, %v1307, 0
        %v1519 = vsel %vm1152, %v1308, 0
        %v1522 = vsel %vm1152, %v1309, 0
        %v1525 = vsel %vm1487, %v1121, 0
        %1527 = vmatpush.bf16.msra.mxu0 0
        %1528 = vmatpush.bf16.msra.mxu0 0
        %1529 = vmatpush.bf16.msra.mxu0 0
        %1530 = vmatpush.bf16.msra.mxu0 0
        %1531 = vmatpush.bf16.msra.mxu0 0
        %1532 = vmatpush.bf16.msra.mxu0 0
        %1533 = vmatpush.bf16.msra.mxu0 0
        %1534 = vmatpush.bf16.msra.mxu0 %v1525
        %1535 = vmatmul.bf16.gmra.mxu0 %v1516
        %v1536 = vpop.f32.mrf.mxu0
        %v1537 = vadd.f32 %v1501, %v1536
        %v1538 = vpop.f32.mrf.mxu0
        %v1539 = vadd.f32 %v1503, %v1538
        %1540 = vmatmul.bf16.gmra.mxu0 %v1519
        %v1541 = vpop.f32.mrf.mxu0
        %v1542 = vadd.f32 %v1506, %v1541
        %v1543 = vpop.f32.mrf.mxu0
        %v1544 = vadd.f32 %v1508, %v1543
        %1545 = vmatmul.bf16.gmra.mxu0 %v1522
        %v1546 = vpop.f32.mrf.mxu0
        %v1547 = vadd.f32 %v1511, %v1546
        %v1548 = vpop.f32.mrf.mxu0
        %v1549 = vadd.f32 %v1513, %v1548
        %1550 = vdwg.mxu0
        %1551 = vrot.lane.b32.xlu0 %v1143, 112
        %v1552 = vpop.permute.xlu0 %1551
        %1553 = vrot.lane.b32.xlu0 %v1144, 112
        %v1554 = vpop.permute.xlu0 %1553
        %1555 = vrot.lane.b32.xlu0 %v1145, 112
        %v1556 = vpop.permute.xlu0 %1555
        %1557 = vrot.lane.b32.xlu0 %v1143, 80
        %v1558 = vpop.permute.xlu0 %1557
        %1559 = vrot.lane.b32.xlu0 %v1144, 80
        %v1560 = vpop.permute.xlu0 %1559
        %1561 = vrot.lane.b32.xlu0 %v1145, 80
        %v1562 = vpop.permute.xlu0 %1561
        %v1564 = vsel %vm1152, %v1552, 0
        %v1567 = vsel %vm1152, %v1554, 0
        %v1570 = vsel %vm1152, %v1556, 0
        %v1573 = vsel %vm1152, %v1558, 0
        %v1576 = vsel %vm1152, %v1560, 0
        %v1579 = vsel %vm1152, %v1562, 0
        %1581 = vmatpush.bf16.xpose.msra.mxu0 0
        %1582 = vmatpush.bf16.xpose.msra.mxu0 0
        %1583 = vmatpush.bf16.xpose.msra.mxu0 0
        %1584 = vmatpush.bf16.xpose.msra.mxu0 0
        %1585 = vmatpush.bf16.xpose.msra.mxu0 0
        %1586 = vmatpush.bf16.xpose.msra.mxu0 %v1579
        %1587 = vmatpush.bf16.xpose.msra.mxu0 %v1576
        %1588 = vmatpush.bf16.xpose.msra.mxu0 %v1573
        %1589 = vmatmul.bf16.gmra.mxu0 %v1564
        %v1590 = vpop.f32.mrf.mxu0
        %v1591 = vadd.f32 %v1125, %v1590
        %v1592 = vpop.f32.mrf.mxu0
        %v1593 = vadd.f32 %v1126, %v1592
        %1594 = vmatmul.bf16.gmra.mxu0 %v1567
        %v1595 = vpop.f32.mrf.mxu0
        %v1596 = vadd.f32 %v1127, %v1595
        %v1597 = vpop.f32.mrf.mxu0
        %v1598 = vadd.f32 %v1128, %v1597
        %1599 = vmatmul.bf16.gmra.mxu0 %v1570
        %v1600 = vpop.f32.mrf.mxu0
        %v1601 = vadd.f32 %v1129, %v1600
        %v1602 = vpop.f32.mrf.mxu0
        %v1603 = vadd.f32 %v1130, %v1602
        %1604 = vdwg.mxu0
        %v1605 = vsel %vm1195, %v1591, -inf
        %1606 = vmax.xlane.f32.xlu0 %v1605
        %v1607 = vpop.xlane.xlu0 %1606
        %v1608 = vsel %vm1195, %v1593, -inf
        %1609 = vmax.xlane.f32.xlu0 %v1608
        %v1610 = vpop.xlane.xlu0 %1609
        %v1611 = vsel %vm1195, %v1596, -inf
        %1612 = vmax.xlane.f32.xlu0 %v1611
        %v1613 = vpop.xlane.xlu0 %1612
        %v1614 = vsel %vm1195, %v1598, -inf
        %1615 = vmax.xlane.f32.xlu0 %v1614
        %v1616 = vpop.xlane.xlu0 %1615
        %v1617 = vsel %vm1195, %v1601, -inf
        %1618 = vmax.xlane.f32.xlu0 %v1617
        %v1619 = vpop.xlane.xlu0 %1618
        %v1620 = vsel %vm1195, %v1603, -inf
        %1621 = vmax.xlane.f32.xlu0 %v1620
        %v1622 = vpop.xlane.xlu0 %1621
        %v1623 = vsub.f32 %v1591, %v1607
        %v1624 = vsub.f32 %v1593, %v1610
        %v1625 = vsub.f32 %v1596, %v1613
        %v1626 = vsub.f32 %v1598, %v1616
        %v1627 = vsub.f32 %v1601, %v1619
        %v1628 = vsub.f32 %v1603, %v1622
        %v1629 = vmul.f32 %v1623, 1.442695
        %v1630 = vpow.pop %v1629
        %v1631 = vmul.f32 %v1624, 1.442695
        %v1632 = vpow.pop %v1631
        %v1633 = vmul.f32 %v1625, 1.442695
        %v1634 = vpow.pop %v1633
        %v1635 = vmul.f32 %v1626, 1.442695
        %v1636 = vpow.pop %v1635
        %v1637 = vmul.f32 %v1627, 1.442695
        %v1638 = vpow.pop %v1637
        %v1639 = vmul.f32 %v1628, 1.442695
        %v1640 = vpow.pop %v1639
        %v1641 = vsel %vm1195, %v1630, 0.0
        %1642 = vadd.xlane.f32.xlu0 %v1641
        %v1643 = vpop.xlane.xlu0 %1642
        %v1644 = vsel %vm1195, %v1632, 0.0
        %1645 = vadd.xlane.f32.xlu0 %v1644
        %v1646 = vpop.xlane.xlu0 %1645
        %v1647 = vsel %vm1195, %v1634, 0.0
        %1648 = vadd.xlane.f32.xlu0 %v1647
        %v1649 = vpop.xlane.xlu0 %1648
        %v1650 = vsel %vm1195, %v1636, 0.0
        %1651 = vadd.xlane.f32.xlu0 %v1650
        %v1652 = vpop.xlane.xlu0 %1651
        %v1653 = vsel %vm1195, %v1638, 0.0
        %1654 = vadd.xlane.f32.xlu0 %v1653
        %v1655 = vpop.xlane.xlu0 %1654
        %v1656 = vsel %vm1195, %v1640, 0.0
        %1657 = vadd.xlane.f32.xlu0 %v1656
        %v1658 = vpop.xlane.xlu0 %1657
        %v1659 = vrcp.pop %v1643
        %v1660 = vrcp.pop %v1646
        %v1661 = vrcp.pop %v1649
        %v1662 = vrcp.pop %v1652
        %v1663 = vrcp.pop %v1655
        %v1664 = vrcp.pop %v1658
        %v1665 = vmul.f32 %v1630, %v1659
        %v1666 = vmul.f32 %v1632, %v1660
        %v1667 = vmul.f32 %v1634, %v1661
        %v1668 = vmul.f32 %v1636, %v1662
        %v1669 = vmul.f32 %v1638, %v1663
        %v1670 = vmul.f32 %v1640, %v1664
        %v1671 = vpack.c.bf16 %v1666, %v1665
        %v1672 = vpack.c.bf16 %v1668, %v1667
        %v1673 = vpack.c.bf16 %v1670, %v1669
        %1674 = vrot.lane.b32.xlu0 %v1143, 48
        %v1675 = vpop.permute.xlu0 %1674
        %1676 = vrot.lane.b32.xlu0 %v1144, 48
        %v1677 = vpop.permute.xlu0 %1676
        %1678 = vrot.lane.b32.xlu0 %v1145, 48
        %v1679 = vpop.permute.xlu0 %1678
        %v1684 = vsel %vm1195, %v1671, 0
        %v1687 = vsel %vm1195, %v1672, 0
        %v1690 = vsel %vm1195, %v1673, 0
        %1692 = vmatpush.bf16.msra.mxu0 0
        %1693 = vmatpush.bf16.msra.mxu0 0
        %1694 = vmatpush.bf16.msra.mxu0 0
        %1695 = vmatpush.bf16.msra.mxu0 0
        %1696 = vmatpush.bf16.msra.mxu0 0
        %1697 = vmatpush.bf16.msra.mxu0 %v1679
        %1698 = vmatpush.bf16.msra.mxu0 %v1677
        %1699 = vmatpush.bf16.msra.mxu0 %v1675
        %1700 = vmatmul.bf16.gmra.mxu0 %v1684
        %v1701 = vpop.f32.mrf.mxu0
        %v1702 = vadd.f32 0.0, %v1701
        %v1703 = vpop.f32.mrf.mxu0
        %v1704 = vadd.f32 0.0, %v1703
        %1705 = vmatmul.bf16.gmra.mxu0 %v1687
        %v1706 = vpop.f32.mrf.mxu0
        %v1707 = vadd.f32 0.0, %v1706
        %v1708 = vpop.f32.mrf.mxu0
        %v1709 = vadd.f32 0.0, %v1708
        %1710 = vmatmul.bf16.gmra.mxu0 %v1690
        %v1711 = vpop.f32.mrf.mxu0
        %v1712 = vadd.f32 0.0, %v1711
        %v1713 = vpop.f32.mrf.mxu0
        %v1714 = vadd.f32 0.0, %v1713
        %1715 = vdwg.mxu0
        %v1716 = vpack.c.bf16 %v1704, %v1702
        %v1717 = vpack.c.bf16 %v1709, %v1707
        %v1718 = vpack.c.bf16 %v1714, %v1712
        %v1720 = vsel %vm1152, %v1716, 0
        %v1723 = vsel %vm1152, %v1717, 0
        %v1726 = vsel %vm1152, %v1718, 0
        %v1729 = vsel %vm1487, %v1123, 0
        %1731 = vmatpush.bf16.msra.mxu0 0
        %1732 = vmatpush.bf16.msra.mxu0 0
        %1733 = vmatpush.bf16.msra.mxu0 0
        %1734 = vmatpush.bf16.msra.mxu0 0
        %1735 = vmatpush.bf16.msra.mxu0 0
        %1736 = vmatpush.bf16.msra.mxu0 0
        %1737 = vmatpush.bf16.msra.mxu0 0
        %1738 = vmatpush.bf16.msra.mxu0 %v1729
        %1739 = vmatmul.bf16.gmra.mxu0 %v1720
        %v1740 = vpop.f32.mrf.mxu0
        %v1741 = vadd.f32 0.0, %v1740
        %v1742 = vpop.f32.mrf.mxu0
        %v1743 = vadd.f32 0.0, %v1742
        %1744 = vmatmul.bf16.gmra.mxu0 %v1723
        %v1745 = vpop.f32.mrf.mxu0
        %v1746 = vadd.f32 0.0, %v1745
        %v1747 = vpop.f32.mrf.mxu0
        %v1748 = vadd.f32 0.0, %v1747
        %1749 = vmatmul.bf16.gmra.mxu0 %v1726
        %v1750 = vpop.f32.mrf.mxu0
        %v1751 = vadd.f32 0.0, %v1750
        %v1752 = vpop.f32.mrf.mxu0
        %v1753 = vadd.f32 0.0, %v1752
        %1754 = vdwg.mxu0
        %v1755 = vadd.f32 %v1537, %v1741
        %v1756 = vadd.f32 %v1539, %v1743
        %v1757 = vadd.f32 %v1542, %v1746
        %v1758 = vadd.f32 %v1544, %v1748
        %v1759 = vadd.f32 %v1547, %v1751
        %v1760 = vadd.f32 %v1549, %v1753
        %1761 = vrot.lane.b32.xlu0 %v1143, 104
        %v1762 = vpop.permute.xlu0 %1761
        %1763 = vrot.lane.b32.xlu0 %v1144, 104
        %v1764 = vpop.permute.xlu0 %1763
        %1765 = vrot.lane.b32.xlu0 %v1145, 104
        %v1766 = vpop.permute.xlu0 %1765
        %1767 = vrot.lane.b32.xlu0 %v1143, 72
        %v1768 = vpop.permute.xlu0 %1767
        %1769 = vrot.lane.b32.xlu0 %v1144, 72
        %v1770 = vpop.permute.xlu0 %1769
        %1771 = vrot.lane.b32.xlu0 %v1145, 72
        %v1772 = vpop.permute.xlu0 %1771
        %v1774 = vsel %vm1152, %v1762, 0
        %v1777 = vsel %vm1152, %v1764, 0
        %v1780 = vsel %vm1152, %v1766, 0
        %v1783 = vsel %vm1152, %v1768, 0
        %v1786 = vsel %vm1152, %v1770, 0
        %v1789 = vsel %vm1152, %v1772, 0
        %1791 = vmatpush.bf16.xpose.msra.mxu0 0
        %1792 = vmatpush.bf16.xpose.msra.mxu0 0
        %1793 = vmatpush.bf16.xpose.msra.mxu0 0
        %1794 = vmatpush.bf16.xpose.msra.mxu0 0
        %1795 = vmatpush.bf16.xpose.msra.mxu0 0
        %1796 = vmatpush.bf16.xpose.msra.mxu0 %v1789
        %1797 = vmatpush.bf16.xpose.msra.mxu0 %v1786
        %1798 = vmatpush.bf16.xpose.msra.mxu0 %v1783
        %1799 = vmatmul.bf16.gmra.mxu0 %v1774
        %v1800 = vpop.f32.mrf.mxu0
        %v1801 = vadd.f32 %v1125, %v1800
        %v1802 = vpop.f32.mrf.mxu0
        %v1803 = vadd.f32 %v1126, %v1802
        %1804 = vmatmul.bf16.gmra.mxu0 %v1777
        %v1805 = vpop.f32.mrf.mxu0
        %v1806 = vadd.f32 %v1127, %v1805
        %v1807 = vpop.f32.mrf.mxu0
        %v1808 = vadd.f32 %v1128, %v1807
        %1809 = vmatmul.bf16.gmra.mxu0 %v1780
        %v1810 = vpop.f32.mrf.mxu0
        %v1811 = vadd.f32 %v1129, %v1810
        %v1812 = vpop.f32.mrf.mxu0
        %v1813 = vadd.f32 %v1130, %v1812
        %1814 = vdwg.mxu0
        %v1815 = vsel %vm1195, %v1801, -inf
        %1816 = vmax.xlane.f32.xlu0 %v1815
        %v1817 = vpop.xlane.xlu0 %1816
        %v1818 = vsel %vm1195, %v1803, -inf
        %1819 = vmax.xlane.f32.xlu0 %v1818
        %v1820 = vpop.xlane.xlu0 %1819
        %v1821 = vsel %vm1195, %v1806, -inf
        %1822 = vmax.xlane.f32.xlu0 %v1821
        %v1823 = vpop.xlane.xlu0 %1822
        %v1824 = vsel %vm1195, %v1808, -inf
        %1825 = vmax.xlane.f32.xlu0 %v1824
        %v1826 = vpop.xlane.xlu0 %1825
        %v1827 = vsel %vm1195, %v1811, -inf
        %1828 = vmax.xlane.f32.xlu0 %v1827
        %v1829 = vpop.xlane.xlu0 %1828
        %v1830 = vsel %vm1195, %v1813, -inf
        %1831 = vmax.xlane.f32.xlu0 %v1830
        %v1832 = vpop.xlane.xlu0 %1831
        %v1833 = vsub.f32 %v1801, %v1817
        %v1834 = vsub.f32 %v1803, %v1820
        %v1835 = vsub.f32 %v1806, %v1823
        %v1836 = vsub.f32 %v1808, %v1826
        %v1837 = vsub.f32 %v1811, %v1829
        %v1838 = vsub.f32 %v1813, %v1832
        %v1839 = vmul.f32 %v1833, 1.442695
        %v1840 = vpow.pop %v1839
        %v1841 = vmul.f32 %v1834, 1.442695
        %v1842 = vpow.pop %v1841
        %v1843 = vmul.f32 %v1835, 1.442695
        %v1844 = vpow.pop %v1843
        %v1845 = vmul.f32 %v1836, 1.442695
        %v1846 = vpow.pop %v1845
        %v1847 = vmul.f32 %v1837, 1.442695
        %v1848 = vpow.pop %v1847
        %v1849 = vmul.f32 %v1838, 1.442695
        %v1850 = vpow.pop %v1849
        %v1851 = vsel %vm1195, %v1840, 0.0
        %1852 = vadd.xlane.f32.xlu0 %v1851
        %v1853 = vpop.xlane.xlu0 %1852
        %v1854 = vsel %vm1195, %v1842, 0.0
        %1855 = vadd.xlane.f32.xlu0 %v1854
        %v1856 = vpop.xlane.xlu0 %1855
        %v1857 = vsel %vm1195, %v1844, 0.0
        %1858 = vadd.xlane.f32.xlu0 %v1857
        %v1859 = vpop.xlane.xlu0 %1858
        %v1860 = vsel %vm1195, %v1846, 0.0
        %1861 = vadd.xlane.f32.xlu0 %v1860
        %v1862 = vpop.xlane.xlu0 %1861
        %v1863 = vsel %vm1195, %v1848, 0.0
        %1864 = vadd.xlane.f32.xlu0 %v1863
        %v1865 = vpop.xlane.xlu0 %1864
        %v1866 = vsel %vm1195, %v1850, 0.0
        %1867 = vadd.xlane.f32.xlu0 %v1866
        %v1868 = vpop.xlane.xlu0 %1867
        %v1869 = vrcp.pop %v1853
        %v1870 = vrcp.pop %v1856
        %v1871 = vrcp.pop %v1859
        %v1872 = vrcp.pop %v1862
        %v1873 = vrcp.pop %v1865
        %v1874 = vrcp.pop %v1868
        %v1875 = vmul.f32 %v1840, %v1869
        %v1876 = vmul.f32 %v1842, %v1870
        %v1877 = vmul.f32 %v1844, %v1871
        %v1878 = vmul.f32 %v1846, %v1872
        %v1879 = vmul.f32 %v1848, %v1873
        %v1880 = vmul.f32 %v1850, %v1874
        %v1881 = vpack.c.bf16 %v1876, %v1875
        %v1882 = vpack.c.bf16 %v1878, %v1877
        %v1883 = vpack.c.bf16 %v1880, %v1879
        %1884 = vrot.lane.b32.xlu0 %v1143, 40
        %v1885 = vpop.permute.xlu0 %1884
        %1886 = vrot.lane.b32.xlu0 %v1144, 40
        %v1887 = vpop.permute.xlu0 %1886
        %1888 = vrot.lane.b32.xlu0 %v1145, 40
        %v1889 = vpop.permute.xlu0 %1888
        %v1894 = vsel %vm1195, %v1881, 0
        %v1897 = vsel %vm1195, %v1882, 0
        %v1900 = vsel %vm1195, %v1883, 0
        %1902 = vmatpush.bf16.msra.mxu0 0
        %1903 = vmatpush.bf16.msra.mxu0 0
        %1904 = vmatpush.bf16.msra.mxu0 0
        %1905 = vmatpush.bf16.msra.mxu0 0
        %1906 = vmatpush.bf16.msra.mxu0 0
        %1907 = vmatpush.bf16.msra.mxu0 %v1889
        %1908 = vmatpush.bf16.msra.mxu0 %v1887
        %1909 = vmatpush.bf16.msra.mxu0 %v1885
        %1910 = vmatmul.bf16.gmra.mxu0 %v1894
        %v1911 = vpop.f32.mrf.mxu0
        %v1912 = vadd.f32 0.0, %v1911
        %v1913 = vpop.f32.mrf.mxu0
        %v1914 = vadd.f32 0.0, %v1913
        %1915 = vmatmul.bf16.gmra.mxu0 %v1897
        %v1916 = vpop.f32.mrf.mxu0
        %v1917 = vadd.f32 0.0, %v1916
        %v1918 = vpop.f32.mrf.mxu0
        %v1919 = vadd.f32 0.0, %v1918
        %1920 = vmatmul.bf16.gmra.mxu0 %v1900
        %v1921 = vpop.f32.mrf.mxu0
        %v1922 = vadd.f32 0.0, %v1921
        %v1923 = vpop.f32.mrf.mxu0
        %v1924 = vadd.f32 0.0, %v1923
        %1925 = vdwg.mxu0
        %v1926 = vpack.c.bf16 %v1914, %v1912
        %v1927 = vpack.c.bf16 %v1919, %v1917
        %v1928 = vpack.c.bf16 %v1924, %v1922
        %v1930 = vsel %vm1152, %v1926, 0
        %v1933 = vsel %vm1152, %v1927, 0
        %v1936 = vsel %vm1152, %v1928, 0
        %v1939 = vsel %vm1487, %v1124, 0
        %1941 = vmatpush.bf16.msra.mxu0 0
        %1942 = vmatpush.bf16.msra.mxu0 0
        %1943 = vmatpush.bf16.msra.mxu0 0
        %1944 = vmatpush.bf16.msra.mxu0 0
        %1945 = vmatpush.bf16.msra.mxu0 0
        %1946 = vmatpush.bf16.msra.mxu0 0
        %1947 = vmatpush.bf16.msra.mxu0 0
        %1948 = vmatpush.bf16.msra.mxu0 %v1939
        %1949 = vmatmul.bf16.gmra.mxu0 %v1930
        %v1950 = vpop.f32.mrf.mxu0
        %v1951 = vadd.f32 0.0, %v1950
        %v1952 = vpop.f32.mrf.mxu0
        %v1953 = vadd.f32 0.0, %v1952
        %1954 = vmatmul.bf16.gmra.mxu0 %v1933
        %v1955 = vpop.f32.mrf.mxu0
        %v1956 = vadd.f32 0.0, %v1955
        %v1957 = vpop.f32.mrf.mxu0
        %v1958 = vadd.f32 0.0, %v1957
        %1959 = vmatmul.bf16.gmra.mxu0 %v1936
        %v1960 = vpop.f32.mrf.mxu0
        %v1961 = vadd.f32 0.0, %v1960
        %v1962 = vpop.f32.mrf.mxu0
        %v1963 = vadd.f32 0.0, %v1962
        %1964 = vdwg.mxu0
        %v1965 = vadd.f32 %v1755, %v1951
        %v1966 = vadd.f32 %v1756, %v1953
        %v1967 = vadd.f32 %v1757, %v1956
        %v1968 = vadd.f32 %v1758, %v1958
        %v1969 = vadd.f32 %v1759, %v1961
        %v1970 = vadd.f32 %v1760, %v1963
        %v1971 = vadd.f32 %v893, %v1965
        %v1972 = vadd.f32 %v894, %v1966
        %v1973 = vadd.f32 %v895, %v1967
        %v1974 = vadd.f32 %v896, %v1968
        %v1975 = vadd.f32 %v897, %v1969
        %v1976 = vadd.f32 %v898, %v1970
        %v1977 = vld [vmem:[%s765] sm:$0x1]
        %v1979 = vperm.slane %v1977, 0
        %v1981 = vadd.f32 %v1971, %v1979
        %v1982 = vadd.f32 %v1972, %v1979
        %v1983 = vadd.f32 %v1973, %v1979
        %v1984 = vadd.f32 %v1974, %v1979
        %v1985 = vadd.f32 %v1975, %v1979
        %v1986 = vadd.f32 %v1976, %v1979
        %v1987 = vld [vmem:[%s768] sm:$0x1]
        %v1988 = vld [vmem:[%s771] sm:$0x1]
        %v1989 = vsel %vm901, %v1981, 0.0
        %1990 = vadd.xlane.f32.xlu0 %v1989
        %v1991 = vpop.xlane.xlu0 %1990
        %v1992 = vsel %vm901, %v1982, 0.0
        %1993 = vadd.xlane.f32.xlu0 %v1992
        %v1994 = vpop.xlane.xlu0 %1993
        %v1995 = vsel %vm901, %v1983, 0.0
        %1996 = vadd.xlane.f32.xlu0 %v1995
        %v1997 = vpop.xlane.xlu0 %1996
        %v1998 = vsel %vm901, %v1984, 0.0
        %1999 = vadd.xlane.f32.xlu0 %v1998
        %v2000 = vpop.xlane.xlu0 %1999
        %v2001 = vsel %vm901, %v1985, 0.0
        %2002 = vadd.xlane.f32.xlu0 %v2001
        %v2003 = vpop.xlane.xlu0 %2002
        %v2004 = vsel %vm901, %v1986, 0.0
        %2005 = vadd.xlane.f32.xlu0 %v2004
        %v2006 = vpop.xlane.xlu0 %2005
        %v2007 = vmul.f32 %v1991, %v926
        %v2008 = vmul.f32 %v1994, %v926
        %v2009 = vmul.f32 %v1997, %v926
        %v2010 = vmul.f32 %v2000, %v926
        %v2011 = vmul.f32 %v2003, %v926
        %v2012 = vmul.f32 %v2006, %v926
        %v2013 = vsub.f32 %v1981, %v2007
        %v2014 = vsub.f32 %v1982, %v2008
        %v2015 = vsub.f32 %v1983, %v2009
        %v2016 = vsub.f32 %v1984, %v2010
        %v2017 = vsub.f32 %v1985, %v2011
        %v2018 = vsub.f32 %v1986, %v2012
        %v2019 = vmul.f32 %v2013, %v2013
        %v2020 = vmul.f32 %v2014, %v2014
        %v2021 = vmul.f32 %v2015, %v2015
        %v2022 = vmul.f32 %v2016, %v2016
        %v2023 = vmul.f32 %v2017, %v2017
        %v2024 = vmul.f32 %v2018, %v2018
        %v2025 = vsel %vm901, %v2019, 0.0
        %2026 = vadd.xlane.f32.xlu0 %v2025
        %v2027 = vpop.xlane.xlu0 %2026
        %v2028 = vsel %vm901, %v2020, 0.0
        %2029 = vadd.xlane.f32.xlu0 %v2028
        %v2030 = vpop.xlane.xlu0 %2029
        %v2031 = vsel %vm901, %v2021, 0.0
        %2032 = vadd.xlane.f32.xlu0 %v2031
        %v2033 = vpop.xlane.xlu0 %2032
        %v2034 = vsel %vm901, %v2022, 0.0
        %2035 = vadd.xlane.f32.xlu0 %v2034
        %v2036 = vpop.xlane.xlu0 %2035
        %v2037 = vsel %vm901, %v2023, 0.0
        %2038 = vadd.xlane.f32.xlu0 %v2037
        %v2039 = vpop.xlane.xlu0 %2038
        %v2040 = vsel %vm901, %v2024, 0.0
        %2041 = vadd.xlane.f32.xlu0 %v2040
        %v2042 = vpop.xlane.xlu0 %2041
        %v2043 = vmul.f32 %v2027, %v926
        %v2044 = vmul.f32 %v2030, %v926
        %v2045 = vmul.f32 %v2033, %v926
        %v2046 = vmul.f32 %v2036, %v926
        %v2047 = vmul.f32 %v2039, %v926
        %v2048 = vmul.f32 %v2042, %v926
        %v2049 = vadd.f32 %v2043, 1e-06
        %v2050 = vadd.f32 %v2044, 1e-06
        %v2051 = vadd.f32 %v2045, 1e-06
        %v2052 = vadd.f32 %v2046, 1e-06
        %v2053 = vadd.f32 %v2047, 1e-06
        %v2054 = vadd.f32 %v2048, 1e-06
        %v2055 = vrsqrt.pop %v2049
        %v2056 = vmul.f32 %v2055, %v2049
        %v2057 = vmul.f32 %v2056, %v2055
        %v2058 = vmul.f32 0.5, %v2057
        %v2059 = vsub.f32 1.5, %v2058
        %v2060 = vmul.f32 %v2055, %v2059
        %vm2061 = vweird.f32 %v2049
        %vm2062 = vweird.f32 %v2055
        %vm2063 = vmor %vm2061, %vm2062
        %v2064 = vsel %vm2063, %v2055, %v2060
        %v2065 = vrsqrt.pop %v2050
        %v2066 = vmul.f32 %v2065, %v2050
        %v2067 = vmul.f32 %v2066, %v2065
        %v2068 = vmul.f32 0.5, %v2067
        %v2069 = vsub.f32 1.5, %v2068
        %v2070 = vmul.f32 %v2065, %v2069
        %vm2071 = vweird.f32 %v2050
        %vm2072 = vweird.f32 %v2065
        %vm2073 = vmor %vm2071, %vm2072
        %v2074 = vsel %vm2073, %v2065, %v2070
        %v2075 = vrsqrt.pop %v2051
        %v2076 = vmul.f32 %v2075, %v2051
        %v2077 = vmul.f32 %v2076, %v2075
        %v2078 = vmul.f32 0.5, %v2077
        %v2079 = vsub.f32 1.5, %v2078
        %v2080 = vmul.f32 %v2075, %v2079
        %vm2081 = vweird.f32 %v2051
        %vm2082 = vweird.f32 %v2075
        %vm2083 = vmor %vm2081, %vm2082
        %v2084 = vsel %vm2083, %v2075, %v2080
        %v2085 = vrsqrt.pop %v2052
        %v2086 = vmul.f32 %v2085, %v2052
        %v2087 = vmul.f32 %v2086, %v2085
        %v2088 = vmul.f32 0.5, %v2087
        %v2089 = vsub.f32 1.5, %v2088
        %v2090 = vmul.f32 %v2085, %v2089
        %vm2091 = vweird.f32 %v2052
        %vm2092 = vweird.f32 %v2085
        %vm2093 = vmor %vm2091, %vm2092
        %v2094 = vsel %vm2093, %v2085, %v2090
        %v2095 = vrsqrt.pop %v2053
        %v2096 = vmul.f32 %v2095, %v2053
        %v2097 = vmul.f32 %v2096, %v2095
        %v2098 = vmul.f32 0.5, %v2097
        %v2099 = vsub.f32 1.5, %v2098
        %v2100 = vmul.f32 %v2095, %v2099
        %vm2101 = vweird.f32 %v2053
        %vm2102 = vweird.f32 %v2095
        %vm2103 = vmor %vm2101, %vm2102
        %v2104 = vsel %vm2103, %v2095, %v2100
        %v2105 = vrsqrt.pop %v2054
        %v2106 = vmul.f32 %v2105, %v2054
        %v2107 = vmul.f32 %v2106, %v2105
        %v2108 = vmul.f32 0.5, %v2107
        %v2109 = vsub.f32 1.5, %v2108
        %v2110 = vmul.f32 %v2105, %v2109
        %vm2111 = vweird.f32 %v2054
        %vm2112 = vweird.f32 %v2105
        %vm2113 = vmor %vm2111, %vm2112
        %v2114 = vsel %vm2113, %v2105, %v2110
        %v2115 = vmul.f32 %v2013, %v2064
        %v2116 = vmul.f32 %v2014, %v2074
        %v2117 = vmul.f32 %v2015, %v2084
        %v2118 = vmul.f32 %v2016, %v2094
        %v2119 = vmul.f32 %v2017, %v2104
        %v2120 = vmul.f32 %v2018, %v2114
        %v2122 = vperm.slane %v1987, 0
        %v2124 = vmul.f32 %v2115, %v2122
        %v2125 = vmul.f32 %v2116, %v2122
        %v2126 = vmul.f32 %v2117, %v2122
        %v2127 = vmul.f32 %v2118, %v2122
        %v2128 = vmul.f32 %v2119, %v2122
        %v2129 = vmul.f32 %v2120, %v2122
        %v2131 = vperm.slane %v1988, 0
        %v2133 = vadd.f32 %v2124, %v2131
        %v2134 = vadd.f32 %v2125, %v2131
        %v2135 = vadd.f32 %v2126, %v2131
        %v2136 = vadd.f32 %v2127, %v2131
        %v2137 = vadd.f32 %v2128, %v2131
        %v2138 = vadd.f32 %v2129, %v2131
        %v2139 = vpack.c.bf16 %v2134, %v2133
        %v2140 = vpack.c.bf16 %v2136, %v2135
        %v2141 = vpack.c.bf16 %v2138, %v2137
        %v2142 = vld [vmem:[%s776] sm:$0xf]
        %v2143 = vld [vmem:[%s776 + $0x4] sm:$0xf]
        %v2144 = vld [vmem:[%s776 + $0x8] sm:$0xf]
        %v2145 = vld [vmem:[%s776 + $0xc] sm:$0xf]
        %v2146 = vld [vmem:[%s779] sm:$0x1]
        %v2148 = vperm.slane %v2146, 0
        %v2154 = vunpack.c.l.b16 %v2142
        %v2155 = vunpack.c.l.b16 %v2143
        %v2156 = vunpack.c.l.b16 %v2144
        %v2157 = vunpack.c.l.b16 %v2145
        %v2158 = vpack.c.b16 %v2155, %v2154
        %v2159 = vpack.c.b16 %v2157, %v2156
        %v2163 = vsel %vm901, %v2139, 0
        %v2166 = vsel %vm901, %v2140, 0
        %v2169 = vsel %vm901, %v2141, 0
        %2171 = vmatpush.bf16.msra.mxu0 0
        %2172 = vmatpush.bf16.msra.mxu0 0
        %2173 = vmatpush.bf16.msra.mxu0 0
        %2174 = vmatpush.bf16.msra.mxu0 0
        %2175 = vmatpush.bf16.msra.mxu0 0
        %2176 = vmatpush.bf16.msra.mxu0 0
        %2177 = vmatpush.bf16.msra.mxu0 %v2159
        %2178 = vmatpush.bf16.msra.mxu0 %v2158
        %2179 = vmatmul.bf16.gmra.mxu0 %v2163
        %v2180 = vpop.f32.mrf.mxu0
        %v2181 = vadd.f32 %v2148, %v2180
        %v2182 = vpop.f32.mrf.mxu0
        %v2183 = vadd.f32 %v2148, %v2182
        %2184 = vmatmul.bf16.gmra.mxu0 %v2166
        %v2185 = vpop.f32.mrf.mxu0
        %v2186 = vadd.f32 %v2148, %v2185
        %v2187 = vpop.f32.mrf.mxu0
        %v2188 = vadd.f32 %v2148, %v2187
        %2189 = vmatmul.bf16.gmra.mxu0 %v2169
        %v2190 = vpop.f32.mrf.mxu0
        %v2191 = vadd.f32 %v2148, %v2190
        %v2192 = vpop.f32.mrf.mxu0
        %v2193 = vadd.f32 %v2148, %v2192
        %2194 = vdwg.mxu0
        %v2195 = vmul.f32 %v2181, 0.5
        %v2196 = vmul.f32 %v2183, 0.5
        %v2197 = vmul.f32 %v2186, 0.5
        %v2198 = vmul.f32 %v2188, 0.5
        %v2199 = vmul.f32 %v2191, 0.5
        %v2200 = vmul.f32 %v2193, 0.5
        %v2201 = vmul.f32 %v2181, 0.70710677
        %v2202 = vmul.f32 %v2183, 0.70710677
        %v2203 = vmul.f32 %v2186, 0.70710677
        %v2204 = vmul.f32 %v2188, 0.70710677
        %v2205 = vmul.f32 %v2191, 0.70710677
        %v2206 = vmul.f32 %v2193, 0.70710677
        %v2207 = vmul.f32 %v2201, %v2201
        %v2208 = vmin.f32 16.0, %v2207
        %v2209 = vmul.f32 %v2208, 2.1237322e-06
        %v2210 = vadd.f32 %v2209, 0.00028619796
        %v2211 = vmul.f32 %v2208, %v2210
        %v2212 = vadd.f32 %v2211, 0.0036580483
        %v2213 = vmul.f32 %v2208, %v2212
        %v2214 = vadd.f32 %v2213, 0.05243302
        %v2215 = vmul.f32 %v2208, %v2214
        %v2216 = vadd.f32 %v2215, 0.18741608
        %v2217 = vmul.f32 %v2208, %v2216
        %v2218 = vadd.f32 %v2217, 1.1283791
        %v2219 = vmul.f32 %v2201, %v2218
        %v2220 = vmul.f32 %v2208, 3.8918573e-05
        %v2221 = vadd.f32 %v2220, 0.001143296
        %v2222 = vmul.f32 %v2208, %v2221
        %v2223 = vadd.f32 %v2222, 0.014752088
        %v2224 = vmul.f32 %v2208, %v2223
        %v2225 = vadd.f32 %v2224, 0.112945676
        %v2226 = vmul.f32 %v2208, %v2225
        %v2227 = vadd.f32 %v2226, 0.4994258
        %v2228 = vmul.f32 %v2208, %v2227
        %v2229 = vadd.f32 %v2228, 1.0
        %v2230 = vrcp.pop %v2229
        %v2231 = vmul.f32 %v2229, %v2230
        %v2232 = vsub.f32 1.0, %v2231
        %v2233 = vmul.f32 %v2230, %v2232
        %v2234 = vadd.f32 %v2230, %v2233
        %vm2235 = vweird.f32 %v2229
        %vm2236 = vweird.f32 %v2230
        %vm2237 = vmor %vm2235, %vm2236
        %v2238 = vsel %vm2237, %v2230, %v2234
        %v2239 = vand.u32 2147483647, %v2229
        %vm2240 = vcmp.eq.f32.partialorder %v2239, 8.507059e+37
        %v2241 = vand.u32 %v2229, 2147483648
        %v2242 = vor.u32 1.1754944e-38, %v2241
        %v2243 = vsel %vm2240, %v2242, %v2238
        %v2244 = vmul.f32 %v2219, %v2243
        %v2245 = vmin.f32 %v2244, 1.0
        %v2246 = vmax.f32 %v2245, -1.0
        %v2247 = vmul.f32 %v2202, %v2202
        %v2248 = vmin.f32 16.0, %v2247
        %v2249 = vmul.f32 %v2248, 2.1237322e-06
        %v2250 = vadd.f32 %v2249, 0.00028619796
        %v2251 = vmul.f32 %v2248, %v2250
        %v2252 = vadd.f32 %v2251, 0.0036580483
        %v2253 = vmul.f32 %v2248, %v2252
        %v2254 = vadd.f32 %v2253, 0.05243302
        %v2255 = vmul.f32 %v2248, %v2254
        %v2256 = vadd.f32 %v2255, 0.18741608
        %v2257 = vmul.f32 %v2248, %v2256
        %v2258 = vadd.f32 %v2257, 1.1283791
        %v2259 = vmul.f32 %v2202, %v2258
        %v2260 = vmul.f32 %v2248, 3.8918573e-05
        %v2261 = vadd.f32 %v2260, 0.001143296
        %v2262 = vmul.f32 %v2248, %v2261
        %v2263 = vadd.f32 %v2262, 0.014752088
        %v2264 = vmul.f32 %v2248, %v2263
        %v2265 = vadd.f32 %v2264, 0.112945676
        %v2266 = vmul.f32 %v2248, %v2265
        %v2267 = vadd.f32 %v2266, 0.4994258
        %v2268 = vmul.f32 %v2248, %v2267
        %v2269 = vadd.f32 %v2268, 1.0
        %v2270 = vrcp.pop %v2269
        %v2271 = vmul.f32 %v2269, %v2270
        %v2272 = vsub.f32 1.0, %v2271
        %v2273 = vmul.f32 %v2270, %v2272
        %v2274 = vadd.f32 %v2270, %v2273
        %vm2275 = vweird.f32 %v2269
        %vm2276 = vweird.f32 %v2270
        %vm2277 = vmor %vm2275, %vm2276
        %v2278 = vsel %vm2277, %v2270, %v2274
        %v2279 = vand.u32 2147483647, %v2269
        %vm2280 = vcmp.eq.f32.partialorder %v2279, 8.507059e+37
        %v2281 = vand.u32 %v2269, 2147483648
        %v2282 = vor.u32 1.1754944e-38, %v2281
        %v2283 = vsel %vm2280, %v2282, %v2278
        %v2284 = vmul.f32 %v2259, %v2283
        %v2285 = vmin.f32 %v2284, 1.0
        %v2286 = vmax.f32 %v2285, -1.0
        %v2287 = vmul.f32 %v2203, %v2203
        %v2288 = vmin.f32 16.0, %v2287
        %v2289 = vmul.f32 %v2288, 2.1237322e-06
        %v2290 = vadd.f32 %v2289, 0.00028619796
        %v2291 = vmul.f32 %v2288, %v2290
        %v2292 = vadd.f32 %v2291, 0.0036580483
        %v2293 = vmul.f32 %v2288, %v2292
        %v2294 = vadd.f32 %v2293, 0.05243302
        %v2295 = vmul.f32 %v2288, %v2294
        %v2296 = vadd.f32 %v2295, 0.18741608
        %v2297 = vmul.f32 %v2288, %v2296
        %v2298 = vadd.f32 %v2297, 1.1283791
        %v2299 = vmul.f32 %v2203, %v2298
        %v2300 = vmul.f32 %v2288, 3.8918573e-05
        %v2301 = vadd.f32 %v2300, 0.001143296
        %v2302 = vmul.f32 %v2288, %v2301
        %v2303 = vadd.f32 %v2302, 0.014752088
        %v2304 = vmul.f32 %v2288, %v2303
        %v2305 = vadd.f32 %v2304, 0.112945676
        %v2306 = vmul.f32 %v2288, %v2305
        %v2307 = vadd.f32 %v2306, 0.4994258
        %v2308 = vmul.f32 %v2288, %v2307
        %v2309 = vadd.f32 %v2308, 1.0
        %v2310 = vrcp.pop %v2309
        %v2311 = vmul.f32 %v2309, %v2310
        %v2312 = vsub.f32 1.0, %v2311
        %v2313 = vmul.f32 %v2310, %v2312
        %v2314 = vadd.f32 %v2310, %v2313
        %vm2315 = vweird.f32 %v2309
        %vm2316 = vweird.f32 %v2310
        %vm2317 = vmor %vm2315, %vm2316
        %v2318 = vsel %vm2317, %v2310, %v2314
        %v2319 = vand.u32 2147483647, %v2309
        %vm2320 = vcmp.eq.f32.partialorder %v2319, 8.507059e+37
        %v2321 = vand.u32 %v2309, 2147483648
        %v2322 = vor.u32 1.1754944e-38, %v2321
        %v2323 = vsel %vm2320, %v2322, %v2318
        %v2324 = vmul.f32 %v2299, %v2323
        %v2325 = vmin.f32 %v2324, 1.0
        %v2326 = vmax.f32 %v2325, -1.0
        %v2327 = vmul.f32 %v2204, %v2204
        %v2328 = vmin.f32 16.0, %v2327
        %v2329 = vmul.f32 %v2328, 2.1237322e-06
        %v2330 = vadd.f32 %v2329, 0.00028619796
        %v2331 = vmul.f32 %v2328, %v2330
        %v2332 = vadd.f32 %v2331, 0.0036580483
        %v2333 = vmul.f32 %v2328, %v2332
        %v2334 = vadd.f32 %v2333, 0.05243302
        %v2335 = vmul.f32 %v2328, %v2334
        %v2336 = vadd.f32 %v2335, 0.18741608
        %v2337 = vmul.f32 %v2328, %v2336
        %v2338 = vadd.f32 %v2337, 1.1283791
        %v2339 = vmul.f32 %v2204, %v2338
        %v2340 = vmul.f32 %v2328, 3.8918573e-05
        %v2341 = vadd.f32 %v2340, 0.001143296
        %v2342 = vmul.f32 %v2328, %v2341
        %v2343 = vadd.f32 %v2342, 0.014752088
        %v2344 = vmul.f32 %v2328, %v2343
        %v2345 = vadd.f32 %v2344, 0.112945676
        %v2346 = vmul.f32 %v2328, %v2345
        %v2347 = vadd.f32 %v2346, 0.4994258
        %v2348 = vmul.f32 %v2328, %v2347
        %v2349 = vadd.f32 %v2348, 1.0
        %v2350 = vrcp.pop %v2349
        %v2351 = vmul.f32 %v2349, %v2350
        %v2352 = vsub.f32 1.0, %v2351
        %v2353 = vmul.f32 %v2350, %v2352
        %v2354 = vadd.f32 %v2350, %v2353
        %vm2355 = vweird.f32 %v2349
        %vm2356 = vweird.f32 %v2350
        %vm2357 = vmor %vm2355, %vm2356
        %v2358 = vsel %vm2357, %v2350, %v2354
        %v2359 = vand.u32 2147483647, %v2349
        %vm2360 = vcmp.eq.f32.partialorder %v2359, 8.507059e+37
        %v2361 = vand.u32 %v2349, 2147483648
        %v2362 = vor.u32 1.1754944e-38, %v2361
        %v2363 = vsel %vm2360, %v2362, %v2358
        %v2364 = vmul.f32 %v2339, %v2363
        %v2365 = vmin.f32 %v2364, 1.0
        %v2366 = vmax.f32 %v2365, -1.0
        %v2367 = vmul.f32 %v2205, %v2205
        %v2368 = vmin.f32 16.0, %v2367
        %v2369 = vmul.f32 %v2368, 2.1237322e-06
        %v2370 = vadd.f32 %v2369, 0.00028619796
        %v2371 = vmul.f32 %v2368, %v2370
        %v2372 = vadd.f32 %v2371, 0.0036580483
        %v2373 = vmul.f32 %v2368, %v2372
        %v2374 = vadd.f32 %v2373, 0.05243302
        %v2375 = vmul.f32 %v2368, %v2374
        %v2376 = vadd.f32 %v2375, 0.18741608
        %v2377 = vmul.f32 %v2368, %v2376
        %v2378 = vadd.f32 %v2377, 1.1283791
        %v2379 = vmul.f32 %v2205, %v2378
        %v2380 = vmul.f32 %v2368, 3.8918573e-05
        %v2381 = vadd.f32 %v2380, 0.001143296
        %v2382 = vmul.f32 %v2368, %v2381
        %v2383 = vadd.f32 %v2382, 0.014752088
        %v2384 = vmul.f32 %v2368, %v2383
        %v2385 = vadd.f32 %v2384, 0.112945676
        %v2386 = vmul.f32 %v2368, %v2385
        %v2387 = vadd.f32 %v2386, 0.4994258
        %v2388 = vmul.f32 %v2368, %v2387
        %v2389 = vadd.f32 %v2388, 1.0
        %v2390 = vrcp.pop %v2389
        %v2391 = vmul.f32 %v2389, %v2390
        %v2392 = vsub.f32 1.0, %v2391
        %v2393 = vmul.f32 %v2390, %v2392
        %v2394 = vadd.f32 %v2390, %v2393
        %vm2395 = vweird.f32 %v2389
        %vm2396 = vweird.f32 %v2390
        %vm2397 = vmor %vm2395, %vm2396
        %v2398 = vsel %vm2397, %v2390, %v2394
        %v2399 = vand.u32 2147483647, %v2389
        %vm2400 = vcmp.eq.f32.partialorder %v2399, 8.507059e+37
        %v2401 = vand.u32 %v2389, 2147483648
        %v2402 = vor.u32 1.1754944e-38, %v2401
        %v2403 = vsel %vm2400, %v2402, %v2398
        %v2404 = vmul.f32 %v2379, %v2403
        %v2405 = vmin.f32 %v2404, 1.0
        %v2406 = vmax.f32 %v2405, -1.0
        %v2407 = vmul.f32 %v2206, %v2206
        %v2408 = vmin.f32 16.0, %v2407
        %v2409 = vmul.f32 %v2408, 2.1237322e-06
        %v2410 = vadd.f32 %v2409, 0.00028619796
        %v2411 = vmul.f32 %v2408, %v2410
        %v2412 = vadd.f32 %v2411, 0.0036580483
        %v2413 = vmul.f32 %v2408, %v2412
        %v2414 = vadd.f32 %v2413, 0.05243302
        %v2415 = vmul.f32 %v2408, %v2414
        %v2416 = vadd.f32 %v2415, 0.18741608
        %v2417 = vmul.f32 %v2408, %v2416
        %v2418 = vadd.f32 %v2417, 1.1283791
        %v2419 = vmul.f32 %v2206, %v2418
        %v2420 = vmul.f32 %v2408, 3.8918573e-05
        %v2421 = vadd.f32 %v2420, 0.001143296
        %v2422 = vmul.f32 %v2408, %v2421
        %v2423 = vadd.f32 %v2422, 0.014752088
        %v2424 = vmul.f32 %v2408, %v2423
        %v2425 = vadd.f32 %v2424, 0.112945676
        %v2426 = vmul.f32 %v2408, %v2425
        %v2427 = vadd.f32 %v2426, 0.4994258
        %v2428 = vmul.f32 %v2408, %v2427
        %v2429 = vadd.f32 %v2428, 1.0
        %v2430 = vrcp.pop %v2429
        %v2431 = vmul.f32 %v2429, %v2430
        %v2432 = vsub.f32 1.0, %v2431
        %v2433 = vmul.f32 %v2430, %v2432
        %v2434 = vadd.f32 %v2430, %v2433
        %vm2435 = vweird.f32 %v2429
        %vm2436 = vweird.f32 %v2430
        %vm2437 = vmor %vm2435, %vm2436
        %v2438 = vsel %vm2437, %v2430, %v2434
        %v2439 = vand.u32 2147483647, %v2429
        %vm2440 = vcmp.eq.f32.partialorder %v2439, 8.507059e+37
        %v2441 = vand.u32 %v2429, 2147483648
        %v2442 = vor.u32 1.1754944e-38, %v2441
        %v2443 = vsel %vm2440, %v2442, %v2438
        %v2444 = vmul.f32 %v2419, %v2443
        %v2445 = vmin.f32 %v2444, 1.0
        %v2446 = vmax.f32 %v2445, -1.0
        %v2447 = vadd.f32 %v2246, 1.0
        %v2448 = vadd.f32 %v2286, 1.0
        %v2449 = vadd.f32 %v2326, 1.0
        %v2450 = vadd.f32 %v2366, 1.0
        %v2451 = vadd.f32 %v2406, 1.0
        %v2452 = vadd.f32 %v2446, 1.0
        %v2453 = vmul.f32 %v2195, %v2447
        %v2454 = vmul.f32 %v2196, %v2448
        %v2455 = vmul.f32 %v2197, %v2449
        %v2456 = vmul.f32 %v2198, %v2450
        %v2457 = vmul.f32 %v2199, %v2451
        %v2458 = vmul.f32 %v2200, %v2452
        %v2459 = vpack.c.bf16 %v2454, %v2453
        %v2460 = vpack.c.bf16 %v2456, %v2455
        %v2461 = vpack.c.bf16 %v2458, %v2457
        %v2462 = vld [vmem:[%s784] sm:$0xf]
        %v2463 = vld [vmem:[%s784 + $0x4] sm:$0xf]
        %v2464 = vld [vmem:[%s784 + $0x8] sm:$0xf]
        %v2465 = vld [vmem:[%s784 + $0xc] sm:$0xf]
        %v2466 = vld [vmem:[%s784 + $0x10] sm:$0xf]
        %v2467 = vld [vmem:[%s784 + $0x14] sm:$0xf]
        %v2468 = vld [vmem:[%s784 + $0x18] sm:$0xf]
        %v2469 = vld [vmem:[%s784 + $0x1c] sm:$0xf]
        %v2470 = vld [vmem:[%s784 + $0x20] sm:$0xf]
        %v2471 = vld [vmem:[%s784 + $0x24] sm:$0xf]
        %v2472 = vld [vmem:[%s784 + $0x28] sm:$0xf]
        %v2473 = vld [vmem:[%s784 + $0x2c] sm:$0xf]
        %v2474 = vld [vmem:[%s784 + $0x30] sm:$0xf]
        %v2475 = vld [vmem:[%s784 + $0x34] sm:$0xf]
        %v2476 = vld [vmem:[%s784 + $0x38] sm:$0xf]
        %v2477 = vld [vmem:[%s784 + $0x3c] sm:$0xf]
        %v2478 = vld [vmem:[%s787] sm:$0x1]
        %v2480 = vperm.slane %v2478, 0
        %v2498 = vunpack.c.l.b16 %v2462
        %v2499 = vunpack.c.l.b16 %v2463
        %v2500 = vunpack.c.l.b16 %v2464
        %v2501 = vunpack.c.l.b16 %v2465
        %v2502 = vunpack.c.l.b16 %v2466
        %v2503 = vunpack.c.l.b16 %v2467
        %v2504 = vunpack.c.l.b16 %v2468
        %v2505 = vunpack.c.l.b16 %v2469
        %v2506 = vunpack.c.l.b16 %v2470
        %v2507 = vunpack.c.l.b16 %v2471
        %v2508 = vunpack.c.l.b16 %v2472
        %v2509 = vunpack.c.l.b16 %v2473
        %v2510 = vunpack.c.l.b16 %v2474
        %v2511 = vunpack.c.l.b16 %v2475
        %v2512 = vunpack.c.l.b16 %v2476
        %v2513 = vunpack.c.l.b16 %v2477
        %v2514 = vpack.c.b16 %v2499, %v2498
        %v2515 = vpack.c.b16 %v2501, %v2500
        %v2516 = vpack.c.b16 %v2503, %v2502
        %v2517 = vpack.c.b16 %v2505, %v2504
        %v2518 = vpack.c.b16 %v2507, %v2506
        %v2519 = vpack.c.b16 %v2509, %v2508
        %v2520 = vpack.c.b16 %v2511, %v2510
        %v2521 = vpack.c.b16 %v2513, %v2512
        %2530 = vmatpush.bf16.msra.mxu0 %v2521
        %2531 = vmatpush.bf16.msra.mxu0 %v2520
        %2532 = vmatpush.bf16.msra.mxu0 %v2519
        %2533 = vmatpush.bf16.msra.mxu0 %v2518
        %2534 = vmatpush.bf16.msra.mxu0 %v2517
        %2535 = vmatpush.bf16.msra.mxu0 %v2516
        %2536 = vmatpush.bf16.msra.mxu0 %v2515
        %2537 = vmatpush.bf16.msra.mxu0 %v2514
        %2538 = vmatmul.bf16.gmra.mxu0 %v2459
        %v2539 = vpop.f32.mrf.mxu0
        %v2540 = vadd.f32 %v2480, %v2539
        %v2541 = vpop.f32.mrf.mxu0
        %v2542 = vadd.f32 %v2480, %v2541
        %2543 = vmatmul.bf16.gmra.mxu0 %v2460
        %v2544 = vpop.f32.mrf.mxu0
        %v2545 = vadd.f32 %v2480, %v2544
        %v2546 = vpop.f32.mrf.mxu0
        %v2547 = vadd.f32 %v2480, %v2546
        %2548 = vmatmul.bf16.gmra.mxu0 %v2461
        %v2549 = vpop.f32.mrf.mxu0
        %v2550 = vadd.f32 %v2480, %v2549
        %v2551 = vpop.f32.mrf.mxu0
        %v2552 = vadd.f32 %v2480, %v2551
        %2553 = vdwg.mxu0
        %v2554 = vadd.f32 %v1981, %v2540
        %v2555 = vadd.f32 %v1982, %v2542
        %v2556 = vadd.f32 %v1983, %v2545
        %v2557 = vadd.f32 %v1984, %v2547
        %v2558 = vadd.f32 %v1985, %v2550
        %v2559 = vadd.f32 %v1986, %v2552
        %2560 = vst.msk [vmem:[#allocation2] sm:$0xff] %vm901, %v2554
        %2561 = vst.msk [vmem:[#allocation2 + $0x8] sm:$0xff] %vm901, %v2555
        %2562 = vst.msk [vmem:[#allocation2 + $0x10] sm:$0xff] %vm901, %v2556
        %2563 = vst.msk [vmem:[#allocation2 + $0x18] sm:$0xff] %vm901, %v2557
        %2564 = vst.msk [vmem:[#allocation2 + $0x20] sm:$0xff] %vm901, %v2558
        %2565 = vst.msk [vmem:[#allocation2 + $0x28] sm:$0xff] %vm901, %v2559
        %p2566 = scmp.eq.s32.totalorder %s32, 1
        // Predicated region
        $region105: #{vit_forward.1} parent=99 // pred_check
          %p2567 = pneg %p2566
        $region106: #{vit_forward.1} parent=99 // pred_check_branch
          %2569 = sbr.rel (%p2567) target = $region108
        $region107: #{vit_forward.1} parent=99 // pred_region
          %v2570 = vld [vmem:[%s16] sm:$0x1]
          %v2571 = vld [vmem:[%s17] sm:$0x1]
          %v2572 = vsel %vm901, %v2554, 0.0
          %2573 = vadd.xlane.f32.xlu0 %v2572
          %v2574 = vpop.xlane.xlu0 %2573
          %v2575 = vsel %vm901, %v2555, 0.0
          %2576 = vadd.xlane.f32.xlu0 %v2575
          %v2577 = vpop.xlane.xlu0 %2576
          %v2578 = vsel %vm901, %v2556, 0.0
          %2579 = vadd.xlane.f32.xlu0 %v2578
          %v2580 = vpop.xlane.xlu0 %2579
          %v2581 = vsel %vm901, %v2557, 0.0
          %2582 = vadd.xlane.f32.xlu0 %v2581
          %v2583 = vpop.xlane.xlu0 %2582
          %v2584 = vsel %vm901, %v2558, 0.0
          %2585 = vadd.xlane.f32.xlu0 %v2584
          %v2586 = vpop.xlane.xlu0 %2585
          %v2587 = vsel %vm901, %v2559, 0.0
          %2588 = vadd.xlane.f32.xlu0 %v2587
          %v2589 = vpop.xlane.xlu0 %2588
          %v2590 = vmul.f32 %v2574, %v926
          %v2591 = vmul.f32 %v2577, %v926
          %v2592 = vmul.f32 %v2580, %v926
          %v2593 = vmul.f32 %v2583, %v926
          %v2594 = vmul.f32 %v2586, %v926
          %v2595 = vmul.f32 %v2589, %v926
          %v2596 = vsub.f32 %v2554, %v2590
          %v2597 = vsub.f32 %v2555, %v2591
          %v2598 = vsub.f32 %v2556, %v2592
          %v2599 = vsub.f32 %v2557, %v2593
          %v2600 = vsub.f32 %v2558, %v2594
          %v2601 = vsub.f32 %v2559, %v2595
          %v2602 = vmul.f32 %v2596, %v2596
          %v2603 = vmul.f32 %v2597, %v2597
          %v2604 = vmul.f32 %v2598, %v2598
          %v2605 = vmul.f32 %v2599, %v2599
          %v2606 = vmul.f32 %v2600, %v2600
          %v2607 = vmul.f32 %v2601, %v2601
          %v2608 = vsel %vm901, %v2602, 0.0
          %2609 = vadd.xlane.f32.xlu0 %v2608
          %v2610 = vpop.xlane.xlu0 %2609
          %v2611 = vsel %vm901, %v2603, 0.0
          %2612 = vadd.xlane.f32.xlu0 %v2611
          %v2613 = vpop.xlane.xlu0 %2612
          %v2614 = vsel %vm901, %v2604, 0.0
          %2615 = vadd.xlane.f32.xlu0 %v2614
          %v2616 = vpop.xlane.xlu0 %2615
          %v2617 = vsel %vm901, %v2605, 0.0
          %2618 = vadd.xlane.f32.xlu0 %v2617
          %v2619 = vpop.xlane.xlu0 %2618
          %v2620 = vsel %vm901, %v2606, 0.0
          %2621 = vadd.xlane.f32.xlu0 %v2620
          %v2622 = vpop.xlane.xlu0 %2621
          %v2623 = vsel %vm901, %v2607, 0.0
          %2624 = vadd.xlane.f32.xlu0 %v2623
          %v2625 = vpop.xlane.xlu0 %2624
          %v2626 = vmul.f32 %v2610, %v926
          %v2627 = vmul.f32 %v2613, %v926
          %v2628 = vmul.f32 %v2616, %v926
          %v2629 = vmul.f32 %v2619, %v926
          %v2630 = vmul.f32 %v2622, %v926
          %v2631 = vmul.f32 %v2625, %v926
          %v2632 = vadd.f32 %v2626, 1e-06
          %v2633 = vadd.f32 %v2627, 1e-06
          %v2634 = vadd.f32 %v2628, 1e-06
          %v2635 = vadd.f32 %v2629, 1e-06
          %v2636 = vadd.f32 %v2630, 1e-06
          %v2637 = vadd.f32 %v2631, 1e-06
          %v2638 = vrsqrt.pop %v2632
          %v2639 = vmul.f32 %v2638, %v2632
          %v2640 = vmul.f32 %v2639, %v2638
          %v2641 = vmul.f32 0.5, %v2640
          %v2642 = vsub.f32 1.5, %v2641
          %v2643 = vmul.f32 %v2638, %v2642
          %vm2644 = vweird.f32 %v2632
          %vm2645 = vweird.f32 %v2638
          %vm2646 = vmor %vm2644, %vm2645
          %v2647 = vsel %vm2646, %v2638, %v2643
          %v2648 = vrsqrt.pop %v2633
          %v2649 = vmul.f32 %v2648, %v2633
          %v2650 = vmul.f32 %v2649, %v2648
          %v2651 = vmul.f32 0.5, %v2650
          %v2652 = vsub.f32 1.5, %v2651
          %v2653 = vmul.f32 %v2648, %v2652
          %vm2654 = vweird.f32 %v2633
          %vm2655 = vweird.f32 %v2648
          %vm2656 = vmor %vm2654, %vm2655
          %v2657 = vsel %vm2656, %v2648, %v2653
          %v2658 = vrsqrt.pop %v2634
          %v2659 = vmul.f32 %v2658, %v2634
          %v2660 = vmul.f32 %v2659, %v2658
          %v2661 = vmul.f32 0.5, %v2660
          %v2662 = vsub.f32 1.5, %v2661
          %v2663 = vmul.f32 %v2658, %v2662
          %vm2664 = vweird.f32 %v2634
          %vm2665 = vweird.f32 %v2658
          %vm2666 = vmor %vm2664, %vm2665
          %v2667 = vsel %vm2666, %v2658, %v2663
          %v2668 = vrsqrt.pop %v2635
          %v2669 = vmul.f32 %v2668, %v2635
          %v2670 = vmul.f32 %v2669, %v2668
          %v2671 = vmul.f32 0.5, %v2670
          %v2672 = vsub.f32 1.5, %v2671
          %v2673 = vmul.f32 %v2668, %v2672
          %vm2674 = vweird.f32 %v2635
          %vm2675 = vweird.f32 %v2668
          %vm2676 = vmor %vm2674, %vm2675
          %v2677 = vsel %vm2676, %v2668, %v2673
          %v2678 = vrsqrt.pop %v2636
          %v2679 = vmul.f32 %v2678, %v2636
          %v2680 = vmul.f32 %v2679, %v2678
          %v2681 = vmul.f32 0.5, %v2680
          %v2682 = vsub.f32 1.5, %v2681
          %v2683 = vmul.f32 %v2678, %v2682
          %vm2684 = vweird.f32 %v2636
          %vm2685 = vweird.f32 %v2678
          %vm2686 = vmor %vm2684, %vm2685
          %v2687 = vsel %vm2686, %v2678, %v2683
          %v2688 = vrsqrt.pop %v2637
          %v2689 = vmul.f32 %v2688, %v2637
          %v2690 = vmul.f32 %v2689, %v2688
          %v2691 = vmul.f32 0.5, %v2690
          %v2692 = vsub.f32 1.5, %v2691
          %v2693 = vmul.f32 %v2688, %v2692
          %vm2694 = vweird.f32 %v2637
          %vm2695 = vweird.f32 %v2688
          %vm2696 = vmor %vm2694, %vm2695
          %v2697 = vsel %vm2696, %v2688, %v2693
          %v2698 = vmul.f32 %v2596, %v2647
          %v2699 = vmul.f32 %v2597, %v2657
          %v2700 = vmul.f32 %v2598, %v2667
          %v2701 = vmul.f32 %v2599, %v2677
          %v2702 = vmul.f32 %v2600, %v2687
          %v2703 = vmul.f32 %v2601, %v2697
          %v2705 = vperm.slane %v2570, 0
          %v2707 = vmul.f32 %v2698, %v2705
          %v2708 = vmul.f32 %v2699, %v2705
          %v2709 = vmul.f32 %v2700, %v2705
          %v2710 = vmul.f32 %v2701, %v2705
          %v2711 = vmul.f32 %v2702, %v2705
          %v2712 = vmul.f32 %v2703, %v2705
          %v2714 = vperm.slane %v2571, 0
          %v2716 = vadd.f32 %v2707, %v2714
          %v2717 = vadd.f32 %v2708, %v2714
          %v2718 = vadd.f32 %v2709, %v2714
          %v2719 = vadd.f32 %v2710, %v2714
          %v2720 = vadd.f32 %v2711, %v2714
          %v2721 = vadd.f32 %v2712, %v2714
          %v2722 = vpack.c.bf16 %v2717, %v2716
          %v2723 = vpack.c.bf16 %v2719, %v2718
          %v2724 = vpack.c.bf16 %v2721, %v2720
          %v2725 = vld [vmem:[%s18] sm:$0xf]
          %v2726 = vld [vmem:[%s18 + $0x4] sm:$0xf]
          %v2727 = vld [vmem:[%s18 + $0x8] sm:$0xf]
          %v2728 = vld [vmem:[%s18 + $0xc] sm:$0xf]
          %v2729 = vld [vmem:[%s19] sm:$0x1]
          %v2731 = vperm.slane %v2729, 0
          %v2737 = vunpack.c.l.b16 %v2725
          %v2738 = vunpack.c.l.b16 %v2726
          %v2739 = vunpack.c.l.b16 %v2727
          %v2740 = vunpack.c.l.b16 %v2728
          %v2741 = vpack.c.b16 %v2738, %v2737
          %v2742 = vpack.c.b16 %v2740, %v2739
          %v2746 = vsel %vm901, %v2722, 0
          %v2749 = vsel %vm901, %v2723, 0
          %v2752 = vsel %vm901, %v2724, 0
          %2754 = vmatpush.bf16.msra.mxu0 0
          %2755 = vmatpush.bf16.msra.mxu0 0
          %2756 = vmatpush.bf16.msra.mxu0 0
          %2757 = vmatpush.bf16.msra.mxu0 0
          %2758 = vmatpush.bf16.msra.mxu0 0
          %2759 = vmatpush.bf16.msra.mxu0 0
          %2760 = vmatpush.bf16.msra.mxu0 %v2742
          %2761 = vmatpush.bf16.msra.mxu0 %v2741
          %2762 = vmatmul.bf16.gmra.mxu0 %v2746
          %v2763 = vpop.f32.mrf.mxu0
          %v2764 = vadd.f32 %v2731, %v2763
          %v2765 = vpop.f32.mrf.mxu0
          %2766 = vmatmul.bf16.gmra.mxu0 %v2749
          %v2767 = vpop.f32.mrf.mxu0
          %v2768 = vpop.f32.mrf.mxu0
          %v2769 = vadd.f32 %v2731, %v2768
          %2770 = vmatmul.bf16.gmra.mxu0 %v2752
          %v2771 = vpop.f32.mrf.mxu0
          %v2772 = vpop.f32.mrf.mxu0
          %2773 = vdwg.mxu0
          %2774 = vst [vmem:[#allocation3] sm:$0x1] %v2764
          %2775 = vst [vmem:[#allocation3 + $0x1] sm:$0x1] %v2769
        $region108: #{vit_forward.1} parent=99 // pred_fallthru
          _
        // Predicated region
        $region109: #{vit_forward.1} parent=99 // pred_check
          %p2776 = pneg %p525
        $region110: #{vit_forward.1} parent=99 // pred_check_branch
          %2778 = sbr.rel (%p2776) target = $region112
        $region111: #{vit_forward.1} parent=99 // pred_region
          %2780 = vsyncadd [#allocation4], 0
          %s2782 = sshll.u32 [#allocation3], 4
          %s2783 = int_to_ptr.vmem [resolvable:$true] %s2782
          %s2784 = sshll.u32 %s20, 4
          %s2785 = int_to_ptr.hbm [resolvable:$true] %s2784
          %2787 = dma.vmem_to_hbm [thread:$0]  %s2783, 32, %s2785, [#allocation4]
        $region112: #{vit_forward.1} parent=99 // pred_fallthru
          _
        // Predicated region
        $region113: #{vit_forward.1} parent=99 // pred_check
          %p2788 = pneg %p525
        $region114: #{vit_forward.1} parent=99 // pred_check_branch
          %2790 = sbr.rel (%p2788) target = $region116
        $region115: #{vit_forward.1} parent=99 // pred_region
          %2792 = dma.done [#allocation4], 32
        $region116: #{vit_forward.1} parent=99 // pred_fallthru
          _
      $region100: #{vit_forward.1} parent=5 // pred_fallthru
        _
      %p2793 = scmp.le.s32.totalorder 2, %s27
      // Predicated region
      $region117: #{vit_forward.1} parent=5 // pred_check
        %p2794 = pneg %p2793
      $region118: #{vit_forward.1} parent=5 // pred_check_branch
        %2796 = sbr.rel (%p2794) target = $region120
      $region119: #{vit_forward.1} parent=5 // pred_region
        %s2797 = ssub.s32 %s27, 2
      $region120: #{vit_forward.1} parent=5 // pred_fallthru
        _
    $region6: #{vit_forward.1} parent=1 // loop_footer
      %s31 = sadd.s32 1, %s27
    $region7: #{vit_forward.1} parent=1 // loop_footer_branch
      %26 = sbr.rel target = $region3
    $region8: #{vit_forward.1} parent=1 // loop_exit
      _
    %2798 = vsyncpa [#allocation4], 1
    %s2799 = scalar_lea.sflag [#allocation4], 1
    %2800 = vsyncpa %s2799, 1

</llo_original>
